<compile_context>
chip_gen: v6e
topology: v6e:2x2x1
jax: 0.10.0
libtpu: 0.0.40
codegen_flags: <defaults>
</compile_context>

<pallas_src>
import functools

import jax
import jax.numpy as jnp
from jax.experimental import pallas as pl
from jax.experimental.pallas import tpu as pltpu


def _round_up(x, m):
    return (x + m - 1) // m * m


# ---------------------------------------------------------------------------
# Kernel 1: tiled matmul + bias + ReLU (used for conv1 / conv2 after im2col)
# ---------------------------------------------------------------------------
def _matmul_bias_relu_kernel(x_ref, w_ref, b_ref, o_ref):
    acc = jnp.dot(x_ref[...].astype(jnp.bfloat16), w_ref[...],
                  preferred_element_type=jnp.float32)
    acc = jnp.maximum(acc + b_ref[...], 0.0)          # bias/ReLU in f32
    o_ref[...] = acc.astype(o_ref.dtype)


def matmul_bias_relu(x, w, b, out_dtype=jnp.bfloat16, tm=512):
    """y = relu(x @ w + b), M-tiled so DMA overlaps MXU work."""
    M, K = x.shape
    Kw, N = w.shape
    assert K == Kw and b.shape == (1, N)
    M_pad = _round_up(M, 8)                            # sublane-align rows
    if M_pad != M:
        x = jnp.pad(x, ((0, M_pad - M), (0, 0)))
    TM = min(tm, M_pad)                                # multiple of 8
    grid_m = pl.cdiv(M_pad, TM)
    out = pl.pallas_call(
        _matmul_bias_relu_kernel,
        out_shape=jax.ShapeDtypeStruct((M_pad, N), out_dtype),
        grid=(grid_m,),
        in_specs=[
            pl.BlockSpec((TM, K), lambda i: (i, 0)),
            pl.BlockSpec((K, N), lambda i: (0, 0)),
            pl.BlockSpec((1, N), lambda i: (0, 0)),
        ],
        out_specs=pl.BlockSpec((TM, N), lambda i: (i, 0)),
        compiler_params=pltpu.CompilerParams(
            dimension_semantics=("parallel",)),
    )(x, w, b)
    return out[:M] if M_pad != M else out


# ---------------------------------------------------------------------------
# Kernel 2: fused tail = conv3 (as 4 position-matmuls) + flatten + l1 + l2
# ---------------------------------------------------------------------------
def _tail_kernel(p_ref, w3_ref, b3_ref, w1_ref, b1_ref, w2_ref, b2_ref, o_ref):
    # p_ref:  [4, TB, 1024]  conv3 im2col patches per output position (bf16)
    # w3_ref: [1024, 64] bf16   b3_ref: [1, 64] f32
    # w1_ref: [4, 64, 128] bf16 (rows permuted to NHWC flatten order)
    # b1_ref: [1, 128] f32      w2_ref: [128, 5] bf16   b2_ref: [1, 5] f32
    w3 = w3_ref[...]
    b3 = b3_ref[...]
    h = None
    for pos in range(4):                               # static unroll
        patch = p_ref[pos]                             # [TB, 1024]
        c3 = jnp.dot(patch, w3, preferred_element_type=jnp.float32) + b3
        c3 = jnp.maximum(c3, 0.0)                      # conv3 ReLU, stays in VMEM
        contrib = jnp.dot(c3.astype(jnp.bfloat16), w1_ref[pos],
                          preferred_element_type=jnp.float32)
        h = contrib if h is None else h + contrib
    h = jnp.maximum(h + b1_ref[...], 0.0)              # l1 + ReLU
    out = jnp.dot(h.astype(jnp.bfloat16), w2_ref[...],
                  preferred_element_type=jnp.float32) + b2_ref[...]
    col = jax.lax.broadcasted_iota(jnp.int32, out.shape, dimension=1)
    out = jnp.where(col >= 2, jax.nn.sigmoid(out), out)  # out[:, 2:] = sigmoid
    o_ref[...] = out.astype(o_ref.dtype)


def fused_tail(x2, prep):
    """x2: [N, 6, 6, 64] conv2 activations (bf16) -> [N, 5] logits/probs."""
    N, H, W, C = x2.shape
    assert H == 6 and W == 6 and C == 64, "spatial size must reduce to 2x2"
    # conv3 im2col: 4 output positions, each patch is a contiguous 4x4 window.
    pats = []
    for oh in range(2):
        for ow in range(2):
            pats.append(x2[:, oh * 2:oh * 2 + 4, ow * 2:ow * 2 + 4, :]
                        .reshape(N, 4 * 4 * 64))
    p = jnp.stack(pats, axis=0)                        # [4, N, 1024]

    if N > 512:
        N_pad = _round_up(N, 8)
        if N_pad != N:
            p = jnp.pad(p, ((0, 0), (0, N_pad - N), (0, 0)))
        TB = 512
    else:
        N_pad, TB = N, N                               # single batch tile
    grid_b = pl.cdiv(N_pad, TB)

    out = pl.pallas_call(
        _tail_kernel,
        out_shape=jax.ShapeDtypeStruct((N_pad, 5), jnp.float32),
        grid=(grid_b,),
        in_specs=[
            pl.BlockSpec((4, TB, 1024), lambda i: (0, i, 0)),
            pl.BlockSpec((1024, 64), lambda i: (0, 0)),
            pl.BlockSpec((1, 64), lambda i: (0, 0)),
            pl.BlockSpec((4, 64, 128), lambda i: (0, 0, 0)),
            pl.BlockSpec((1, 128), lambda i: (0, 0)),
            pl.BlockSpec((128, 5), lambda i: (0, 0)),
            pl.BlockSpec((1, 5), lambda i: (0, 0)),
        ],
        out_specs=pl.BlockSpec((TB, 5), lambda i: (i, 0)),
        compiler_params=pltpu.CompilerParams(
            dimension_semantics=("parallel",)),
    )(p, prep["c3_w"], prep["c3_b"], prep["l1_w"], prep["l1_b"],
      prep["l2_w"], prep["l2_b"])
    return out[:N] if N_pad != N else out


# ---------------------------------------------------------------------------
# Plain-JAX glue: im2col patch extraction for conv1 / conv2
# ---------------------------------------------------------------------------
def _im2col(x, k, s):
    """x: [N, H, W, C] -> patches [N*Ho*Wo, k*k*C] with (di, dj, c) ordering."""
    N, H, W, C = x.shape
    Ho = (H - k) // s + 1
    Wo = (W - k) // s + 1
    cols = []
    for di in range(k):
        for dj in range(k):
            cols.append(x[:, di:di + (Ho - 1) * s + 1:s,
                           dj:dj + (Wo - 1) * s + 1:s, :])
    patches = jnp.concatenate(cols, axis=-1)           # [N, Ho, Wo, k*k*C]
    return patches.reshape(N * Ho * Wo, k * k * C), Ho, Wo


# ---------------------------------------------------------------------------
# Parameters
# ---------------------------------------------------------------------------
def init_params(key, in_channels=3):
    """Deterministic PyTorch-style (uniform +/- 1/sqrt(fan_in)) init,
    in PyTorch layouts (conv: OIHW, linear: [out, in])."""
    ks = jax.random.split(key, 10)

    def u(k, shape, fan_in):
        bound = 1.0 / float(fan_in) ** 0.5
        return jax.random.uniform(k, shape, jnp.float32, -bound, bound)

    return {
        "conv1_w": u(ks[0], (32, in_channels, 8, 8), in_channels * 8 * 8),
        "conv1_b": u(ks[1], (32,), in_channels * 8 * 8),
        "conv2_w": u(ks[2], (64, 32, 4, 4), 32 * 4 * 4),
        "conv2_b": u(ks[3], (64,), 32 * 4 * 4),
        "conv3_w": u(ks[4], (64, 64, 4, 4), 64 * 4 * 4),
        "conv3_b": u(ks[5], (64,), 64 * 4 * 4),
        "l1_w": u(ks[6], (128, 64 * 2 * 2), 64 * 2 * 2),
        "l1_b": u(ks[7], (128,), 64 * 2 * 2),
        "l2_w": u(ks[8], (5, 128), 128),
        "l2_b": u(ks[9], (5,), 128),
    }


def prepare_params(params):
    """One-time host-side repack: conv weights OIHW -> [KH*KW*Cin, Cout];
    l1 weights permuted from NCHW-flatten order to NHWC (pos-major) order so
    no runtime transpose is needed; matmul operands pre-cast to bf16."""
    def conv_w(w_oihw):
        cout = w_oihw.shape[0]
        return (jnp.transpose(w_oihw, (2, 3, 1, 0))
                .reshape(-1, cout).astype(jnp.bfloat16))

    # PyTorch l1 input index = c*4 + oh*2 + ow (NCHW flatten of [64, 2, 2]).
    # Repack to [pos=(oh*2+ow), c, 128] so it matches the kernel's
    # per-position accumulation (== NHWC flatten).
    w1 = params["l1_w"].T.reshape(64, 2, 2, 128)             # (c, oh, ow, out)
    w1 = jnp.transpose(w1, (1, 2, 0, 3)).reshape(4, 64, 128)  # (pos, c, out)

    return {
        "c1_w": conv_w(params["conv1_w"]),
        "c1_b": params["conv1_b"].reshape(1, -1).astype(jnp.float32),
        "c2_w": conv_w(params["conv2_w"]),
        "c2_b": params["conv2_b"].reshape(1, -1).astype(jnp.float32),
        "c3_w": conv_w(params["conv3_w"]),
        "c3_b": params["conv3_b"].reshape(1, -1).astype(jnp.float32),
        "l1_w": w1.astype(jnp.bfloat16),
        "l1_b": params["l1_b"].reshape(1, -1).astype(jnp.float32),
        "l2_w": params["l2_w"].T.astype(jnp.bfloat16),        # [128, 5]
        "l2_b": params["l2_b"].reshape(1, -1).astype(jnp.float32),
    }


# ---------------------------------------------------------------------------
# Forward pass
# ---------------------------------------------------------------------------
def convnet_rgb_forward(prep, X):
    # X: [N, H, W, C] (or [H, W, C]) with values in [0, 255], like the module.
    if X.ndim == 3:
        X = X[None]
    N = X.shape[0]
    x = (X.astype(jnp.float32) / 255.0).astype(jnp.bfloat16)   # NHWC, bf16

    # conv1: 8x8 stride 4 + ReLU
    p1, Ho1, Wo1 = _im2col(x, 8, 4)
    x1 = matmul_bias_relu(p1, prep["c1_w"], prep["c1_b"]).reshape(N, Ho1, Wo1, 32)

    # conv2: 4x4 stride 2 + ReLU
    p2, Ho2, Wo2 = _im2col(x1, 4, 2)
    x2 = matmul_bias_relu(p2, prep["c2_w"], prep["c2_b"]).reshape(N, Ho2, Wo2, 64)

    # conv3 + flatten + l1(ReLU) + l2(partial sigmoid) fused in one kernel
    return fused_tail(x2, prep)


if __name__ == "__main__":
    key = jax.random.PRNGKey(0)
    pkey, xkey = jax.random.split(key)
    params = init_params(pkey, in_channels=3)
    prep = prepare_params(params)
    # Spatial size must reduce to 2x2 after conv1(8,4), conv2(4,2), conv3(4,2):
    # 64 -> 15 -> 6 -> 2, so use a 64x64x3 input, batch=2.
    X = jax.random.uniform(xkey, (2, 64, 64, 3), jnp.float32, 0.0, 255.0)
    fwd = jax.jit(convnet_rgb_forward)
    out = jax.block_until_ready(fwd(prep, X))
    assert out.shape == (2, 5) and out.dtype == jnp.float32
    print("KERNEL_OK")
</pallas_src>

<mosaic_0001>
module attributes {stable_mosaic.version = 11 : i64} {
  func.func @_matmul_bias_relu_kernel(%arg0: i32, %arg1: memref<456x192xbf16, #tpu.memory_space<vmem>>, %arg2: memref<192x32xbf16, #tpu.memory_space<vmem>>, %arg3: memref<1x32xf32, #tpu.memory_space<vmem>>, %arg4: memref<456x32xbf16, #tpu.memory_space<vmem>>) attributes {dimension_semantics = [#tpu.dimension_semantics<parallel>], iteration_bounds = array<i64: 1>, scalar_prefetch = 0 : i64, scratch_operands = 0 : i64, tpu.core_type = #tpu.core_type<tc>, window_params = [{transform_indices = @transform_0, window_bounds = array<i64: 456, 192>}, {pipeline_mode = #tpu.pipeline_mode<synchronous>, transform_indices = @transform_1, window_bounds = array<i64: 192, 32>}, {pipeline_mode = #tpu.pipeline_mode<synchronous>, transform_indices = @transform_2, window_bounds = array<i64: 1, 32>}, {transform_indices = @transform_3, window_bounds = array<i64: 456, 32>}]} {
    %c0 = arith.constant 0 : index
    %c0_0 = arith.constant 0 : index
    %0 = vector.load %arg1[%c0, %c0_0] : memref<456x192xbf16, #tpu.memory_space<vmem>>, vector<456x192xbf16>
    %c0_1 = arith.constant 0 : index
    %c0_2 = arith.constant 0 : index
    %1 = vector.load %arg2[%c0_1, %c0_2] : memref<192x32xbf16, #tpu.memory_space<vmem>>, vector<192x32xbf16>
    %cst = arith.constant dense<0.000000e+00> : vector<456x32xf32>
    %2 = tpu.matmul %0, %1, %cst {dimension_numbers = #tpu.dot_dimension_numbers<[1], [0], [0], [1], [0, 0, 1, 1], [], []>} : vector<456x192xbf16>, vector<192x32xbf16>, vector<456x32xf32> -> vector<456x32xf32>
    %c0_3 = arith.constant 0 : index
    %c0_4 = arith.constant 0 : index
    %3 = vector.load %arg3[%c0_3, %c0_4] : memref<1x32xf32, #tpu.memory_space<vmem>>, vector<1x32xf32>
    %4 = vector.broadcast %3 : vector<1x32xf32> to vector<456x32xf32>
    %5 = arith.addf %2, %4 : vector<456x32xf32>
    %cst_5 = arith.constant 0.000000e+00 : f32
    %6 = vector.broadcast %cst_5 : f32 to vector<456x32xf32>
    %7 = arith.maximumf %5, %6 : vector<456x32xf32>
    %8 = arith.truncf %7 : vector<456x32xf32> to vector<456x32xbf16>
    %c0_6 = arith.constant 0 : index
    %c0_7 = arith.constant 0 : index
    %9 = vector.load %arg4[%c0_6, %c0_7] : memref<456x32xbf16, #tpu.memory_space<vmem>>, vector<456x32xbf16>
    tpu.vector_store %arg4[%c0_6, %c0_7], %8 {strides = array<i32>} : memref<456x32xbf16, #tpu.memory_space<vmem>>, vector<456x32xbf16>,
    return
  }
  func.func @transform_0(%arg0: i32) -> (i32, i32) {
    %c0_i32 = arith.constant 0 : i32
    %c0_i32_0 = arith.constant 0 : i32
    return %arg0, %c0_i32 : i32, i32
  }
  func.func @transform_1(%arg0: i32) -> (i32, i32) {
    %c0_i32 = arith.constant 0 : i32
    %c0_i32_0 = arith.constant 0 : i32
    %c0_i32_1 = arith.constant 0 : i32
    return %c0_i32, %c0_i32_0 : i32, i32
  }
  func.func @transform_2(%arg0: i32) -> (i32, i32) {
    %c0_i32 = arith.constant 0 : i32
    %c0_i32_0 = arith.constant 0 : i32
    %c0_i32_1 = arith.constant 0 : i32
    return %c0_i32, %c0_i32_0 : i32, i32
  }
  func.func @transform_3(%arg0: i32) -> (i32, i32) {
    %c0_i32 = arith.constant 0 : i32
    %c0_i32_0 = arith.constant 0 : i32
    return %arg0, %c0_i32 : i32, i32
  }
}

module attributes {stable_mosaic.version = 11 : i64} {
  func.func @_matmul_bias_relu_kernel(%arg0: i32, %arg1: memref<72x512xbf16, #tpu.memory_space<vmem>>, %arg2: memref<512x64xbf16, #tpu.memory_space<vmem>>, %arg3: memref<1x64xf32, #tpu.memory_space<vmem>>, %arg4: memref<72x64xbf16, #tpu.memory_space<vmem>>) attributes {dimension_semantics = [#tpu.dimension_semantics<parallel>], iteration_bounds = array<i64: 1>, scalar_prefetch = 0 : i64, scratch_operands = 0 : i64, tpu.core_type = #tpu.core_type<tc>, window_params = [{transform_indices = @transform_0, window_bounds = array<i64: 72, 512>}, {pipeline_mode = #tpu.pipeline_mode<synchronous>, transform_indices = @transform_1, window_bounds = array<i64: 512, 64>}, {pipeline_mode = #tpu.pipeline_mode<synchronous>, transform_indices = @transform_2, window_bounds = array<i64: 1, 64>}, {transform_indices = @transform_3, window_bounds = array<i64: 72, 64>}]} {
    %c0 = arith.constant 0 : index
    %c0_0 = arith.constant 0 : index
    %0 = vector.load %arg1[%c0, %c0_0] : memref<72x512xbf16, #tpu.memory_space<vmem>>, vector<72x512xbf16>
    %c0_1 = arith.constant 0 : index
    %c0_2 = arith.constant 0 : index
    %1 = vector.load %arg2[%c0_1, %c0_2] : memref<512x64xbf16, #tpu.memory_space<vmem>>, vector<512x64xbf16>
    %cst = arith.constant dense<0.000000e+00> : vector<72x64xf32>
    %2 = tpu.matmul %0, %1, %cst {dimension_numbers = #tpu.dot_dimension_numbers<[1], [0], [0], [1], [0, 0, 1, 1], [], []>} : vector<72x512xbf16>, vector<512x64xbf16>, vector<72x64xf32> -> vector<72x64xf32>
    %c0_3 = arith.constant 0 : index
    %c0_4 = arith.constant 0 : index
    %3 = vector.load %arg3[%c0_3, %c0_4] : memref<1x64xf32, #tpu.memory_space<vmem>>, vector<1x64xf32>
    %4 = vector.broadcast %3 : vector<1x64xf32> to vector<72x64xf32>
    %5 = arith.addf %2, %4 : vector<72x64xf32>
    %cst_5 = arith.constant 0.000000e+00 : f32
    %6 = vector.broadcast %cst_5 : f32 to vector<72x64xf32>
    %7 = arith.maximumf %5, %6 : vector<72x64xf32>
    %8 = arith.truncf %7 : vector<72x64xf32> to vector<72x64xbf16>
    %c0_6 = arith.constant 0 : index
    %c0_7 = arith.constant 0 : index
    %9 = vector.load %arg4[%c0_6, %c0_7] : memref<72x64xbf16, #tpu.memory_space<vmem>>, vector<72x64xbf16>
    tpu.vector_store %arg4[%c0_6, %c0_7], %8 {strides = array<i32>} : memref<72x64xbf16, #tpu.memory_space<vmem>>, vector<72x64xbf16>,
    return
  }
  func.func @transform_0(%arg0: i32) -> (i32, i32) {
    %c0_i32 = arith.constant 0 : i32
    %c0_i32_0 = arith.constant 0 : i32
    return %arg0, %c0_i32 : i32, i32
  }
  func.func @transform_1(%arg0: i32) -> (i32, i32) {
    %c0_i32 = arith.constant 0 : i32
    %c0_i32_0 = arith.constant 0 : i32
    %c0_i32_1 = arith.constant 0 : i32
    return %c0_i32, %c0_i32_0 : i32, i32
  }
  func.func @transform_2(%arg0: i32) -> (i32, i32) {
    %c0_i32 = arith.constant 0 : i32
    %c0_i32_0 = arith.constant 0 : i32
    %c0_i32_1 = arith.constant 0 : i32
    return %c0_i32, %c0_i32_0 : i32, i32
  }
  func.func @transform_3(%arg0: i32) -> (i32, i32) {
    %c0_i32 = arith.constant 0 : i32
    %c0_i32_0 = arith.constant 0 : i32
    return %arg0, %c0_i32 : i32, i32
  }
}

module attributes {stable_mosaic.version = 11 : i64} {
  func.func @_tail_kernel(%arg0: i32, %arg1: memref<4x2x1024xbf16, #tpu.memory_space<vmem>>, %arg2: memref<1024x64xbf16, #tpu.memory_space<vmem>>, %arg3: memref<1x64xf32, #tpu.memory_space<vmem>>, %arg4: memref<4x64x128xbf16, #tpu.memory_space<vmem>>, %arg5: memref<1x128xf32, #tpu.memory_space<vmem>>, %arg6: memref<128x5xbf16, #tpu.memory_space<vmem>>, %arg7: memref<1x5xf32, #tpu.memory_space<vmem>>, %arg8: memref<2x5xf32, #tpu.memory_space<vmem>>) attributes {dimension_semantics = [#tpu.dimension_semantics<parallel>], iteration_bounds = array<i64: 1>, scalar_prefetch = 0 : i64, scratch_operands = 0 : i64, tpu.core_type = #tpu.core_type<tc>, window_params = [{transform_indices = @transform_0, window_bounds = array<i64: 4, 2, 1024>}, {pipeline_mode = #tpu.pipeline_mode<synchronous>, transform_indices = @transform_1, window_bounds = array<i64: 1024, 64>}, {pipeline_mode = #tpu.pipeline_mode<synchronous>, transform_indices = @transform_2, window_bounds = array<i64: 1, 64>}, {pipeline_mode = #tpu.pipeline_mode<synchronous>, transform_indices = @transform_3, window_bounds = array<i64: 4, 64, 128>}, {pipeline_mode = #tpu.pipeline_mode<synchronous>, transform_indices = @transform_4, window_bounds = array<i64: 1, 128>}, {pipeline_mode = #tpu.pipeline_mode<synchronous>, transform_indices = @transform_5, window_bounds = array<i64: 128, 5>}, {pipeline_mode = #tpu.pipeline_mode<synchronous>, transform_indices = @transform_6, window_bounds = array<i64: 1, 5>}, {transform_indices = @transform_7, window_bounds = array<i64: 2, 5>}]} {
    %c0 = arith.constant 0 : index
    %c0_0 = arith.constant 0 : index
    %0 = vector.load %arg2[%c0, %c0_0] : memref<1024x64xbf16, #tpu.memory_space<vmem>>, vector<1024x64xbf16>
    %c0_1 = arith.constant 0 : index
    %c0_2 = arith.constant 0 : index
    %1 = vector.load %arg3[%c0_1, %c0_2] : memref<1x64xf32, #tpu.memory_space<vmem>>, vector<1x64xf32>
    %c0_3 = arith.constant 0 : index
    %c0_4 = arith.constant 0 : index
    %c0_5 = arith.constant 0 : index
    %2 = vector.load %arg1[%c0_3, %c0_4, %c0_5] : memref<4x2x1024xbf16, #tpu.memory_space<vmem>>, vector<1x2x1024xbf16>
    %3 = vector.shape_cast %2 : vector<1x2x1024xbf16> to vector<2x1024xbf16>
    %cst = arith.constant dense<0.000000e+00> : vector<2x64xf32>
    %4 = tpu.matmul %3, %0, %cst {dimension_numbers = #tpu.dot_dimension_numbers<[1], [0], [0], [1], [0, 0, 1, 1], [], []>} : vector<2x1024xbf16>, vector<1024x64xbf16>, vector<2x64xf32> -> vector<2x64xf32>
    %5 = vector.broadcast %1 : vector<1x64xf32> to vector<2x64xf32>
    %6 = arith.addf %4, %5 : vector<2x64xf32>
    %cst_6 = arith.constant 0.000000e+00 : f32
    %7 = vector.broadcast %cst_6 : f32 to vector<2x64xf32>
    %8 = arith.maximumf %6, %7 : vector<2x64xf32>
    %9 = arith.truncf %8 : vector<2x64xf32> to vector<2x64xbf16>
    %c0_7 = arith.constant 0 : index
    %c0_8 = arith.constant 0 : index
    %c0_9 = arith.constant 0 : index
    %10 = vector.load %arg4[%c0_7, %c0_8, %c0_9] : memref<4x64x128xbf16, #tpu.memory_space<vmem>>, vector<1x64x128xbf16>
    %11 = vector.shape_cast %10 : vector<1x64x128xbf16> to vector<64x128xbf16>
    %cst_10 = arith.constant dense<0.000000e+00> : vector<2x128xf32>
    %12 = tpu.matmul %9, %11, %cst_10 {dimension_numbers = #tpu.dot_dimension_numbers<[1], [0], [0], [1], [0, 0, 1, 1], [], []>} : vector<2x64xbf16>, vector<64x128xbf16>, vector<2x128xf32> -> vector<2x128xf32>
    %c1 = arith.constant 1 : index
    %c0_11 = arith.constant 0 : index
    %c0_12 = arith.constant 0 : index
    %13 = vector.load %arg1[%c1, %c0_11, %c0_12] : memref<4x2x1024xbf16, #tpu.memory_space<vmem>>, vector<1x2x1024xbf16>
    %14 = vector.shape_cast %13 : vector<1x2x1024xbf16> to vector<2x1024xbf16>
    %cst_13 = arith.constant dense<0.000000e+00> : vector<2x64xf32>
    %15 = tpu.matmul %14, %0, %cst_13 {dimension_numbers = #tpu.dot_dimension_numbers<[1], [0], [0], [1], [0, 0, 1, 1], [], []>} : vector<2x1024xbf16>, vector<1024x64xbf16>, vector<2x64xf32> -> vector<2x64xf32>
    %16 = vector.broadcast %1 : vector<1x64xf32> to vector<2x64xf32>
    %17 = arith.addf %15, %16 : vector<2x64xf32>
    %cst_14 = arith.constant 0.000000e+00 : f32
    %18 = vector.broadcast %cst_14 : f32 to vector<2x64xf32>
    %19 = arith.maximumf %17, %18 : vector<2x64xf32>
    %20 = arith.truncf %19 : vector<2x64xf32> to vector<2x64xbf16>
    %c1_15 = arith.constant 1 : index
    %c0_16 = arith.constant 0 : index
    %c0_17 = arith.constant 0 : index
    %21 = vector.load %arg4[%c1_15, %c0_16, %c0_17] : memref<4x64x128xbf16, #tpu.memory_space<vmem>>, vector<1x64x128xbf16>
    %22 = vector.shape_cast %21 : vector<1x64x128xbf16> to vector<64x128xbf16>
    %cst_18 = arith.constant dense<0.000000e+00> : vector<2x128xf32>
    %23 = tpu.matmul %20, %22, %cst_18 {dimension_numbers = #tpu.dot_dimension_numbers<[1], [0], [0], [1], [0, 0, 1, 1], [], []>} : vector<2x64xbf16>, vector<64x128xbf16>, vector<2x128xf32> -> vector<2x128xf32>
    %24 = arith.addf %12, %23 : vector<2x128xf32>
    %c2 = arith.constant 2 : index
    %c0_19 = arith.constant 0 : index
    %c0_20 = arith.constant 0 : index
    %25 = vector.load %arg1[%c2, %c0_19, %c0_20] : memref<4x2x1024xbf16, #tpu.memory_space<vmem>>, vector<1x2x1024xbf16>
    %26 = vector.shape_cast %25 : vector<1x2x1024xbf16> to vector<2x1024xbf16>
    %cst_21 = arith.constant dense<0.000000e+00> : vector<2x64xf32>
    %27 = tpu.matmul %26, %0, %cst_21 {dimension_numbers = #tpu.dot_dimension_numbers<[1], [0], [0], [1], [0, 0, 1, 1], [], []>} : vector<2x1024xbf16>, vector<1024x64xbf16>, vector<2x64xf32> -> vector<2x64xf32>
    %28 = vector.broadcast %1 : vector<1x64xf32> to vector<2x64xf32>
    %29 = arith.addf %27, %28 : vector<2x64xf32>
    %cst_22 = arith.constant 0.000000e+00 : f32
    %30 = vector.broadcast %cst_22 : f32 to vector<2x64xf32>
    %31 = arith.maximumf %29, %30 : vector<2x64xf32>
    %32 = arith.truncf %31 : vector<2x64xf32> to vector<2x64xbf16>
    %c2_23 = arith.constant 2 : index
    %c0_24 = arith.constant 0 : index
    %c0_25 = arith.constant 0 : index
    %33 = vector.load %arg4[%c2_23, %c0_24, %c0_25] : memref<4x64x128xbf16, #tpu.memory_space<vmem>>, vector<1x64x128xbf16>
    %34 = vector.shape_cast %33 : vector<1x64x128xbf16> to vector<64x128xbf16>
    %cst_26 = arith.constant dense<0.000000e+00> : vector<2x128xf32>
    %35 = tpu.matmul %32, %34, %cst_26 {dimension_numbers = #tpu.dot_dimension_numbers<[1], [0], [0], [1], [0, 0, 1, 1], [], []>} : vector<2x64xbf16>, vector<64x128xbf16>, vector<2x128xf32> -> vector<2x128xf32>
    %36 = arith.addf %24, %35 : vector<2x128xf32>
    %c3 = arith.constant 3 : index
    %c0_27 = arith.constant 0 : index
    %c0_28 = arith.constant 0 : index
    %37 = vector.load %arg1[%c3, %c0_27, %c0_28] : memref<4x2x1024xbf16, #tpu.memory_space<vmem>>, vector<1x2x1024xbf16>
    %38 = vector.shape_cast %37 : vector<1x2x1024xbf16> to vector<2x1024xbf16>
    %cst_29 = arith.constant dense<0.000000e+00> : vector<2x64xf32>
    %39 = tpu.matmul %38, %0, %cst_29 {dimension_numbers = #tpu.dot_dimension_numbers<[1], [0], [0], [1], [0, 0, 1, 1], [], []>} : vector<2x1024xbf16>, vector<1024x64xbf16>, vector<2x64xf32> -> vector<2x64xf32>
    %40 = vector.broadcast %1 : vector<1x64xf32> to vector<2x64xf32>
    %41 = arith.addf %39, %40 : vector<2x64xf32>
    %cst_30 = arith.constant 0.000000e+00 : f32
    %42 = vector.broadcast %cst_30 : f32 to vector<2x64xf32>
    %43 = arith.maximumf %41, %42 : vector<2x64xf32>
    %44 = arith.truncf %43 : vector<2x64xf32> to vector<2x64xbf16>
    %c3_31 = arith.constant 3 : index
    %c0_32 = arith.constant 0 : index
    %c0_33 = arith.constant 0 : index
    %45 = vector.load %arg4[%c3_31, %c0_32, %c0_33] : memref<4x64x128xbf16, #tpu.memory_space<vmem>>, vector<1x64x128xbf16>
    %46 = vector.shape_cast %45 : vector<1x64x128xbf16> to vector<64x128xbf16>
    %cst_34 = arith.constant dense<0.000000e+00> : vector<2x128xf32>
    %47 = tpu.matmul %44, %46, %cst_34 {dimension_numbers = #tpu.dot_dimension_numbers<[1], [0], [0], [1], [0, 0, 1, 1], [], []>} : vector<2x64xbf16>, vector<64x128xbf16>, vector<2x128xf32> -> vector<2x128xf32>
    %48 = arith.addf %36, %47 : vector<2x128xf32>
    %c0_35 = arith.constant 0 : index
    %c0_36 = arith.constant 0 : index
    %49 = vector.load %arg5[%c0_35, %c0_36] : memref<1x128xf32, #tpu.memory_space<vmem>>, vector<1x128xf32>
    %50 = vector.broadcast %49 : vector<1x128xf32> to vector<2x128xf32>
    %51 = arith.addf %48, %50 : vector<2x128xf32>
    %cst_37 = arith.constant 0.000000e+00 : f32
    %52 = vector.broadcast %cst_37 : f32 to vector<2x128xf32>
    %53 = arith.maximumf %51, %52 : vector<2x128xf32>
    %54 = arith.truncf %53 : vector<2x128xf32> to vector<2x128xbf16>
    %c0_38 = arith.constant 0 : index
    %c0_39 = arith.constant 0 : index
    %55 = vector.load %arg6[%c0_38, %c0_39] : memref<128x5xbf16, #tpu.memory_space<vmem>>, vector<128x5xbf16>
    %cst_40 = arith.constant dense<0.000000e+00> : vector<2x5xf32>
    %56 = tpu.matmul %54, %55, %cst_40 {dimension_numbers = #tpu.dot_dimension_numbers<[1], [0], [0], [1], [0, 0, 1, 1], [], []>} : vector<2x128xbf16>, vector<128x5xbf16>, vector<2x5xf32> -> vector<2x5xf32>
    %c0_41 = arith.constant 0 : index
    %c0_42 = arith.constant 0 : index
    %57 = vector.load %arg7[%c0_41, %c0_42] : memref<1x5xf32, #tpu.memory_space<vmem>>, vector<1x5xf32>
    %58 = vector.broadcast %57 : vector<1x5xf32> to vector<2x5xf32>
    %59 = arith.addf %56, %58 : vector<2x5xf32>
    %60 = tpu.iota {dimensions = array<i32: 1>} : vector<2x5xi32>
    %c2_i32 = arith.constant 2 : i32
    %61 = vector.broadcast %c2_i32 : i32 to vector<2x5xi32>
    %62 = arith.cmpi sge, %60, %61 : vector<2x5xi32>
    %63 = arith.negf %59 : vector<2x5xf32>
    %64 = math.exp %63 : vector<2x5xf32>
    %cst_43 = arith.constant 1.000000e+00 : f32
    %65 = vector.broadcast %cst_43 : f32 to vector<2x5xf32>
    %66 = arith.addf %65, %64 : vector<2x5xf32>
    %67 = arith.divf %65, %66 : vector<2x5xf32>
    %68 = arith.select %62, %67, %59 : vector<2x5xi1>, vector<2x5xf32>
    %c0_44 = arith.constant 0 : index
    %c0_45 = arith.constant 0 : index
    %69 = vector.load %arg8[%c0_44, %c0_45] : memref<2x5xf32, #tpu.memory_space<vmem>>, vector<2x5xf32>
    tpu.vector_store %arg8[%c0_44, %c0_45], %68 {strides = array<i32>} : memref<2x5xf32, #tpu.memory_space<vmem>>, vector<2x5xf32>,
    return
  }
  func.func @transform_0(%arg0: i32) -> (i32, i32, i32) {
    %c0_i32 = arith.constant 0 : i32
    %c0_i32_0 = arith.constant 0 : i32
    %c0_i32_1 = arith.constant 0 : i32
    return %c0_i32, %arg0, %c0_i32_0 : i32, i32, i32
  }
  func.func @transform_1(%arg0: i32) -> (i32, i32) {
    %c0_i32 = arith.constant 0 : i32
    %c0_i32_0 = arith.constant 0 : i32
    %c0_i32_1 = arith.constant 0 : i32
    return %c0_i32, %c0_i32_0 : i32, i32
  }
  func.func @transform_2(%arg0: i32) -> (i32, i32) {
    %c0_i32 = arith.constant 0 : i32
    %c0_i32_0 = arith.constant 0 : i32
    %c0_i32_1 = arith.constant 0 : i32
    return %c0_i32, %c0_i32_0 : i32, i32
  }
  func.func @transform_3(%arg0: i32) -> (i32, i32, i32) {
    %c0_i32 = arith.constant 0 : i32
    %c0_i32_0 = arith.constant 0 : i32
    %c0_i32_1 = arith.constant 0 : i32
    %c0_i32_2 = arith.constant 0 : i32
    return %c0_i32, %c0_i32_0, %c0_i32_1 : i32, i32, i32
  }
  func.func @transform_4(%arg0: i32) -> (i32, i32) {
    %c0_i32 = arith.constant 0 : i32
    %c0_i32_0 = arith.constant 0 : i32
    %c0_i32_1 = arith.constant 0 : i32
    return %c0_i32, %c0_i32_0 : i32, i32
  }
  func.func @transform_5(%arg0: i32) -> (i32, i32) {
    %c0_i32 = arith.constant 0 : i32
    %c0_i32_0 = arith.constant 0 : i32
    %c0_i32_1 = arith.constant 0 : i32
    return %c0_i32, %c0_i32_0 : i32, i32
  }
  func.func @transform_6(%arg0: i32) -> (i32, i32) {
    %c0_i32 = arith.constant 0 : i32
    %c0_i32_0 = arith.constant 0 : i32
    %c0_i32_1 = arith.constant 0 : i32
    return %c0_i32, %c0_i32_0 : i32, i32
  }
  func.func @transform_7(%arg0: i32) -> (i32, i32) {
    %c0_i32 = arith.constant 0 : i32
    %c0_i32_0 = arith.constant 0 : i32
    return %arg0, %c0_i32 : i32, i32
  }
}

</mosaic_0001>

<llo_original>
// kernel: convnet_rgb_forward.3
$region0: #{convnet_rgb_forward.3}
  #allocation0 [shape = 'u32[]', space=smem, size = 0x4, offset = 0x4, fixed_abs, tag = 'smem constant byte address 0x4 - core index']
  #allocation1 [shape = 'u32[144,128]{1,0:T(1,128)}', space=vmem, size = 0x12000, scoped, tag = 'internal scratch']
  %s0 = inlined_call_operand.vmem [shape: bf16[456,192], index: 0, kind: input, shape index: {}]
  %s1 = inlined_call_operand.vmem [shape: bf16[192,32], index: 1, kind: input, shape index: {}]
  %s2 = inlined_call_operand.vmem [shape: f32[1,32], index: 2, kind: input, shape index: {}]
  %s3 = inlined_call_operand.vmem [shape: bf16[456,32], index: 3, kind: output, shape index: {}]
  %s4 = sld [smem:[#allocation0]]
  $region22: #{convnet_rgb_forward.3} parent=0
    _
  %s6 = ssub.s32 1, %s4
  %s7 = scalar_select 0, %s6, %s4
  // Predicated region
  $region2: #{convnet_rgb_forward.3} parent=0 // pred_check
    _
  $region3: #{convnet_rgb_forward.3} parent=0 // pred_check_branch
    %9 = sbr.rel (0) target = $region5
  $region4: #{convnet_rgb_forward.3} parent=0 // pred_region
    _
  $region5: #{convnet_rgb_forward.3} parent=0 // pred_fallthru
    _
  // Predicated region
  $region6: #{convnet_rgb_forward.3} parent=0 // pred_check
    _
  $region7: #{convnet_rgb_forward.3} parent=0 // pred_check_branch
    %11 = sbr.rel (0) target = $region9
  $region8: #{convnet_rgb_forward.3} parent=0 // pred_region
    _
  $region9: #{convnet_rgb_forward.3} parent=0 // pred_fallthru
    _
  // Predicated region
  $region10: #{convnet_rgb_forward.3} parent=0 // pred_check
    _
  $region11: #{convnet_rgb_forward.3} parent=0 // pred_check_branch
    %13 = sbr.rel (0) target = $region13
  $region12: #{convnet_rgb_forward.3} parent=0 // pred_region
    _
  $region13: #{convnet_rgb_forward.3} parent=0 // pred_fallthru
    _
  %v15 = vld [vmem:[%s0] sm:$0xff]
  %v16 = vld [vmem:[%s0 + $0x8] sm:$0xff]
  %v17 = vld [vmem:[%s0 + $0x10] sm:$0xff]
  %v18 = vld [vmem:[%s0 + $0x18] sm:$0xff]
  %v19 = vld [vmem:[%s0 + $0x20] sm:$0xff]
  %v20 = vld [vmem:[%s0 + $0x28] sm:$0xff]
  %v21 = vld [vmem:[%s0 + $0x30] sm:$0xff]
  %v22 = vld [vmem:[%s0 + $0x38] sm:$0xff]
  %v23 = vld [vmem:[%s0 + $0x40] sm:$0xff]
  %v24 = vld [vmem:[%s0 + $0x48] sm:$0xff]
  %v25 = vld [vmem:[%s0 + $0x50] sm:$0xff]
  %v26 = vld [vmem:[%s0 + $0x58] sm:$0xff]
  %v27 = vld [vmem:[%s0 + $0x60] sm:$0xff]
  %v28 = vld [vmem:[%s0 + $0x68] sm:$0xff]
  %v29 = vld [vmem:[%s0 + $0x70] sm:$0xff]
  %v30 = vld [vmem:[%s0 + $0x78] sm:$0xff]
  %v31 = vld [vmem:[%s0 + $0x80] sm:$0xff]
  %v32 = vld [vmem:[%s0 + $0x88] sm:$0xff]
  %v33 = vld [vmem:[%s0 + $0x90] sm:$0xff]
  %v34 = vld [vmem:[%s0 + $0x98] sm:$0xff]
  %v35 = vld [vmem:[%s0 + $0xa0] sm:$0xff]
  %v36 = vld [vmem:[%s0 + $0xa8] sm:$0xff]
  %v37 = vld [vmem:[%s0 + $0xb0] sm:$0xff]
  %v38 = vld [vmem:[%s0 + $0xb8] sm:$0xff]
  %v39 = vld [vmem:[%s0 + $0xc0] sm:$0xff]
  %v40 = vld [vmem:[%s0 + $0xc8] sm:$0xff]
  %v41 = vld [vmem:[%s0 + $0xd0] sm:$0xff]
  %v42 = vld [vmem:[%s0 + $0xd8] sm:$0xff]
  %v43 = vld [vmem:[%s0 + $0xe0] sm:$0xff]
  %v44 = vld [vmem:[%s0 + $0xe8] sm:$0xff]
  %v45 = vld [vmem:[%s0 + $0xf0] sm:$0xff]
  %v46 = vld [vmem:[%s0 + $0xf8] sm:$0xff]
  %v47 = vld [vmem:[%s0 + $0x100] sm:$0xff]
  %v48 = vld [vmem:[%s0 + $0x108] sm:$0xff]
  %v49 = vld [vmem:[%s0 + $0x110] sm:$0xff]
  %v50 = vld [vmem:[%s0 + $0x118] sm:$0xff]
  %v51 = vld [vmem:[%s0 + $0x120] sm:$0xff]
  %v52 = vld [vmem:[%s0 + $0x128] sm:$0xff]
  %v53 = vld [vmem:[%s0 + $0x130] sm:$0xff]
  %v54 = vld [vmem:[%s0 + $0x138] sm:$0xff]
  %v55 = vld [vmem:[%s0 + $0x140] sm:$0xff]
  %v56 = vld [vmem:[%s0 + $0x148] sm:$0xff]
  %v57 = vld [vmem:[%s0 + $0x150] sm:$0xff]
  %v58 = vld [vmem:[%s0 + $0x158] sm:$0xff]
  %v59 = vld [vmem:[%s0 + $0x160] sm:$0xff]
  %v60 = vld [vmem:[%s0 + $0x168] sm:$0xff]
  %v61 = vld [vmem:[%s0 + $0x170] sm:$0xff]
  %v62 = vld [vmem:[%s0 + $0x178] sm:$0xff]
  %v63 = vld [vmem:[%s0 + $0x180] sm:$0xff]
  %v64 = vld [vmem:[%s0 + $0x188] sm:$0xff]
  %v65 = vld [vmem:[%s0 + $0x190] sm:$0xff]
  %v66 = vld [vmem:[%s0 + $0x198] sm:$0xff]
  %v67 = vld [vmem:[%s0 + $0x1a0] sm:$0xff]
  %v68 = vld [vmem:[%s0 + $0x1a8] sm:$0xff]
  %v69 = vld [vmem:[%s0 + $0x1b0] sm:$0xff]
  %v70 = vld [vmem:[%s0 + $0x1b8] sm:$0xff]
  %v71 = vld [vmem:[%s0 + $0x1c0] sm:$0xff]
  %v72 = vld [vmem:[%s1] sm:$0xf]
  %v73 = vld [vmem:[%s1 + $0x4] sm:$0xf]
  %v74 = vld [vmem:[%s1 + $0x8] sm:$0xf]
  %v75 = vld [vmem:[%s1 + $0xc] sm:$0xf]
  %v76 = vld [vmem:[%s1 + $0x10] sm:$0xf]
  %v77 = vld [vmem:[%s1 + $0x14] sm:$0xf]
  %v78 = vld [vmem:[%s1 + $0x18] sm:$0xf]
  %v79 = vld [vmem:[%s1 + $0x1c] sm:$0xf]
  %v80 = vld [vmem:[%s1 + $0x20] sm:$0xf]
  %v81 = vld [vmem:[%s1 + $0x24] sm:$0xf]
  %v82 = vld [vmem:[%s1 + $0x28] sm:$0xf]
  %v83 = vld [vmem:[%s1 + $0x2c] sm:$0xf]
  %v84 = vld [vmem:[%s1 + $0x30] sm:$0xf]
  %v85 = vld [vmem:[%s1 + $0x34] sm:$0xf]
  %v86 = vld [vmem:[%s1 + $0x38] sm:$0xf]
  %v87 = vld [vmem:[%s1 + $0x3c] sm:$0xf]
  %v88 = vld [vmem:[%s1 + $0x40] sm:$0xf]
  %v89 = vld [vmem:[%s1 + $0x44] sm:$0xf]
  %v90 = vld [vmem:[%s1 + $0x48] sm:$0xf]
  %v91 = vld [vmem:[%s1 + $0x4c] sm:$0xf]
  %v92 = vld [vmem:[%s1 + $0x50] sm:$0xf]
  %v93 = vld [vmem:[%s1 + $0x54] sm:$0xf]
  %v94 = vld [vmem:[%s1 + $0x58] sm:$0xf]
  %v95 = vld [vmem:[%s1 + $0x5c] sm:$0xf]
  %v96 = vld [vmem:[%s2] sm:$0x1]
  %v98 = vlaneseq
  %v99 = vshrl.u32 %v98, 7
  %v100 = vsub.s32 0, %v99
  %v101 = vrot.slane %v96, %v100
  %v160 = vunpack.c.l.b16 %v15
  %v161 = vunpack.c.h.b16 %v15
  %v162 = vunpack.c.l.b16 %v16
  %v163 = vunpack.c.h.b16 %v16
  %v164 = vunpack.c.l.b16 %v17
  %v165 = vunpack.c.h.b16 %v17
  %v166 = vunpack.c.l.b16 %v18
  %v167 = vunpack.c.h.b16 %v18
  %v168 = vunpack.c.l.b16 %v19
  %v169 = vunpack.c.h.b16 %v19
  %v170 = vunpack.c.l.b16 %v20
  %v171 = vunpack.c.h.b16 %v20
  %v172 = vunpack.c.l.b16 %v21
  %v173 = vunpack.c.h.b16 %v21
  %v174 = vunpack.c.l.b16 %v22
  %v175 = vunpack.c.h.b16 %v22
  %v176 = vunpack.c.l.b16 %v23
  %v177 = vunpack.c.h.b16 %v23
  %v178 = vunpack.c.l.b16 %v24
  %v179 = vunpack.c.h.b16 %v24
  %v180 = vunpack.c.l.b16 %v25
  %v181 = vunpack.c.h.b16 %v25
  %v182 = vunpack.c.l.b16 %v26
  %v183 = vunpack.c.h.b16 %v26
  %v184 = vunpack.c.l.b16 %v27
  %v185 = vunpack.c.h.b16 %v27
  %v186 = vunpack.c.l.b16 %v28
  %v187 = vunpack.c.h.b16 %v28
  %v188 = vunpack.c.l.b16 %v29
  %v189 = vunpack.c.h.b16 %v29
  %v190 = vunpack.c.l.b16 %v30
  %v191 = vunpack.c.h.b16 %v30
  %v192 = vunpack.c.l.b16 %v31
  %v193 = vunpack.c.h.b16 %v31
  %v194 = vunpack.c.l.b16 %v32
  %v195 = vunpack.c.h.b16 %v32
  %v196 = vunpack.c.l.b16 %v33
  %v197 = vunpack.c.h.b16 %v33
  %v198 = vunpack.c.l.b16 %v34
  %v199 = vunpack.c.h.b16 %v34
  %v200 = vunpack.c.l.b16 %v35
  %v201 = vunpack.c.h.b16 %v35
  %v202 = vunpack.c.l.b16 %v36
  %v203 = vunpack.c.h.b16 %v36
  %v204 = vunpack.c.l.b16 %v37
  %v205 = vunpack.c.h.b16 %v37
  %v206 = vunpack.c.l.b16 %v38
  %v207 = vunpack.c.h.b16 %v38
  %v208 = vunpack.c.l.b16 %v39
  %v209 = vunpack.c.h.b16 %v39
  %v210 = vunpack.c.l.b16 %v40
  %v211 = vunpack.c.h.b16 %v40
  %v212 = vunpack.c.l.b16 %v41
  %v213 = vunpack.c.h.b16 %v41
  %v214 = vunpack.c.l.b16 %v42
  %v215 = vunpack.c.h.b16 %v42
  %v216 = vunpack.c.l.b16 %v43
  %v217 = vunpack.c.h.b16 %v43
  %v218 = vunpack.c.l.b16 %v44
  %v219 = vunpack.c.h.b16 %v44
  %v220 = vunpack.c.l.b16 %v45
  %v221 = vunpack.c.h.b16 %v45
  %v222 = vunpack.c.l.b16 %v46
  %v223 = vunpack.c.h.b16 %v46
  %v224 = vunpack.c.l.b16 %v47
  %v225 = vunpack.c.h.b16 %v47
  %v226 = vunpack.c.l.b16 %v48
  %v227 = vunpack.c.h.b16 %v48
  %v228 = vunpack.c.l.b16 %v49
  %v229 = vunpack.c.h.b16 %v49
  %v230 = vunpack.c.l.b16 %v50
  %v231 = vunpack.c.h.b16 %v50
  %v232 = vunpack.c.l.b16 %v51
  %v233 = vunpack.c.h.b16 %v51
  %v234 = vunpack.c.l.b16 %v52
  %v235 = vunpack.c.h.b16 %v52
  %v236 = vunpack.c.l.b16 %v53
  %v237 = vunpack.c.h.b16 %v53
  %v238 = vunpack.c.l.b16 %v54
  %v239 = vunpack.c.h.b16 %v54
  %v240 = vunpack.c.l.b16 %v55
  %v241 = vunpack.c.h.b16 %v55
  %v242 = vunpack.c.l.b16 %v56
  %v243 = vunpack.c.h.b16 %v56
  %v244 = vunpack.c.l.b16 %v57
  %v245 = vunpack.c.h.b16 %v57
  %v246 = vunpack.c.l.b16 %v58
  %v247 = vunpack.c.h.b16 %v58
  %v248 = vunpack.c.l.b16 %v59
  %v249 = vunpack.c.h.b16 %v59
  %v250 = vunpack.c.l.b16 %v60
  %v251 = vunpack.c.h.b16 %v60
  %v252 = vunpack.c.l.b16 %v61
  %v253 = vunpack.c.h.b16 %v61
  %v254 = vunpack.c.l.b16 %v62
  %v255 = vunpack.c.h.b16 %v62
  %v256 = vunpack.c.l.b16 %v63
  %v257 = vunpack.c.h.b16 %v63
  %v258 = vunpack.c.l.b16 %v64
  %v259 = vunpack.c.h.b16 %v64
  %v260 = vunpack.c.l.b16 %v65
  %v261 = vunpack.c.h.b16 %v65
  %v262 = vunpack.c.l.b16 %v66
  %v263 = vunpack.c.h.b16 %v66
  %v264 = vunpack.c.l.b16 %v67
  %v265 = vunpack.c.h.b16 %v67
  %v266 = vunpack.c.l.b16 %v68
  %v267 = vunpack.c.h.b16 %v68
  %v268 = vunpack.c.l.b16 %v69
  %v269 = vunpack.c.h.b16 %v69
  %v270 = vunpack.c.l.b16 %v70
  %v271 = vunpack.c.h.b16 %v70
  %v272 = vunpack.c.l.b16 %v71
  %v273 = vunpack.c.h.b16 %v71
  %v274 = vpack.c.b16 %v162, %v160
  %v275 = vpack.c.b16 %v163, %v161
  %v276 = vpack.c.b16 %v166, %v164
  %v277 = vpack.c.b16 %v167, %v165
  %v278 = vpack.c.b16 %v170, %v168
  %v279 = vpack.c.b16 %v171, %v169
  %v280 = vpack.c.b16 %v174, %v172
  %v281 = vpack.c.b16 %v175, %v173
  %v282 = vpack.c.b16 %v178, %v176
  %v283 = vpack.c.b16 %v179, %v177
  %v284 = vpack.c.b16 %v182, %v180
  %v285 = vpack.c.b16 %v183, %v181
  %v286 = vpack.c.b16 %v186, %v184
  %v287 = vpack.c.b16 %v187, %v185
  %v288 = vpack.c.b16 %v190, %v188
  %v289 = vpack.c.b16 %v191, %v189
  %v290 = vpack.c.b16 %v194, %v192
  %v291 = vpack.c.b16 %v195, %v193
  %v292 = vpack.c.b16 %v198, %v196
  %v293 = vpack.c.b16 %v199, %v197
  %v294 = vpack.c.b16 %v202, %v200
  %v295 = vpack.c.b16 %v203, %v201
  %v296 = vpack.c.b16 %v206, %v204
  %v297 = vpack.c.b16 %v207, %v205
  %v298 = vpack.c.b16 %v210, %v208
  %v299 = vpack.c.b16 %v211, %v209
  %v300 = vpack.c.b16 %v214, %v212
  %v301 = vpack.c.b16 %v215, %v213
  %v302 = vpack.c.b16 %v218, %v216
  %v303 = vpack.c.b16 %v219, %v217
  %v304 = vpack.c.b16 %v222, %v220
  %v305 = vpack.c.b16 %v223, %v221
  %v306 = vpack.c.b16 %v226, %v224
  %v307 = vpack.c.b16 %v227, %v225
  %v308 = vpack.c.b16 %v230, %v228
  %v309 = vpack.c.b16 %v231, %v229
  %v310 = vpack.c.b16 %v234, %v232
  %v311 = vpack.c.b16 %v235, %v233
  %v312 = vpack.c.b16 %v238, %v236
  %v313 = vpack.c.b16 %v239, %v237
  %v314 = vpack.c.b16 %v242, %v240
  %v315 = vpack.c.b16 %v243, %v241
  %v316 = vpack.c.b16 %v246, %v244
  %v317 = vpack.c.b16 %v247, %v245
  %v318 = vpack.c.b16 %v250, %v248
  %v319 = vpack.c.b16 %v251, %v249
  %v320 = vpack.c.b16 %v254, %v252
  %v321 = vpack.c.b16 %v255, %v253
  %v322 = vpack.c.b16 %v258, %v256
  %v323 = vpack.c.b16 %v259, %v257
  %v324 = vpack.c.b16 %v262, %v260
  %v325 = vpack.c.b16 %v263, %v261
  %v326 = vpack.c.b16 %v266, %v264
  %v327 = vpack.c.b16 %v267, %v265
  %v328 = vpack.c.b16 %v270, %v268
  %v329 = vpack.c.b16 %v271, %v269
  %v330 = vpack.c.b16 %v272, %v272
  %v331 = vpack.c.b16 %v273, %v273
  %v385 = vunpack.c.l.b16 %v72
  %v386 = vunpack.c.l.b16 %v73
  %v387 = vunpack.c.l.b16 %v74
  %v388 = vunpack.c.l.b16 %v75
  %v389 = vunpack.c.l.b16 %v76
  %v390 = vunpack.c.l.b16 %v77
  %v391 = vunpack.c.l.b16 %v78
  %v392 = vunpack.c.l.b16 %v79
  %v393 = vunpack.c.l.b16 %v80
  %v394 = vunpack.c.l.b16 %v81
  %v395 = vunpack.c.l.b16 %v82
  %v396 = vunpack.c.l.b16 %v83
  %v397 = vunpack.c.l.b16 %v84
  %v398 = vunpack.c.l.b16 %v85
  %v399 = vunpack.c.l.b16 %v86
  %v400 = vunpack.c.l.b16 %v87
  %v401 = vunpack.c.l.b16 %v88
  %v402 = vunpack.c.l.b16 %v89
  %v403 = vunpack.c.l.b16 %v90
  %v404 = vunpack.c.l.b16 %v91
  %v405 = vunpack.c.l.b16 %v92
  %v406 = vunpack.c.l.b16 %v93
  %v407 = vunpack.c.l.b16 %v94
  %v408 = vunpack.c.l.b16 %v95
  %v409 = vpack.c.b16 %v386, %v385
  %v410 = vpack.c.b16 %v388, %v387
  %v411 = vpack.c.b16 %v390, %v389
  %v412 = vpack.c.b16 %v392, %v391
  %v413 = vpack.c.b16 %v394, %v393
  %v414 = vpack.c.b16 %v396, %v395
  %v415 = vpack.c.b16 %v398, %v397
  %v416 = vpack.c.b16 %v400, %v399
  %v417 = vpack.c.b16 %v402, %v401
  %v418 = vpack.c.b16 %v404, %v403
  %v419 = vpack.c.b16 %v406, %v405
  %v420 = vpack.c.b16 %v408, %v407
  %vm433 = vcmask 523264
  %v435 = vsel %vm433, %v275, 0
  %v438 = vsel %vm433, %v277, 0
  %v441 = vsel %vm433, %v279, 0
  %v444 = vsel %vm433, %v281, 0
  %v447 = vsel %vm433, %v283, 0
  %v450 = vsel %vm433, %v285, 0
  %v453 = vsel %vm433, %v287, 0
  %v456 = vsel %vm433, %v289, 0
  %v459 = vsel %vm433, %v291, 0
  %v462 = vsel %vm433, %v293, 0
  %v465 = vsel %vm433, %v295, 0
  %v468 = vsel %vm433, %v297, 0
  %v471 = vsel %vm433, %v299, 0
  %v474 = vsel %vm433, %v301, 0
  %v477 = vsel %vm433, %v303, 0
  %v480 = vsel %vm433, %v305, 0
  %v483 = vsel %vm433, %v307, 0
  %v486 = vsel %vm433, %v309, 0
  %v489 = vsel %vm433, %v311, 0
  %v492 = vsel %vm433, %v313, 0
  %v495 = vsel %vm433, %v315, 0
  %v498 = vsel %vm433, %v317, 0
  %v501 = vsel %vm433, %v319, 0
  %v504 = vsel %vm433, %v321, 0
  %v507 = vsel %vm433, %v323, 0
  %v510 = vsel %vm433, %v325, 0
  %v513 = vsel %vm433, %v327, 0
  %v516 = vsel %vm433, %v329, 0
  %v519 = vsel %vm433, %v331, 0
  %521 = vmatprep.subr.bf16.mxu0 0
  %522 = vmatpush1.bf16.msra.mxu0 %v416
  %523 = vmatprep.subr.bf16.mxu0 0
  %524 = vmatpush1.bf16.msra.mxu0 %v415
  %525 = vmatprep.subr.bf16.mxu0 0
  %526 = vmatpush1.bf16.msra.mxu0 %v414
  %527 = vmatprep.subr.bf16.mxu0 0
  %528 = vmatpush1.bf16.msra.mxu0 %v413
  %529 = vmatprep.subr.bf16.mxu0 0
  %530 = vmatpush1.bf16.msra.mxu0 %v412
  %531 = vmatprep.subr.bf16.mxu0 0
  %532 = vmatpush1.bf16.msra.mxu0 %v411
  %533 = vmatprep.subr.bf16.mxu0 0
  %534 = vmatpush1.bf16.msra.mxu0 %v410
  %535 = vmatprep.subr.bf16.mxu0 0
  %536 = vmatpush1.bf16.msra.mxu0 %v409
  %537 = vmatprep.subr.bf16.mxu0 0
  %538 = vmatpush2.bf16.msra.mxu0 0
  %539 = vmatprep.subr.bf16.mxu0 0
  %540 = vmatpush2.bf16.msra.mxu0 0
  %541 = vmatprep.subr.bf16.mxu0 0
  %542 = vmatpush2.bf16.msra.mxu0 0
  %543 = vmatprep.subr.bf16.mxu0 0
  %544 = vmatpush2.bf16.msra.mxu0 0
  %545 = vmatprep.subr.bf16.mxu0 0
  %546 = vmatpush2.bf16.msra.mxu0 %v420
  %547 = vmatprep.subr.bf16.mxu0 0
  %548 = vmatpush2.bf16.msra.mxu0 %v419
  %549 = vmatprep.subr.bf16.mxu0 0
  %550 = vmatpush2.bf16.msra.mxu0 %v418
  %551 = vmatprep.subr.bf16.mxu0 0
  %552 = vmatpush2.bf16.msra.mxu0 %v417
  %553 = vmatprep.mubr.bf16.mxu0 %v435
  %554 = vmatmul.mubr.bf16.gmra.mxu0 %v274
  %v555 = vpop.f32.mrf.mxu0
  %v556 = vadd.f32 %v101, %v555
  %v557 = vpop.f32.mrf.mxu0
  %v558 = vpop.f32.mrf.mxu0
  %v559 = vadd.f32 %v101, %v558
  %v560 = vpop.f32.mrf.mxu0
  %561 = vmatprep.mubr.bf16.mxu0 %v438
  %562 = vmatmul.mubr.bf16.gmra.mxu0 %v276
  %v563 = vpop.f32.mrf.mxu0
  %v564 = vadd.f32 %v101, %v563
  %v565 = vpop.f32.mrf.mxu0
  %v566 = vpop.f32.mrf.mxu0
  %v567 = vadd.f32 %v101, %v566
  %v568 = vpop.f32.mrf.mxu0
  %569 = vmatprep.mubr.bf16.mxu0 %v441
  %570 = vmatmul.mubr.bf16.gmra.mxu0 %v278
  %v571 = vpop.f32.mrf.mxu0
  %v572 = vadd.f32 %v101, %v571
  %v573 = vpop.f32.mrf.mxu0
  %v574 = vpop.f32.mrf.mxu0
  %v575 = vadd.f32 %v101, %v574
  %v576 = vpop.f32.mrf.mxu0
  %577 = vmatprep.mubr.bf16.mxu0 %v444
  %578 = vmatmul.mubr.bf16.gmra.mxu0 %v280
  %v579 = vpop.f32.mrf.mxu0
  %v580 = vadd.f32 %v101, %v579
  %v581 = vpop.f32.mrf.mxu0
  %v582 = vpop.f32.mrf.mxu0
  %v583 = vadd.f32 %v101, %v582
  %v584 = vpop.f32.mrf.mxu0
  %585 = vmatprep.mubr.bf16.mxu0 %v447
  %586 = vmatmul.mubr.bf16.gmra.mxu0 %v282
  %v587 = vpop.f32.mrf.mxu0
  %v588 = vadd.f32 %v101, %v587
  %v589 = vpop.f32.mrf.mxu0
  %v590 = vpop.f32.mrf.mxu0
  %v591 = vadd.f32 %v101, %v590
  %v592 = vpop.f32.mrf.mxu0
  %593 = vmatprep.mubr.bf16.mxu0 %v450
  %594 = vmatmul.mubr.bf16.gmra.mxu0 %v284
  %v595 = vpop.f32.mrf.mxu0
  %v596 = vadd.f32 %v101, %v595
  %v597 = vpop.f32.mrf.mxu0
  %v598 = vpop.f32.mrf.mxu0
  %v599 = vadd.f32 %v101, %v598
  %v600 = vpop.f32.mrf.mxu0
  %601 = vmatprep.mubr.bf16.mxu0 %v453
  %602 = vmatmul.mubr.bf16.gmra.mxu0 %v286
  %v603 = vpop.f32.mrf.mxu0
  %v604 = vadd.f32 %v101, %v603
  %v605 = vpop.f32.mrf.mxu0
  %v606 = vpop.f32.mrf.mxu0
  %v607 = vadd.f32 %v101, %v606
  %v608 = vpop.f32.mrf.mxu0
  %609 = vmatprep.mubr.bf16.mxu0 %v456
  %610 = vmatmul.mubr.bf16.gmra.mxu0 %v288
  %v611 = vpop.f32.mrf.mxu0
  %v612 = vadd.f32 %v101, %v611
  %v613 = vpop.f32.mrf.mxu0
  %v614 = vpop.f32.mrf.mxu0
  %v615 = vadd.f32 %v101, %v614
  %v616 = vpop.f32.mrf.mxu0
  %617 = vmatprep.mubr.bf16.mxu0 %v459
  %618 = vmatmul.mubr.bf16.gmra.mxu0 %v290
  %v619 = vpop.f32.mrf.mxu0
  %v620 = vadd.f32 %v101, %v619
  %v621 = vpop.f32.mrf.mxu0
  %v622 = vpop.f32.mrf.mxu0
  %v623 = vadd.f32 %v101, %v622
  %v624 = vpop.f32.mrf.mxu0
  %625 = vmatprep.mubr.bf16.mxu0 %v462
  %626 = vmatmul.mubr.bf16.gmra.mxu0 %v292
  %v627 = vpop.f32.mrf.mxu0
  %v628 = vadd.f32 %v101, %v627
  %v629 = vpop.f32.mrf.mxu0
  %v630 = vpop.f32.mrf.mxu0
  %v631 = vadd.f32 %v101, %v630
  %v632 = vpop.f32.mrf.mxu0
  %633 = vmatprep.mubr.bf16.mxu0 %v465
  %634 = vmatmul.mubr.bf16.gmra.mxu0 %v294
  %v635 = vpop.f32.mrf.mxu0
  %v636 = vadd.f32 %v101, %v635
  %v637 = vpop.f32.mrf.mxu0
  %v638 = vpop.f32.mrf.mxu0
  %v639 = vadd.f32 %v101, %v638
  %v640 = vpop.f32.mrf.mxu0
  %641 = vmatprep.mubr.bf16.mxu0 %v468
  %642 = vmatmul.mubr.bf16.gmra.mxu0 %v296
  %v643 = vpop.f32.mrf.mxu0
  %v644 = vadd.f32 %v101, %v643
  %v645 = vpop.f32.mrf.mxu0
  %v646 = vpop.f32.mrf.mxu0
  %v647 = vadd.f32 %v101, %v646
  %v648 = vpop.f32.mrf.mxu0
  %649 = vmatprep.mubr.bf16.mxu0 %v471
  %650 = vmatmul.mubr.bf16.gmra.mxu0 %v298
  %v651 = vpop.f32.mrf.mxu0
  %v652 = vadd.f32 %v101, %v651
  %v653 = vpop.f32.mrf.mxu0
  %v654 = vpop.f32.mrf.mxu0
  %v655 = vadd.f32 %v101, %v654
  %v656 = vpop.f32.mrf.mxu0
  %657 = vmatprep.mubr.bf16.mxu0 %v474
  %658 = vmatmul.mubr.bf16.gmra.mxu0 %v300
  %v659 = vpop.f32.mrf.mxu0
  %v660 = vadd.f32 %v101, %v659
  %v661 = vpop.f32.mrf.mxu0
  %v662 = vpop.f32.mrf.mxu0
  %v663 = vadd.f32 %v101, %v662
  %v664 = vpop.f32.mrf.mxu0
  %665 = vmatprep.mubr.bf16.mxu0 %v477
  %666 = vmatmul.mubr.bf16.gmra.mxu0 %v302
  %v667 = vpop.f32.mrf.mxu0
  %v668 = vadd.f32 %v101, %v667
  %v669 = vpop.f32.mrf.mxu0
  %v670 = vpop.f32.mrf.mxu0
  %v671 = vadd.f32 %v101, %v670
  %v672 = vpop.f32.mrf.mxu0
  %673 = vmatprep.mubr.bf16.mxu0 %v480
  %674 = vmatmul.mubr.bf16.gmra.mxu0 %v304
  %v675 = vpop.f32.mrf.mxu0
  %v676 = vadd.f32 %v101, %v675
  %v677 = vpop.f32.mrf.mxu0
  %v678 = vpop.f32.mrf.mxu0
  %v679 = vadd.f32 %v101, %v678
  %v680 = vpop.f32.mrf.mxu0
  %681 = vmatprep.mubr.bf16.mxu0 %v483
  %682 = vmatmul.mubr.bf16.gmra.mxu0 %v306
  %v683 = vpop.f32.mrf.mxu0
  %v684 = vadd.f32 %v101, %v683
  %v685 = vpop.f32.mrf.mxu0
  %v686 = vpop.f32.mrf.mxu0
  %v687 = vadd.f32 %v101, %v686
  %v688 = vpop.f32.mrf.mxu0
  %689 = vmatprep.mubr.bf16.mxu0 %v486
  %690 = vmatmul.mubr.bf16.gmra.mxu0 %v308
  %v691 = vpop.f32.mrf.mxu0
  %v692 = vadd.f32 %v101, %v691
  %v693 = vpop.f32.mrf.mxu0
  %v694 = vpop.f32.mrf.mxu0
  %v695 = vadd.f32 %v101, %v694
  %v696 = vpop.f32.mrf.mxu0
  %697 = vmatprep.mubr.bf16.mxu0 %v489
  %698 = vmatmul.mubr.bf16.gmra.mxu0 %v310
  %v699 = vpop.f32.mrf.mxu0
  %v700 = vadd.f32 %v101, %v699
  %v701 = vpop.f32.mrf.mxu0
  %v702 = vpop.f32.mrf.mxu0
  %v703 = vadd.f32 %v101, %v702
  %v704 = vpop.f32.mrf.mxu0
  %705 = vmatprep.mubr.bf16.mxu0 %v492
  %706 = vmatmul.mubr.bf16.gmra.mxu0 %v312
  %v707 = vpop.f32.mrf.mxu0
  %v708 = vadd.f32 %v101, %v707
  %v709 = vpop.f32.mrf.mxu0
  %v710 = vpop.f32.mrf.mxu0
  %v711 = vadd.f32 %v101, %v710
  %v712 = vpop.f32.mrf.mxu0
  %713 = vmatprep.mubr.bf16.mxu0 %v495
  %714 = vmatmul.mubr.bf16.gmra.mxu0 %v314
  %v715 = vpop.f32.mrf.mxu0
  %v716 = vadd.f32 %v101, %v715
  %v717 = vpop.f32.mrf.mxu0
  %v718 = vpop.f32.mrf.mxu0
  %v719 = vadd.f32 %v101, %v718
  %v720 = vpop.f32.mrf.mxu0
  %721 = vmatprep.mubr.bf16.mxu0 %v498
  %722 = vmatmul.mubr.bf16.gmra.mxu0 %v316
  %v723 = vpop.f32.mrf.mxu0
  %v724 = vadd.f32 %v101, %v723
  %v725 = vpop.f32.mrf.mxu0
  %v726 = vpop.f32.mrf.mxu0
  %v727 = vadd.f32 %v101, %v726
  %v728 = vpop.f32.mrf.mxu0
  %729 = vmatprep.mubr.bf16.mxu0 %v501
  %730 = vmatmul.mubr.bf16.gmra.mxu0 %v318
  %v731 = vpop.f32.mrf.mxu0
  %v732 = vadd.f32 %v101, %v731
  %v733 = vpop.f32.mrf.mxu0
  %v734 = vpop.f32.mrf.mxu0
  %v735 = vadd.f32 %v101, %v734
  %v736 = vpop.f32.mrf.mxu0
  %737 = vmatprep.mubr.bf16.mxu0 %v504
  %738 = vmatmul.mubr.bf16.gmra.mxu0 %v320
  %v739 = vpop.f32.mrf.mxu0
  %v740 = vadd.f32 %v101, %v739
  %v741 = vpop.f32.mrf.mxu0
  %v742 = vpop.f32.mrf.mxu0
  %v743 = vadd.f32 %v101, %v742
  %v744 = vpop.f32.mrf.mxu0
  %745 = vmatprep.mubr.bf16.mxu0 %v507
  %746 = vmatmul.mubr.bf16.gmra.mxu0 %v322
  %v747 = vpop.f32.mrf.mxu0
  %v748 = vadd.f32 %v101, %v747
  %v749 = vpop.f32.mrf.mxu0
  %v750 = vpop.f32.mrf.mxu0
  %v751 = vadd.f32 %v101, %v750
  %v752 = vpop.f32.mrf.mxu0
  %753 = vmatprep.mubr.bf16.mxu0 %v510
  %754 = vmatmul.mubr.bf16.gmra.mxu0 %v324
  %v755 = vpop.f32.mrf.mxu0
  %v756 = vadd.f32 %v101, %v755
  %v757 = vpop.f32.mrf.mxu0
  %v758 = vpop.f32.mrf.mxu0
  %v759 = vadd.f32 %v101, %v758
  %v760 = vpop.f32.mrf.mxu0
  %761 = vmatprep.mubr.bf16.mxu0 %v513
  %762 = vmatmul.mubr.bf16.gmra.mxu0 %v326
  %v763 = vpop.f32.mrf.mxu0
  %v764 = vadd.f32 %v101, %v763
  %v765 = vpop.f32.mrf.mxu0
  %v766 = vpop.f32.mrf.mxu0
  %v767 = vadd.f32 %v101, %v766
  %v768 = vpop.f32.mrf.mxu0
  %769 = vmatprep.mubr.bf16.mxu0 %v516
  %770 = vmatmul.mubr.bf16.gmra.mxu0 %v328
  %v771 = vpop.f32.mrf.mxu0
  %v772 = vadd.f32 %v101, %v771
  %v773 = vpop.f32.mrf.mxu0
  %v774 = vpop.f32.mrf.mxu0
  %v775 = vadd.f32 %v101, %v774
  %v776 = vpop.f32.mrf.mxu0
  %777 = vmatprep.mubr.bf16.mxu0 %v519
  %778 = vmatmul.mubr.bf16.gmra.mxu0 %v330
  %v779 = vpop.f32.mrf.mxu0
  %v780 = vadd.f32 %v101, %v779
  %v781 = vpop.f32.mrf.mxu0
  %v782 = vpop.f32.mrf.mxu0
  %v783 = vpop.f32.mrf.mxu0
  %784 = vdwg.mxu0
  %v785 = vmax.f32 %v556, 0.0
  %v786 = vmax.f32 %v559, 0.0
  %v787 = vmax.f32 %v564, 0.0
  %v788 = vmax.f32 %v567, 0.0
  %v789 = vmax.f32 %v572, 0.0
  %v790 = vmax.f32 %v575, 0.0
  %v791 = vmax.f32 %v580, 0.0
  %v792 = vmax.f32 %v583, 0.0
  %v793 = vmax.f32 %v588, 0.0
  %v794 = vmax.f32 %v591, 0.0
  %v795 = vmax.f32 %v596, 0.0
  %v796 = vmax.f32 %v599, 0.0
  %v797 = vmax.f32 %v604, 0.0
  %v798 = vmax.f32 %v607, 0.0
  %v799 = vmax.f32 %v612, 0.0
  %v800 = vmax.f32 %v615, 0.0
  %v801 = vmax.f32 %v620, 0.0
  %v802 = vmax.f32 %v623, 0.0
  %v803 = vmax.f32 %v628, 0.0
  %v804 = vmax.f32 %v631, 0.0
  %v805 = vmax.f32 %v636, 0.0
  %v806 = vmax.f32 %v639, 0.0
  %v807 = vmax.f32 %v644, 0.0
  %v808 = vmax.f32 %v647, 0.0
  %v809 = vmax.f32 %v652, 0.0
  %v810 = vmax.f32 %v655, 0.0
  %v811 = vmax.f32 %v660, 0.0
  %v812 = vmax.f32 %v663, 0.0
  %v813 = vmax.f32 %v668, 0.0
  %v814 = vmax.f32 %v671, 0.0
  %v815 = vmax.f32 %v676, 0.0
  %v816 = vmax.f32 %v679, 0.0
  %v817 = vmax.f32 %v684, 0.0
  %v818 = vmax.f32 %v687, 0.0
  %v819 = vmax.f32 %v692, 0.0
  %v820 = vmax.f32 %v695, 0.0
  %v821 = vmax.f32 %v700, 0.0
  %v822 = vmax.f32 %v703, 0.0
  %v823 = vmax.f32 %v708, 0.0
  %v824 = vmax.f32 %v711, 0.0
  %v825 = vmax.f32 %v716, 0.0
  %v826 = vmax.f32 %v719, 0.0
  %v827 = vmax.f32 %v724, 0.0
  %v828 = vmax.f32 %v727, 0.0
  %v829 = vmax.f32 %v732, 0.0
  %v830 = vmax.f32 %v735, 0.0
  %v831 = vmax.f32 %v740, 0.0
  %v832 = vmax.f32 %v743, 0.0
  %v833 = vmax.f32 %v748, 0.0
  %v834 = vmax.f32 %v751, 0.0
  %v835 = vmax.f32 %v756, 0.0
  %v836 = vmax.f32 %v759, 0.0
  %v837 = vmax.f32 %v764, 0.0
  %v838 = vmax.f32 %v767, 0.0
  %v839 = vmax.f32 %v772, 0.0
  %v840 = vmax.f32 %v775, 0.0
  %v841 = vmax.f32 %v780, 0.0
  %v842 = vpack.c.bf16 %v786, %v785
  %v843 = vpack.c.bf16 %v788, %v787
  %v844 = vpack.c.bf16 %v790, %v789
  %v845 = vpack.c.bf16 %v792, %v791
  %v846 = vpack.c.bf16 %v794, %v793
  %v847 = vpack.c.bf16 %v796, %v795
  %v848 = vpack.c.bf16 %v798, %v797
  %v849 = vpack.c.bf16 %v800, %v799
  %v850 = vpack.c.bf16 %v802, %v801
  %v851 = vpack.c.bf16 %v804, %v803
  %v852 = vpack.c.bf16 %v806, %v805
  %v853 = vpack.c.bf16 %v808, %v807
  %v854 = vpack.c.bf16 %v810, %v809
  %v855 = vpack.c.bf16 %v812, %v811
  %v856 = vpack.c.bf16 %v814, %v813
  %v857 = vpack.c.bf16 %v816, %v815
  %v858 = vpack.c.bf16 %v818, %v817
  %v859 = vpack.c.bf16 %v820, %v819
  %v860 = vpack.c.bf16 %v822, %v821
  %v861 = vpack.c.bf16 %v824, %v823
  %v862 = vpack.c.bf16 %v826, %v825
  %v863 = vpack.c.bf16 %v828, %v827
  %v864 = vpack.c.bf16 %v830, %v829
  %v865 = vpack.c.bf16 %v832, %v831
  %v866 = vpack.c.bf16 %v834, %v833
  %v867 = vpack.c.bf16 %v836, %v835
  %v868 = vpack.c.bf16 %v838, %v837
  %v869 = vpack.c.bf16 %v840, %v839
  %v870 = vpack.c.bf16 %v841, %v841
  %v900 = vunpack.c.l.b16 %v842
  %v901 = vunpack.c.h.b16 %v842
  %v902 = vunpack.c.l.b16 %v843
  %v903 = vunpack.c.h.b16 %v843
  %v904 = vunpack.c.l.b16 %v844
  %v905 = vunpack.c.h.b16 %v844
  %v906 = vunpack.c.l.b16 %v845
  %v907 = vunpack.c.h.b16 %v845
  %v908 = vunpack.c.l.b16 %v846
  %v909 = vunpack.c.h.b16 %v846
  %v910 = vunpack.c.l.b16 %v847
  %v911 = vunpack.c.h.b16 %v847
  %v912 = vunpack.c.l.b16 %v848
  %v913 = vunpack.c.h.b16 %v848
  %v914 = vunpack.c.l.b16 %v849
  %v915 = vunpack.c.h.b16 %v849
  %v916 = vunpack.c.l.b16 %v850
  %v917 = vunpack.c.h.b16 %v850
  %v918 = vunpack.c.l.b16 %v851
  %v919 = vunpack.c.h.b16 %v851
  %v920 = vunpack.c.l.b16 %v852
  %v921 = vunpack.c.h.b16 %v852
  %v922 = vunpack.c.l.b16 %v853
  %v923 = vunpack.c.h.b16 %v853
  %v924 = vunpack.c.l.b16 %v854
  %v925 = vunpack.c.h.b16 %v854
  %v926 = vunpack.c.l.b16 %v855
  %v927 = vunpack.c.h.b16 %v855
  %v928 = vunpack.c.l.b16 %v856
  %v929 = vunpack.c.h.b16 %v856
  %v930 = vunpack.c.l.b16 %v857
  %v931 = vunpack.c.h.b16 %v857
  %v932 = vunpack.c.l.b16 %v858
  %v933 = vunpack.c.h.b16 %v858
  %v934 = vunpack.c.l.b16 %v859
  %v935 = vunpack.c.h.b16 %v859
  %v936 = vunpack.c.l.b16 %v860
  %v937 = vunpack.c.h.b16 %v860
  %v938 = vunpack.c.l.b16 %v861
  %v939 = vunpack.c.h.b16 %v861
  %v940 = vunpack.c.l.b16 %v862
  %v941 = vunpack.c.h.b16 %v862
  %v942 = vunpack.c.l.b16 %v863
  %v943 = vunpack.c.h.b16 %v863
  %v944 = vunpack.c.l.b16 %v864
  %v945 = vunpack.c.h.b16 %v864
  %v946 = vunpack.c.l.b16 %v865
  %v947 = vunpack.c.h.b16 %v865
  %v948 = vunpack.c.l.b16 %v866
  %v949 = vunpack.c.h.b16 %v866
  %v950 = vunpack.c.l.b16 %v867
  %v951 = vunpack.c.h.b16 %v867
  %v952 = vunpack.c.l.b16 %v868
  %v953 = vunpack.c.h.b16 %v868
  %v954 = vunpack.c.l.b16 %v869
  %v955 = vunpack.c.h.b16 %v869
  %v956 = vunpack.c.l.b16 %v870
  %v957 = vpack.c.b16 %v900, %v900
  %v958 = vpack.c.b16 %v901, %v901
  %v959 = vpack.c.b16 %v902, %v902
  %v960 = vpack.c.b16 %v903, %v903
  %v961 = vpack.c.b16 %v904, %v904
  %v962 = vpack.c.b16 %v905, %v905
  %v963 = vpack.c.b16 %v906, %v906
  %v964 = vpack.c.b16 %v907, %v907
  %v965 = vpack.c.b16 %v908, %v908
  %v966 = vpack.c.b16 %v909, %v909
  %v967 = vpack.c.b16 %v910, %v910
  %v968 = vpack.c.b16 %v911, %v911
  %v969 = vpack.c.b16 %v912, %v912
  %v970 = vpack.c.b16 %v913, %v913
  %v971 = vpack.c.b16 %v914, %v914
  %v972 = vpack.c.b16 %v915, %v915
  %v973 = vpack.c.b16 %v916, %v916
  %v974 = vpack.c.b16 %v917, %v917
  %v975 = vpack.c.b16 %v918, %v918
  %v976 = vpack.c.b16 %v919, %v919
  %v977 = vpack.c.b16 %v920, %v920
  %v978 = vpack.c.b16 %v921, %v921
  %v979 = vpack.c.b16 %v922, %v922
  %v980 = vpack.c.b16 %v923, %v923
  %v981 = vpack.c.b16 %v924, %v924
  %v982 = vpack.c.b16 %v925, %v925
  %v983 = vpack.c.b16 %v926, %v926
  %v984 = vpack.c.b16 %v927, %v927
  %v985 = vpack.c.b16 %v928, %v928
  %v986 = vpack.c.b16 %v929, %v929
  %v987 = vpack.c.b16 %v930, %v930
  %v988 = vpack.c.b16 %v931, %v931
  %v989 = vpack.c.b16 %v932, %v932
  %v990 = vpack.c.b16 %v933, %v933
  %v991 = vpack.c.b16 %v934, %v934
  %v992 = vpack.c.b16 %v935, %v935
  %v993 = vpack.c.b16 %v936, %v936
  %v994 = vpack.c.b16 %v937, %v937
  %v995 = vpack.c.b16 %v938, %v938
  %v996 = vpack.c.b16 %v939, %v939
  %v997 = vpack.c.b16 %v940, %v940
  %v998 = vpack.c.b16 %v941, %v941
  %v999 = vpack.c.b16 %v942, %v942
  %v1000 = vpack.c.b16 %v943, %v943
  %v1001 = vpack.c.b16 %v944, %v944
  %v1002 = vpack.c.b16 %v945, %v945
  %v1003 = vpack.c.b16 %v946, %v946
  %v1004 = vpack.c.b16 %v947, %v947
  %v1005 = vpack.c.b16 %v948, %v948
  %v1006 = vpack.c.b16 %v949, %v949
  %v1007 = vpack.c.b16 %v950, %v950
  %v1008 = vpack.c.b16 %v951, %v951
  %v1009 = vpack.c.b16 %v952, %v952
  %v1010 = vpack.c.b16 %v953, %v953
  %v1011 = vpack.c.b16 %v954, %v954
  %v1012 = vpack.c.b16 %v955, %v955
  %v1013 = vpack.c.b16 %v956, %v956
  %vm1071 = vcmask 257024
  %1072 = vst.msk [vmem:[%s3] sm:$0xf] %vm1071, %v957
  %1073 = vst.msk [vmem:[%s3 + $0x4] sm:$0xf] %vm1071, %v958
  %1074 = vst.msk [vmem:[%s3 + $0x8] sm:$0xf] %vm1071, %v959
  %1075 = vst.msk [vmem:[%s3 + $0xc] sm:$0xf] %vm1071, %v960
  %1076 = vst.msk [vmem:[%s3 + $0x10] sm:$0xf] %vm1071, %v961
  %1077 = vst.msk [vmem:[%s3 + $0x14] sm:$0xf] %vm1071, %v962
  %1078 = vst.msk [vmem:[%s3 + $0x18] sm:$0xf] %vm1071, %v963
  %1079 = vst.msk [vmem:[%s3 + $0x1c] sm:$0xf] %vm1071, %v964
  %1080 = vst.msk [vmem:[%s3 + $0x20] sm:$0xf] %vm1071, %v965
  %1081 = vst.msk [vmem:[%s3 + $0x24] sm:$0xf] %vm1071, %v966
  %1082 = vst.msk [vmem:[%s3 + $0x28] sm:$0xf] %vm1071, %v967
  %1083 = vst.msk [vmem:[%s3 + $0x2c] sm:$0xf] %vm1071, %v968
  %1084 = vst.msk [vmem:[%s3 + $0x30] sm:$0xf] %vm1071, %v969
  %1085 = vst.msk [vmem:[%s3 + $0x34] sm:$0xf] %vm1071, %v970
  %1086 = vst.msk [vmem:[%s3 + $0x38] sm:$0xf] %vm1071, %v971
  %1087 = vst.msk [vmem:[%s3 + $0x3c] sm:$0xf] %vm1071, %v972
  %1088 = vst.msk [vmem:[%s3 + $0x40] sm:$0xf] %vm1071, %v973
  %1089 = vst.msk [vmem:[%s3 + $0x44] sm:$0xf] %vm1071, %v974
  %1090 = vst.msk [vmem:[%s3 + $0x48] sm:$0xf] %vm1071, %v975
  %1091 = vst.msk [vmem:[%s3 + $0x4c] sm:$0xf] %vm1071, %v976
  %1092 = vst.msk [vmem:[%s3 + $0x50] sm:$0xf] %vm1071, %v977
  %1093 = vst.msk [vmem:[%s3 + $0x54] sm:$0xf] %vm1071, %v978
  %1094 = vst.msk [vmem:[%s3 + $0x58] sm:$0xf] %vm1071, %v979
  %1095 = vst.msk [vmem:[%s3 + $0x5c] sm:$0xf] %vm1071, %v980
  %1096 = vst.msk [vmem:[%s3 + $0x60] sm:$0xf] %vm1071, %v981
  %1097 = vst.msk [vmem:[%s3 + $0x64] sm:$0xf] %vm1071, %v982
  %1098 = vst.msk [vmem:[%s3 + $0x68] sm:$0xf] %vm1071, %v983
  %1099 = vst.msk [vmem:[%s3 + $0x6c] sm:$0xf] %vm1071, %v984
  %1100 = vst.msk [vmem:[%s3 + $0x70] sm:$0xf] %vm1071, %v985
  %1101 = vst.msk [vmem:[%s3 + $0x74] sm:$0xf] %vm1071, %v986
  %1102 = vst.msk [vmem:[%s3 + $0x78] sm:$0xf] %vm1071, %v987
  %1103 = vst.msk [vmem:[%s3 + $0x7c] sm:$0xf] %vm1071, %v988
  %1104 = vst.msk [vmem:[%s3 + $0x80] sm:$0xf] %vm1071, %v989
  %1105 = vst.msk [vmem:[%s3 + $0x84] sm:$0xf] %vm1071, %v990
  %1106 = vst.msk [vmem:[%s3 + $0x88] sm:$0xf] %vm1071, %v991
  %1107 = vst.msk [vmem:[%s3 + $0x8c] sm:$0xf] %vm1071, %v992
  %1108 = vst.msk [vmem:[%s3 + $0x90] sm:$0xf] %vm1071, %v993
  %1109 = vst.msk [vmem:[%s3 + $0x94] sm:$0xf] %vm1071, %v994
  %1110 = vst.msk [vmem:[%s3 + $0x98] sm:$0xf] %vm1071, %v995
  %1111 = vst.msk [vmem:[%s3 + $0x9c] sm:$0xf] %vm1071, %v996
  %1112 = vst.msk [vmem:[%s3 + $0xa0] sm:$0xf] %vm1071, %v997
  %1113 = vst.msk [vmem:[%s3 + $0xa4] sm:$0xf] %vm1071, %v998
  %1114 = vst.msk [vmem:[%s3 + $0xa8] sm:$0xf] %vm1071, %v999
  %1115 = vst.msk [vmem:[%s3 + $0xac] sm:$0xf] %vm1071, %v1000
  %1116 = vst.msk [vmem:[%s3 + $0xb0] sm:$0xf] %vm1071, %v1001
  %1117 = vst.msk [vmem:[%s3 + $0xb4] sm:$0xf] %vm1071, %v1002
  %1118 = vst.msk [vmem:[%s3 + $0xb8] sm:$0xf] %vm1071, %v1003
  %1119 = vst.msk [vmem:[%s3 + $0xbc] sm:$0xf] %vm1071, %v1004
  %1120 = vst.msk [vmem:[%s3 + $0xc0] sm:$0xf] %vm1071, %v1005
  %1121 = vst.msk [vmem:[%s3 + $0xc4] sm:$0xf] %vm1071, %v1006
  %1122 = vst.msk [vmem:[%s3 + $0xc8] sm:$0xf] %vm1071, %v1007
  %1123 = vst.msk [vmem:[%s3 + $0xcc] sm:$0xf] %vm1071, %v1008
  %1124 = vst.msk [vmem:[%s3 + $0xd0] sm:$0xf] %vm1071, %v1009
  %1125 = vst.msk [vmem:[%s3 + $0xd4] sm:$0xf] %vm1071, %v1010
  %1126 = vst.msk [vmem:[%s3 + $0xd8] sm:$0xf] %vm1071, %v1011
  %1127 = vst.msk [vmem:[%s3 + $0xdc] sm:$0xf] %vm1071, %v1012
  %1128 = vst.msk [vmem:[%s3 + $0xe0] sm:$0xf] %vm1071, %v1013
  // Predicated region
  $region14: #{convnet_rgb_forward.3} parent=0 // pred_check
    _
  $region15: #{convnet_rgb_forward.3} parent=0 // pred_check_branch
    %1130 = sbr.rel (0) target = $region17
  $region16: #{convnet_rgb_forward.3} parent=0 // pred_region
    _
  $region17: #{convnet_rgb_forward.3} parent=0 // pred_fallthru
    _
  // Predicated region
  $region18: #{convnet_rgb_forward.3} parent=0 // pred_check
    _
  $region19: #{convnet_rgb_forward.3} parent=0 // pred_check_branch
    %1132 = sbr.rel (0) target = $region21
  $region20: #{convnet_rgb_forward.3} parent=0 // pred_region
    _
  $region21: #{convnet_rgb_forward.3} parent=0 // pred_fallthru
    _

// kernel: convnet_rgb_forward.4
$region0: #{convnet_rgb_forward.4}
  #allocation0 [shape = 'u32[]', space=smem, size = 0x4, offset = 0x4, fixed_abs, tag = 'smem constant byte address 0x4 - core index']
  #allocation1 [shape = 'u32[144,128]{1,0:T(1,128)}', space=vmem, size = 0x12000, scoped, tag = 'internal scratch']
  %s0 = inlined_call_operand.vmem [shape: bf16[72,512], index: 0, kind: input, shape index: {}]
  %s1 = inlined_call_operand.vmem [shape: bf16[512,64], index: 1, kind: input, shape index: {}]
  %s2 = inlined_call_operand.vmem [shape: f32[1,64], index: 2, kind: input, shape index: {}]
  %s3 = inlined_call_operand.vmem [shape: bf16[72,64], index: 3, kind: output, shape index: {}]
  %s4 = sld [smem:[#allocation0]]
  $region22: #{convnet_rgb_forward.4} parent=0
    _
  %s6 = ssub.s32 1, %s4
  %s7 = scalar_select 0, %s6, %s4
  // Predicated region
  $region2: #{convnet_rgb_forward.4} parent=0 // pred_check
    _
  $region3: #{convnet_rgb_forward.4} parent=0 // pred_check_branch
    %9 = sbr.rel (0) target = $region5
  $region4: #{convnet_rgb_forward.4} parent=0 // pred_region
    _
  $region5: #{convnet_rgb_forward.4} parent=0 // pred_fallthru
    _
  // Predicated region
  $region6: #{convnet_rgb_forward.4} parent=0 // pred_check
    _
  $region7: #{convnet_rgb_forward.4} parent=0 // pred_check_branch
    %11 = sbr.rel (0) target = $region9
  $region8: #{convnet_rgb_forward.4} parent=0 // pred_region
    _
  $region9: #{convnet_rgb_forward.4} parent=0 // pred_fallthru
    _
  // Predicated region
  $region10: #{convnet_rgb_forward.4} parent=0 // pred_check
    _
  $region11: #{convnet_rgb_forward.4} parent=0 // pred_check_branch
    %13 = sbr.rel (0) target = $region13
  $region12: #{convnet_rgb_forward.4} parent=0 // pred_region
    _
  $region13: #{convnet_rgb_forward.4} parent=0 // pred_fallthru
    _
  %v15 = vld [vmem:[%s0] sm:$0xff]
  %v16 = vld [vmem:[%s0 + $0x8] sm:$0xff]
  %v17 = vld [vmem:[%s0 + $0x10] sm:$0xff]
  %v18 = vld [vmem:[%s0 + $0x18] sm:$0xff]
  %v19 = vld [vmem:[%s0 + $0x20] sm:$0xff]
  %v20 = vld [vmem:[%s0 + $0x28] sm:$0xff]
  %v21 = vld [vmem:[%s0 + $0x30] sm:$0xff]
  %v22 = vld [vmem:[%s0 + $0x38] sm:$0xff]
  %v23 = vld [vmem:[%s0 + $0x40] sm:$0xff]
  %v24 = vld [vmem:[%s0 + $0x48] sm:$0xff]
  %v25 = vld [vmem:[%s0 + $0x50] sm:$0xff]
  %v26 = vld [vmem:[%s0 + $0x58] sm:$0xff]
  %v27 = vld [vmem:[%s0 + $0x60] sm:$0xff]
  %v28 = vld [vmem:[%s0 + $0x68] sm:$0xff]
  %v29 = vld [vmem:[%s0 + $0x70] sm:$0xff]
  %v30 = vld [vmem:[%s0 + $0x78] sm:$0xff]
  %v31 = vld [vmem:[%s0 + $0x80] sm:$0xff]
  %v32 = vld [vmem:[%s0 + $0x88] sm:$0xff]
  %v33 = vld [vmem:[%s1] sm:$0xf]
  %v34 = vld [vmem:[%s1 + $0x4] sm:$0xf]
  %v35 = vld [vmem:[%s1 + $0x8] sm:$0xf]
  %v36 = vld [vmem:[%s1 + $0xc] sm:$0xf]
  %v37 = vld [vmem:[%s1 + $0x10] sm:$0xf]
  %v38 = vld [vmem:[%s1 + $0x14] sm:$0xf]
  %v39 = vld [vmem:[%s1 + $0x18] sm:$0xf]
  %v40 = vld [vmem:[%s1 + $0x1c] sm:$0xf]
  %v41 = vld [vmem:[%s1 + $0x20] sm:$0xf]
  %v42 = vld [vmem:[%s1 + $0x24] sm:$0xf]
  %v43 = vld [vmem:[%s1 + $0x28] sm:$0xf]
  %v44 = vld [vmem:[%s1 + $0x2c] sm:$0xf]
  %v45 = vld [vmem:[%s1 + $0x30] sm:$0xf]
  %v46 = vld [vmem:[%s1 + $0x34] sm:$0xf]
  %v47 = vld [vmem:[%s1 + $0x38] sm:$0xf]
  %v48 = vld [vmem:[%s1 + $0x3c] sm:$0xf]
  %v49 = vld [vmem:[%s1 + $0x40] sm:$0xf]
  %v50 = vld [vmem:[%s1 + $0x44] sm:$0xf]
  %v51 = vld [vmem:[%s1 + $0x48] sm:$0xf]
  %v52 = vld [vmem:[%s1 + $0x4c] sm:$0xf]
  %v53 = vld [vmem:[%s1 + $0x50] sm:$0xf]
  %v54 = vld [vmem:[%s1 + $0x54] sm:$0xf]
  %v55 = vld [vmem:[%s1 + $0x58] sm:$0xf]
  %v56 = vld [vmem:[%s1 + $0x5c] sm:$0xf]
  %v57 = vld [vmem:[%s1 + $0x60] sm:$0xf]
  %v58 = vld [vmem:[%s1 + $0x64] sm:$0xf]
  %v59 = vld [vmem:[%s1 + $0x68] sm:$0xf]
  %v60 = vld [vmem:[%s1 + $0x6c] sm:$0xf]
  %v61 = vld [vmem:[%s1 + $0x70] sm:$0xf]
  %v62 = vld [vmem:[%s1 + $0x74] sm:$0xf]
  %v63 = vld [vmem:[%s1 + $0x78] sm:$0xf]
  %v64 = vld [vmem:[%s1 + $0x7c] sm:$0xf]
  %v65 = vld [vmem:[%s1 + $0x80] sm:$0xf]
  %v66 = vld [vmem:[%s1 + $0x84] sm:$0xf]
  %v67 = vld [vmem:[%s1 + $0x88] sm:$0xf]
  %v68 = vld [vmem:[%s1 + $0x8c] sm:$0xf]
  %v69 = vld [vmem:[%s1 + $0x90] sm:$0xf]
  %v70 = vld [vmem:[%s1 + $0x94] sm:$0xf]
  %v71 = vld [vmem:[%s1 + $0x98] sm:$0xf]
  %v72 = vld [vmem:[%s1 + $0x9c] sm:$0xf]
  %v73 = vld [vmem:[%s1 + $0xa0] sm:$0xf]
  %v74 = vld [vmem:[%s1 + $0xa4] sm:$0xf]
  %v75 = vld [vmem:[%s1 + $0xa8] sm:$0xf]
  %v76 = vld [vmem:[%s1 + $0xac] sm:$0xf]
  %v77 = vld [vmem:[%s1 + $0xb0] sm:$0xf]
  %v78 = vld [vmem:[%s1 + $0xb4] sm:$0xf]
  %v79 = vld [vmem:[%s1 + $0xb8] sm:$0xf]
  %v80 = vld [vmem:[%s1 + $0xbc] sm:$0xf]
  %v81 = vld [vmem:[%s1 + $0xc0] sm:$0xf]
  %v82 = vld [vmem:[%s1 + $0xc4] sm:$0xf]
  %v83 = vld [vmem:[%s1 + $0xc8] sm:$0xf]
  %v84 = vld [vmem:[%s1 + $0xcc] sm:$0xf]
  %v85 = vld [vmem:[%s1 + $0xd0] sm:$0xf]
  %v86 = vld [vmem:[%s1 + $0xd4] sm:$0xf]
  %v87 = vld [vmem:[%s1 + $0xd8] sm:$0xf]
  %v88 = vld [vmem:[%s1 + $0xdc] sm:$0xf]
  %v89 = vld [vmem:[%s1 + $0xe0] sm:$0xf]
  %v90 = vld [vmem:[%s1 + $0xe4] sm:$0xf]
  %v91 = vld [vmem:[%s1 + $0xe8] sm:$0xf]
  %v92 = vld [vmem:[%s1 + $0xec] sm:$0xf]
  %v93 = vld [vmem:[%s1 + $0xf0] sm:$0xf]
  %v94 = vld [vmem:[%s1 + $0xf4] sm:$0xf]
  %v95 = vld [vmem:[%s1 + $0xf8] sm:$0xf]
  %v96 = vld [vmem:[%s1 + $0xfc] sm:$0xf]
  %v97 = vld [vmem:[%s2] sm:$0x1]
  %v99 = vlaneseq
  %v100 = vshrl.u32 %v99, 7
  %v101 = vsub.s32 0, %v100
  %v102 = vrot.slane %v97, %v101
  %v122 = vunpack.c.l.b16 %v15
  %v123 = vunpack.c.h.b16 %v15
  %v124 = vunpack.c.l.b16 %v16
  %v125 = vunpack.c.h.b16 %v16
  %v126 = vunpack.c.l.b16 %v17
  %v127 = vunpack.c.h.b16 %v17
  %v128 = vunpack.c.l.b16 %v18
  %v129 = vunpack.c.h.b16 %v18
  %v130 = vunpack.c.l.b16 %v19
  %v131 = vunpack.c.h.b16 %v19
  %v132 = vunpack.c.l.b16 %v20
  %v133 = vunpack.c.h.b16 %v20
  %v134 = vunpack.c.l.b16 %v21
  %v135 = vunpack.c.h.b16 %v21
  %v136 = vunpack.c.l.b16 %v22
  %v137 = vunpack.c.h.b16 %v22
  %v138 = vunpack.c.l.b16 %v23
  %v139 = vunpack.c.h.b16 %v23
  %v140 = vunpack.c.l.b16 %v24
  %v141 = vunpack.c.h.b16 %v24
  %v142 = vunpack.c.l.b16 %v25
  %v143 = vunpack.c.h.b16 %v25
  %v144 = vunpack.c.l.b16 %v26
  %v145 = vunpack.c.h.b16 %v26
  %v146 = vunpack.c.l.b16 %v27
  %v147 = vunpack.c.h.b16 %v27
  %v148 = vunpack.c.l.b16 %v28
  %v149 = vunpack.c.h.b16 %v28
  %v150 = vunpack.c.l.b16 %v29
  %v151 = vunpack.c.h.b16 %v29
  %v152 = vunpack.c.l.b16 %v30
  %v153 = vunpack.c.h.b16 %v30
  %v154 = vunpack.c.l.b16 %v31
  %v155 = vunpack.c.h.b16 %v31
  %v156 = vunpack.c.l.b16 %v32
  %v157 = vunpack.c.h.b16 %v32
  %v158 = vpack.c.b16 %v126, %v122
  %v159 = vpack.c.b16 %v127, %v123
  %v160 = vpack.c.b16 %v128, %v124
  %v161 = vpack.c.b16 %v129, %v125
  %v162 = vpack.c.b16 %v134, %v130
  %v163 = vpack.c.b16 %v135, %v131
  %v164 = vpack.c.b16 %v136, %v132
  %v165 = vpack.c.b16 %v137, %v133
  %v166 = vpack.c.b16 %v142, %v138
  %v167 = vpack.c.b16 %v143, %v139
  %v168 = vpack.c.b16 %v144, %v140
  %v169 = vpack.c.b16 %v145, %v141
  %v170 = vpack.c.b16 %v150, %v146
  %v171 = vpack.c.b16 %v151, %v147
  %v172 = vpack.c.b16 %v152, %v148
  %v173 = vpack.c.b16 %v153, %v149
  %v174 = vpack.c.b16 %v154, %v154
  %v175 = vpack.c.b16 %v155, %v155
  %v176 = vpack.c.b16 %v156, %v156
  %v177 = vpack.c.b16 %v157, %v157
  %v262 = vunpack.c.l.b16 %v33
  %v263 = vunpack.c.l.b16 %v34
  %v264 = vunpack.c.l.b16 %v35
  %v265 = vunpack.c.l.b16 %v36
  %v266 = vunpack.c.l.b16 %v37
  %v267 = vunpack.c.l.b16 %v38
  %v268 = vunpack.c.l.b16 %v39
  %v269 = vunpack.c.l.b16 %v40
  %v270 = vunpack.c.l.b16 %v41
  %v271 = vunpack.c.l.b16 %v42
  %v272 = vunpack.c.l.b16 %v43
  %v273 = vunpack.c.l.b16 %v44
  %v274 = vunpack.c.l.b16 %v45
  %v275 = vunpack.c.l.b16 %v46
  %v276 = vunpack.c.l.b16 %v47
  %v277 = vunpack.c.l.b16 %v48
  %v278 = vunpack.c.l.b16 %v49
  %v279 = vunpack.c.l.b16 %v50
  %v280 = vunpack.c.l.b16 %v51
  %v281 = vunpack.c.l.b16 %v52
  %v282 = vunpack.c.l.b16 %v53
  %v283 = vunpack.c.l.b16 %v54
  %v284 = vunpack.c.l.b16 %v55
  %v285 = vunpack.c.l.b16 %v56
  %v286 = vunpack.c.l.b16 %v57
  %v287 = vunpack.c.l.b16 %v58
  %v288 = vunpack.c.l.b16 %v59
  %v289 = vunpack.c.l.b16 %v60
  %v290 = vunpack.c.l.b16 %v61
  %v291 = vunpack.c.l.b16 %v62
  %v292 = vunpack.c.l.b16 %v63
  %v293 = vunpack.c.l.b16 %v64
  %v294 = vunpack.c.l.b16 %v65
  %v295 = vunpack.c.l.b16 %v66
  %v296 = vunpack.c.l.b16 %v67
  %v297 = vunpack.c.l.b16 %v68
  %v298 = vunpack.c.l.b16 %v69
  %v299 = vunpack.c.l.b16 %v70
  %v300 = vunpack.c.l.b16 %v71
  %v301 = vunpack.c.l.b16 %v72
  %v302 = vunpack.c.l.b16 %v73
  %v303 = vunpack.c.l.b16 %v74
  %v304 = vunpack.c.l.b16 %v75
  %v305 = vunpack.c.l.b16 %v76
  %v306 = vunpack.c.l.b16 %v77
  %v307 = vunpack.c.l.b16 %v78
  %v308 = vunpack.c.l.b16 %v79
  %v309 = vunpack.c.l.b16 %v80
  %v310 = vunpack.c.l.b16 %v81
  %v311 = vunpack.c.l.b16 %v82
  %v312 = vunpack.c.l.b16 %v83
  %v313 = vunpack.c.l.b16 %v84
  %v314 = vunpack.c.l.b16 %v85
  %v315 = vunpack.c.l.b16 %v86
  %v316 = vunpack.c.l.b16 %v87
  %v317 = vunpack.c.l.b16 %v88
  %v318 = vunpack.c.l.b16 %v89
  %v319 = vunpack.c.l.b16 %v90
  %v320 = vunpack.c.l.b16 %v91
  %v321 = vunpack.c.l.b16 %v92
  %v322 = vunpack.c.l.b16 %v93
  %v323 = vunpack.c.l.b16 %v94
  %v324 = vunpack.c.l.b16 %v95
  %v325 = vunpack.c.l.b16 %v96
  %v326 = vpack.c.b16 %v263, %v262
  %v327 = vpack.c.b16 %v265, %v264
  %v328 = vpack.c.b16 %v267, %v266
  %v329 = vpack.c.b16 %v269, %v268
  %v330 = vpack.c.b16 %v271, %v270
  %v331 = vpack.c.b16 %v273, %v272
  %v332 = vpack.c.b16 %v275, %v274
  %v333 = vpack.c.b16 %v277, %v276
  %v334 = vpack.c.b16 %v279, %v278
  %v335 = vpack.c.b16 %v281, %v280
  %v336 = vpack.c.b16 %v283, %v282
  %v337 = vpack.c.b16 %v285, %v284
  %v338 = vpack.c.b16 %v287, %v286
  %v339 = vpack.c.b16 %v289, %v288
  %v340 = vpack.c.b16 %v291, %v290
  %v341 = vpack.c.b16 %v293, %v292
  %v342 = vpack.c.b16 %v295, %v294
  %v343 = vpack.c.b16 %v297, %v296
  %v344 = vpack.c.b16 %v299, %v298
  %v345 = vpack.c.b16 %v301, %v300
  %v346 = vpack.c.b16 %v303, %v302
  %v347 = vpack.c.b16 %v305, %v304
  %v348 = vpack.c.b16 %v307, %v306
  %v349 = vpack.c.b16 %v309, %v308
  %v350 = vpack.c.b16 %v311, %v310
  %v351 = vpack.c.b16 %v313, %v312
  %v352 = vpack.c.b16 %v315, %v314
  %v353 = vpack.c.b16 %v317, %v316
  %v354 = vpack.c.b16 %v319, %v318
  %v355 = vpack.c.b16 %v321, %v320
  %v356 = vpack.c.b16 %v323, %v322
  %v357 = vpack.c.b16 %v325, %v324
  %390 = vmatprep.subr.bf16.mxu0 0
  %391 = vmatpush1.bf16.msra.mxu0 %v333
  %392 = vmatprep.subr.bf16.mxu0 0
  %393 = vmatpush1.bf16.msra.mxu0 %v332
  %394 = vmatprep.subr.bf16.mxu0 0
  %395 = vmatpush1.bf16.msra.mxu0 %v331
  %396 = vmatprep.subr.bf16.mxu0 0
  %397 = vmatpush1.bf16.msra.mxu0 %v330
  %398 = vmatprep.subr.bf16.mxu0 0
  %399 = vmatpush1.bf16.msra.mxu0 %v329
  %400 = vmatprep.subr.bf16.mxu0 0
  %401 = vmatpush1.bf16.msra.mxu0 %v328
  %402 = vmatprep.subr.bf16.mxu0 0
  %403 = vmatpush1.bf16.msra.mxu0 %v327
  %404 = vmatprep.subr.bf16.mxu0 0
  %405 = vmatpush1.bf16.msra.mxu0 %v326
  %406 = vmatprep.subr.bf16.mxu0 0
  %407 = vmatpush2.bf16.msra.mxu0 %v341
  %408 = vmatprep.subr.bf16.mxu0 0
  %409 = vmatpush2.bf16.msra.mxu0 %v340
  %410 = vmatprep.subr.bf16.mxu0 0
  %411 = vmatpush2.bf16.msra.mxu0 %v339
  %412 = vmatprep.subr.bf16.mxu0 0
  %413 = vmatpush2.bf16.msra.mxu0 %v338
  %414 = vmatprep.subr.bf16.mxu0 0
  %415 = vmatpush2.bf16.msra.mxu0 %v337
  %416 = vmatprep.subr.bf16.mxu0 0
  %417 = vmatpush2.bf16.msra.mxu0 %v336
  %418 = vmatprep.subr.bf16.mxu0 0
  %419 = vmatpush2.bf16.msra.mxu0 %v335
  %420 = vmatprep.subr.bf16.mxu0 0
  %421 = vmatpush2.bf16.msra.mxu0 %v334
  %422 = vmatprep.mubr.bf16.mxu0 %v159
  %423 = vmatmul.mubr.bf16.gmra.mxu0 %v158
  %v424 = vpop.f32.mrf.mxu0
  %v425 = vadd.f32 %v102, %v424
  %v426 = vpop.f32.mrf.mxu0
  %v427 = vpop.f32.mrf.mxu0
  %v428 = vadd.f32 %v102, %v427
  %v429 = vpop.f32.mrf.mxu0
  %430 = vmatprep.mubr.bf16.mxu0 %v163
  %431 = vmatmul.mubr.bf16.gmra.mxu0 %v162
  %v432 = vpop.f32.mrf.mxu0
  %v433 = vadd.f32 %v102, %v432
  %v434 = vpop.f32.mrf.mxu0
  %v435 = vpop.f32.mrf.mxu0
  %v436 = vadd.f32 %v102, %v435
  %v437 = vpop.f32.mrf.mxu0
  %438 = vmatprep.mubr.bf16.mxu0 %v167
  %439 = vmatmul.mubr.bf16.gmra.mxu0 %v166
  %v440 = vpop.f32.mrf.mxu0
  %v441 = vadd.f32 %v102, %v440
  %v442 = vpop.f32.mrf.mxu0
  %v443 = vpop.f32.mrf.mxu0
  %v444 = vadd.f32 %v102, %v443
  %v445 = vpop.f32.mrf.mxu0
  %446 = vmatprep.mubr.bf16.mxu0 %v171
  %447 = vmatmul.mubr.bf16.gmra.mxu0 %v170
  %v448 = vpop.f32.mrf.mxu0
  %v449 = vadd.f32 %v102, %v448
  %v450 = vpop.f32.mrf.mxu0
  %v451 = vpop.f32.mrf.mxu0
  %v452 = vadd.f32 %v102, %v451
  %v453 = vpop.f32.mrf.mxu0
  %454 = vmatprep.mubr.bf16.mxu0 %v175
  %455 = vmatmul.mubr.bf16.gmra.mxu0 %v174
  %v456 = vpop.f32.mrf.mxu0
  %v457 = vadd.f32 %v102, %v456
  %v458 = vpop.f32.mrf.mxu0
  %v459 = vpop.f32.mrf.mxu0
  %v460 = vpop.f32.mrf.mxu0
  %461 = vdwg.mxu0
  %462 = vmatprep.subr.bf16.mxu0 0
  %463 = vmatpush1.bf16.msra.mxu0 %v349
  %464 = vmatprep.subr.bf16.mxu0 0
  %465 = vmatpush1.bf16.msra.mxu0 %v348
  %466 = vmatprep.subr.bf16.mxu0 0
  %467 = vmatpush1.bf16.msra.mxu0 %v347
  %468 = vmatprep.subr.bf16.mxu0 0
  %469 = vmatpush1.bf16.msra.mxu0 %v346
  %470 = vmatprep.subr.bf16.mxu0 0
  %471 = vmatpush1.bf16.msra.mxu0 %v345
  %472 = vmatprep.subr.bf16.mxu0 0
  %473 = vmatpush1.bf16.msra.mxu0 %v344
  %474 = vmatprep.subr.bf16.mxu0 0
  %475 = vmatpush1.bf16.msra.mxu0 %v343
  %476 = vmatprep.subr.bf16.mxu0 0
  %477 = vmatpush1.bf16.msra.mxu0 %v342
  %478 = vmatprep.subr.bf16.mxu0 0
  %479 = vmatpush2.bf16.msra.mxu0 %v357
  %480 = vmatprep.subr.bf16.mxu0 0
  %481 = vmatpush2.bf16.msra.mxu0 %v356
  %482 = vmatprep.subr.bf16.mxu0 0
  %483 = vmatpush2.bf16.msra.mxu0 %v355
  %484 = vmatprep.subr.bf16.mxu0 0
  %485 = vmatpush2.bf16.msra.mxu0 %v354
  %486 = vmatprep.subr.bf16.mxu0 0
  %487 = vmatpush2.bf16.msra.mxu0 %v353
  %488 = vmatprep.subr.bf16.mxu0 0
  %489 = vmatpush2.bf16.msra.mxu0 %v352
  %490 = vmatprep.subr.bf16.mxu0 0
  %491 = vmatpush2.bf16.msra.mxu0 %v351
  %492 = vmatprep.subr.bf16.mxu0 0
  %493 = vmatpush2.bf16.msra.mxu0 %v350
  %494 = vmatprep.mubr.bf16.mxu0 %v161
  %495 = vmatmul.mubr.bf16.gmra.mxu0 %v160
  %v496 = vpop.f32.mrf.mxu0
  %v497 = vadd.f32 %v425, %v496
  %v498 = vpop.f32.mrf.mxu0
  %v499 = vpop.f32.mrf.mxu0
  %v500 = vadd.f32 %v428, %v499
  %v501 = vpop.f32.mrf.mxu0
  %502 = vmatprep.mubr.bf16.mxu0 %v165
  %503 = vmatmul.mubr.bf16.gmra.mxu0 %v164
  %v504 = vpop.f32.mrf.mxu0
  %v505 = vadd.f32 %v433, %v504
  %v506 = vpop.f32.mrf.mxu0
  %v507 = vpop.f32.mrf.mxu0
  %v508 = vadd.f32 %v436, %v507
  %v509 = vpop.f32.mrf.mxu0
  %510 = vmatprep.mubr.bf16.mxu0 %v169
  %511 = vmatmul.mubr.bf16.gmra.mxu0 %v168
  %v512 = vpop.f32.mrf.mxu0
  %v513 = vadd.f32 %v441, %v512
  %v514 = vpop.f32.mrf.mxu0
  %v515 = vpop.f32.mrf.mxu0
  %v516 = vadd.f32 %v444, %v515
  %v517 = vpop.f32.mrf.mxu0
  %518 = vmatprep.mubr.bf16.mxu0 %v173
  %519 = vmatmul.mubr.bf16.gmra.mxu0 %v172
  %v520 = vpop.f32.mrf.mxu0
  %v521 = vadd.f32 %v449, %v520
  %v522 = vpop.f32.mrf.mxu0
  %v523 = vpop.f32.mrf.mxu0
  %v524 = vadd.f32 %v452, %v523
  %v525 = vpop.f32.mrf.mxu0
  %526 = vmatprep.mubr.bf16.mxu0 %v177
  %527 = vmatmul.mubr.bf16.gmra.mxu0 %v176
  %v528 = vpop.f32.mrf.mxu0
  %v529 = vadd.f32 %v457, %v528
  %v530 = vpop.f32.mrf.mxu0
  %v531 = vpop.f32.mrf.mxu0
  %v532 = vpop.f32.mrf.mxu0
  %533 = vdwg.mxu0
  %v534 = vmax.f32 %v497, 0.0
  %v535 = vmax.f32 %v500, 0.0
  %v536 = vmax.f32 %v505, 0.0
  %v537 = vmax.f32 %v508, 0.0
  %v538 = vmax.f32 %v513, 0.0
  %v539 = vmax.f32 %v516, 0.0
  %v540 = vmax.f32 %v521, 0.0
  %v541 = vmax.f32 %v524, 0.0
  %v542 = vmax.f32 %v529, 0.0
  %v543 = vpack.c.bf16 %v535, %v534
  %v544 = vpack.c.bf16 %v537, %v536
  %v545 = vpack.c.bf16 %v539, %v538
  %v546 = vpack.c.bf16 %v541, %v540
  %v547 = vpack.c.bf16 %v542, %v542
  %v553 = vunpack.c.l.b16 %v543
  %v554 = vunpack.c.h.b16 %v543
  %v555 = vunpack.c.l.b16 %v544
  %v556 = vunpack.c.h.b16 %v544
  %v557 = vunpack.c.l.b16 %v545
  %v558 = vunpack.c.h.b16 %v545
  %v559 = vunpack.c.l.b16 %v546
  %v560 = vunpack.c.h.b16 %v546
  %v561 = vunpack.c.l.b16 %v547
  %v562 = vpack.c.b16 %v553, %v553
  %v563 = vpack.c.b16 %v554, %v554
  %v564 = vpack.c.b16 %v555, %v555
  %v565 = vpack.c.b16 %v556, %v556
  %v566 = vpack.c.b16 %v557, %v557
  %v567 = vpack.c.b16 %v558, %v558
  %v568 = vpack.c.b16 %v559, %v559
  %v569 = vpack.c.b16 %v560, %v560
  %v570 = vpack.c.b16 %v561, %v561
  %vm580 = vcmask 519168
  %581 = vst.msk [vmem:[%s3] sm:$0xf] %vm580, %v562
  %582 = vst.msk [vmem:[%s3 + $0x4] sm:$0xf] %vm580, %v563
  %583 = vst.msk [vmem:[%s3 + $0x8] sm:$0xf] %vm580, %v564
  %584 = vst.msk [vmem:[%s3 + $0xc] sm:$0xf] %vm580, %v565
  %585 = vst.msk [vmem:[%s3 + $0x10] sm:$0xf] %vm580, %v566
  %586 = vst.msk [vmem:[%s3 + $0x14] sm:$0xf] %vm580, %v567
  %587 = vst.msk [vmem:[%s3 + $0x18] sm:$0xf] %vm580, %v568
  %588 = vst.msk [vmem:[%s3 + $0x1c] sm:$0xf] %vm580, %v569
  %589 = vst.msk [vmem:[%s3 + $0x20] sm:$0xf] %vm580, %v570
  // Predicated region
  $region14: #{convnet_rgb_forward.4} parent=0 // pred_check
    _
  $region15: #{convnet_rgb_forward.4} parent=0 // pred_check_branch
    %591 = sbr.rel (0) target = $region17
  $region16: #{convnet_rgb_forward.4} parent=0 // pred_region
    _
  $region17: #{convnet_rgb_forward.4} parent=0 // pred_fallthru
    _
  // Predicated region
  $region18: #{convnet_rgb_forward.4} parent=0 // pred_check
    _
  $region19: #{convnet_rgb_forward.4} parent=0 // pred_check_branch
    %593 = sbr.rel (0) target = $region21
  $region20: #{convnet_rgb_forward.4} parent=0 // pred_region
    _
  $region21: #{convnet_rgb_forward.4} parent=0 // pred_fallthru
    _

// kernel: convnet_rgb_forward.5
$region0: #{convnet_rgb_forward.5}
  #allocation0 [shape = 'u32[]', space=smem, size = 0x4, offset = 0x4, fixed_abs, tag = 'smem constant byte address 0x4 - core index']
  #allocation1 [shape = 'u32[144,128]{1,0:T(1,128)}', space=vmem, size = 0x12000, scoped, tag = 'internal scratch']
  %s0 = inlined_call_operand.vmem [shape: bf16[4,2,1024], index: 0, kind: input, shape index: {}]
  %s1 = inlined_call_operand.vmem [shape: bf16[1024,64], index: 1, kind: input, shape index: {}]
  %s2 = inlined_call_operand.vmem [shape: f32[1,64], index: 2, kind: input, shape index: {}]
  %s3 = inlined_call_operand.vmem [shape: bf16[4,64,128], index: 3, kind: input, shape index: {}]
  %s4 = inlined_call_operand.vmem [shape: f32[1,128], index: 4, kind: input, shape index: {}]
  %s5 = inlined_call_operand.vmem [shape: bf16[128,5], index: 5, kind: input, shape index: {}]
  %s6 = inlined_call_operand.vmem [shape: f32[1,5], index: 6, kind: input, shape index: {}]
  %s7 = inlined_call_operand.hbm [shape: f32[2,5], index: 7, kind: output, shape index: {}]
  %s8 = sld [smem:[#allocation0]]
  $region38: #{convnet_rgb_forward.5} parent=0
    _
  %s10 = ssub.s32 1, %s8
  %s11 = scalar_select 0, %s10, %s8
  $region1: #{convnet_rgb_forward.5} parent=0
    #allocation2 [shape = 'u8[1024]{0}', space=vmem, size = 0x400, scoped, tag = 'output window, operand 0, single buffered']
    #allocation3 [shape = 's32[1]{0}', space=sflag, size = 0x4, scoped, tag = 'scoped memory for convnet_rgb_forward.5']
    %12 = vsyncpa [#allocation3], 0
    // Predicated region
    $region2: #{convnet_rgb_forward.5} parent=1 // pred_check
      _
    $region3: #{convnet_rgb_forward.5} parent=1 // pred_check_branch
      %14 = sbr.rel (0) target = $region5
    $region4: #{convnet_rgb_forward.5} parent=1 // pred_region
      _
    $region5: #{convnet_rgb_forward.5} parent=1 // pred_fallthru
      _
    // Predicated region
    $region6: #{convnet_rgb_forward.5} parent=1 // pred_check
      _
    $region7: #{convnet_rgb_forward.5} parent=1 // pred_check_branch
      %16 = sbr.rel (0) target = $region9
    $region8: #{convnet_rgb_forward.5} parent=1 // pred_region
      _
    $region9: #{convnet_rgb_forward.5} parent=1 // pred_fallthru
      _
    // Predicated region
    $region10: #{convnet_rgb_forward.5} parent=1 // pred_check
      _
    $region11: #{convnet_rgb_forward.5} parent=1 // pred_check_branch
      %18 = sbr.rel (0) target = $region13
    $region12: #{convnet_rgb_forward.5} parent=1 // pred_region
      _
    $region13: #{convnet_rgb_forward.5} parent=1 // pred_fallthru
      _
    // Predicated region
    $region14: #{convnet_rgb_forward.5} parent=1 // pred_check
      _
    $region15: #{convnet_rgb_forward.5} parent=1 // pred_check_branch
      %20 = sbr.rel (0) target = $region17
    $region16: #{convnet_rgb_forward.5} parent=1 // pred_region
      _
    $region17: #{convnet_rgb_forward.5} parent=1 // pred_fallthru
      _
    // Predicated region
    $region18: #{convnet_rgb_forward.5} parent=1 // pred_check
      _
    $region19: #{convnet_rgb_forward.5} parent=1 // pred_check_branch
      %22 = sbr.rel (0) target = $region21
    $region20: #{convnet_rgb_forward.5} parent=1 // pred_region
      _
    $region21: #{convnet_rgb_forward.5} parent=1 // pred_fallthru
      _
    // Predicated region
    $region22: #{convnet_rgb_forward.5} parent=1 // pred_check
      _
    $region23: #{convnet_rgb_forward.5} parent=1 // pred_check_branch
      %24 = sbr.rel (0) target = $region25
    $region24: #{convnet_rgb_forward.5} parent=1 // pred_region
      _
    $region25: #{convnet_rgb_forward.5} parent=1 // pred_fallthru
      _
    // Predicated region
    $region26: #{convnet_rgb_forward.5} parent=1 // pred_check
      _
    $region27: #{convnet_rgb_forward.5} parent=1 // pred_check_branch
      %26 = sbr.rel (0) target = $region29
    $region28: #{convnet_rgb_forward.5} parent=1 // pred_region
      _
    $region29: #{convnet_rgb_forward.5} parent=1 // pred_fallthru
      _
    %v28 = vld [vmem:[%s1] sm:$0xf]
    %v29 = vld [vmem:[%s1 + $0x4] sm:$0xf]
    %v30 = vld [vmem:[%s1 + $0x8] sm:$0xf]
    %v31 = vld [vmem:[%s1 + $0xc] sm:$0xf]
    %v32 = vld [vmem:[%s1 + $0x10] sm:$0xf]
    %v33 = vld [vmem:[%s1 + $0x14] sm:$0xf]
    %v34 = vld [vmem:[%s1 + $0x18] sm:$0xf]
    %v35 = vld [vmem:[%s1 + $0x1c] sm:$0xf]
    %v36 = vld [vmem:[%s1 + $0x20] sm:$0xf]
    %v37 = vld [vmem:[%s1 + $0x24] sm:$0xf]
    %v38 = vld [vmem:[%s1 + $0x28] sm:$0xf]
    %v39 = vld [vmem:[%s1 + $0x2c] sm:$0xf]
    %v40 = vld [vmem:[%s1 + $0x30] sm:$0xf]
    %v41 = vld [vmem:[%s1 + $0x34] sm:$0xf]
    %v42 = vld [vmem:[%s1 + $0x38] sm:$0xf]
    %v43 = vld [vmem:[%s1 + $0x3c] sm:$0xf]
    %v44 = vld [vmem:[%s1 + $0x40] sm:$0xf]
    %v45 = vld [vmem:[%s1 + $0x44] sm:$0xf]
    %v46 = vld [vmem:[%s1 + $0x48] sm:$0xf]
    %v47 = vld [vmem:[%s1 + $0x4c] sm:$0xf]
    %v48 = vld [vmem:[%s1 + $0x50] sm:$0xf]
    %v49 = vld [vmem:[%s1 + $0x54] sm:$0xf]
    %v50 = vld [vmem:[%s1 + $0x58] sm:$0xf]
    %v51 = vld [vmem:[%s1 + $0x5c] sm:$0xf]
    %v52 = vld [vmem:[%s1 + $0x60] sm:$0xf]
    %v53 = vld [vmem:[%s1 + $0x64] sm:$0xf]
    %v54 = vld [vmem:[%s1 + $0x68] sm:$0xf]
    %v55 = vld [vmem:[%s1 + $0x6c] sm:$0xf]
    %v56 = vld [vmem:[%s1 + $0x70] sm:$0xf]
    %v57 = vld [vmem:[%s1 + $0x74] sm:$0xf]
    %v58 = vld [vmem:[%s1 + $0x78] sm:$0xf]
    %v59 = vld [vmem:[%s1 + $0x7c] sm:$0xf]
    %v60 = vld [vmem:[%s1 + $0x80] sm:$0xf]
    %v61 = vld [vmem:[%s1 + $0x84] sm:$0xf]
    %v62 = vld [vmem:[%s1 + $0x88] sm:$0xf]
    %v63 = vld [vmem:[%s1 + $0x8c] sm:$0xf]
    %v64 = vld [vmem:[%s1 + $0x90] sm:$0xf]
    %v65 = vld [vmem:[%s1 + $0x94] sm:$0xf]
    %v66 = vld [vmem:[%s1 + $0x98] sm:$0xf]
    %v67 = vld [vmem:[%s1 + $0x9c] sm:$0xf]
    %v68 = vld [vmem:[%s1 + $0xa0] sm:$0xf]
    %v69 = vld [vmem:[%s1 + $0xa4] sm:$0xf]
    %v70 = vld [vmem:[%s1 + $0xa8] sm:$0xf]
    %v71 = vld [vmem:[%s1 + $0xac] sm:$0xf]
    %v72 = vld [vmem:[%s1 + $0xb0] sm:$0xf]
    %v73 = vld [vmem:[%s1 + $0xb4] sm:$0xf]
    %v74 = vld [vmem:[%s1 + $0xb8] sm:$0xf]
    %v75 = vld [vmem:[%s1 + $0xbc] sm:$0xf]
    %v76 = vld [vmem:[%s1 + $0xc0] sm:$0xf]
    %v77 = vld [vmem:[%s1 + $0xc4] sm:$0xf]
    %v78 = vld [vmem:[%s1 + $0xc8] sm:$0xf]
    %v79 = vld [vmem:[%s1 + $0xcc] sm:$0xf]
    %v80 = vld [vmem:[%s1 + $0xd0] sm:$0xf]
    %v81 = vld [vmem:[%s1 + $0xd4] sm:$0xf]
    %v82 = vld [vmem:[%s1 + $0xd8] sm:$0xf]
    %v83 = vld [vmem:[%s1 + $0xdc] sm:$0xf]
    %v84 = vld [vmem:[%s1 + $0xe0] sm:$0xf]
    %v85 = vld [vmem:[%s1 + $0xe4] sm:$0xf]
    %v86 = vld [vmem:[%s1 + $0xe8] sm:$0xf]
    %v87 = vld [vmem:[%s1 + $0xec] sm:$0xf]
    %v88 = vld [vmem:[%s1 + $0xf0] sm:$0xf]
    %v89 = vld [vmem:[%s1 + $0xf4] sm:$0xf]
    %v90 = vld [vmem:[%s1 + $0xf8] sm:$0xf]
    %v91 = vld [vmem:[%s1 + $0xfc] sm:$0xf]
    %v92 = vld [vmem:[%s1 + $0x100] sm:$0xf]
    %v93 = vld [vmem:[%s1 + $0x104] sm:$0xf]
    %v94 = vld [vmem:[%s1 + $0x108] sm:$0xf]
    %v95 = vld [vmem:[%s1 + $0x10c] sm:$0xf]
    %v96 = vld [vmem:[%s1 + $0x110] sm:$0xf]
    %v97 = vld [vmem:[%s1 + $0x114] sm:$0xf]
    %v98 = vld [vmem:[%s1 + $0x118] sm:$0xf]
    %v99 = vld [vmem:[%s1 + $0x11c] sm:$0xf]
    %v100 = vld [vmem:[%s1 + $0x120] sm:$0xf]
    %v101 = vld [vmem:[%s1 + $0x124] sm:$0xf]
    %v102 = vld [vmem:[%s1 + $0x128] sm:$0xf]
    %v103 = vld [vmem:[%s1 + $0x12c] sm:$0xf]
    %v104 = vld [vmem:[%s1 + $0x130] sm:$0xf]
    %v105 = vld [vmem:[%s1 + $0x134] sm:$0xf]
    %v106 = vld [vmem:[%s1 + $0x138] sm:$0xf]
    %v107 = vld [vmem:[%s1 + $0x13c] sm:$0xf]
    %v108 = vld [vmem:[%s1 + $0x140] sm:$0xf]
    %v109 = vld [vmem:[%s1 + $0x144] sm:$0xf]
    %v110 = vld [vmem:[%s1 + $0x148] sm:$0xf]
    %v111 = vld [vmem:[%s1 + $0x14c] sm:$0xf]
    %v112 = vld [vmem:[%s1 + $0x150] sm:$0xf]
    %v113 = vld [vmem:[%s1 + $0x154] sm:$0xf]
    %v114 = vld [vmem:[%s1 + $0x158] sm:$0xf]
    %v115 = vld [vmem:[%s1 + $0x15c] sm:$0xf]
    %v116 = vld [vmem:[%s1 + $0x160] sm:$0xf]
    %v117 = vld [vmem:[%s1 + $0x164] sm:$0xf]
    %v118 = vld [vmem:[%s1 + $0x168] sm:$0xf]
    %v119 = vld [vmem:[%s1 + $0x16c] sm:$0xf]
    %v120 = vld [vmem:[%s1 + $0x170] sm:$0xf]
    %v121 = vld [vmem:[%s1 + $0x174] sm:$0xf]
    %v122 = vld [vmem:[%s1 + $0x178] sm:$0xf]
    %v123 = vld [vmem:[%s1 + $0x17c] sm:$0xf]
    %v124 = vld [vmem:[%s1 + $0x180] sm:$0xf]
    %v125 = vld [vmem:[%s1 + $0x184] sm:$0xf]
    %v126 = vld [vmem:[%s1 + $0x188] sm:$0xf]
    %v127 = vld [vmem:[%s1 + $0x18c] sm:$0xf]
    %v128 = vld [vmem:[%s1 + $0x190] sm:$0xf]
    %v129 = vld [vmem:[%s1 + $0x194] sm:$0xf]
    %v130 = vld [vmem:[%s1 + $0x198] sm:$0xf]
    %v131 = vld [vmem:[%s1 + $0x19c] sm:$0xf]
    %v132 = vld [vmem:[%s1 + $0x1a0] sm:$0xf]
    %v133 = vld [vmem:[%s1 + $0x1a4] sm:$0xf]
    %v134 = vld [vmem:[%s1 + $0x1a8] sm:$0xf]
    %v135 = vld [vmem:[%s1 + $0x1ac] sm:$0xf]
    %v136 = vld [vmem:[%s1 + $0x1b0] sm:$0xf]
    %v137 = vld [vmem:[%s1 + $0x1b4] sm:$0xf]
    %v138 = vld [vmem:[%s1 + $0x1b8] sm:$0xf]
    %v139 = vld [vmem:[%s1 + $0x1bc] sm:$0xf]
    %v140 = vld [vmem:[%s1 + $0x1c0] sm:$0xf]
    %v141 = vld [vmem:[%s1 + $0x1c4] sm:$0xf]
    %v142 = vld [vmem:[%s1 + $0x1c8] sm:$0xf]
    %v143 = vld [vmem:[%s1 + $0x1cc] sm:$0xf]
    %v144 = vld [vmem:[%s1 + $0x1d0] sm:$0xf]
    %v145 = vld [vmem:[%s1 + $0x1d4] sm:$0xf]
    %v146 = vld [vmem:[%s1 + $0x1d8] sm:$0xf]
    %v147 = vld [vmem:[%s1 + $0x1dc] sm:$0xf]
    %v148 = vld [vmem:[%s1 + $0x1e0] sm:$0xf]
    %v149 = vld [vmem:[%s1 + $0x1e4] sm:$0xf]
    %v150 = vld [vmem:[%s1 + $0x1e8] sm:$0xf]
    %v151 = vld [vmem:[%s1 + $0x1ec] sm:$0xf]
    %v152 = vld [vmem:[%s1 + $0x1f0] sm:$0xf]
    %v153 = vld [vmem:[%s1 + $0x1f4] sm:$0xf]
    %v154 = vld [vmem:[%s1 + $0x1f8] sm:$0xf]
    %v155 = vld [vmem:[%s1 + $0x1fc] sm:$0xf]
    %v156 = vld [vmem:[%s2] sm:$0x1]
    %v157 = vld [vmem:[%s0] sm:$0xff]
    %v159 = vlaneseq
    %v160 = vshrl.u32 %v159, 7
    %v161 = vsub.s32 0, %v160
    %v162 = vrot.slane %v156, %v161
    %v165 = vcombine.high %v157, %v157
    %v167 = vunpack.c.l.s4 1966171168
    %v168 = vunpack.c.0.s8 %v167
    %v169 = vlaneseq
    %v170 = vshrl.u32 %v169, 7
    %v171 = vsub.s32 %v168, %v170
    %v172 = vrot.slane %v157, %v171
    %v174 = vunpack.c.l.s4 1966171168
    %v175 = vunpack.c.0.s8 %v174
    %v176 = vlaneseq
    %v177 = vshrl.u32 %v176, 7
    %v178 = vsub.s32 %v175, %v177
    %v179 = vrot.slane %v165, %v178
    %v180 = vcombine.high %v172, %v172
    %v181 = vcombine.high %v179, %v179
    %v183 = vunpack.c.l.s4 1966171168
    %v184 = vunpack.c.0.s8 %v183
    %v185 = vlaneseq
    %v186 = vshrl.u32 %v185, 7
    %v187 = vsub.s32 %v184, %v186
    %v188 = vrot.slane %v172, %v187
    %v190 = vunpack.c.l.s4 1966171168
    %v191 = vunpack.c.0.s8 %v190
    %v192 = vlaneseq
    %v193 = vshrl.u32 %v192, 7
    %v194 = vsub.s32 %v191, %v193
    %v195 = vrot.slane %v179, %v194
    %v197 = vunpack.c.l.s4 1966171168
    %v198 = vunpack.c.0.s8 %v197
    %v199 = vlaneseq
    %v200 = vshrl.u32 %v199, 7
    %v201 = vsub.s32 %v198, %v200
    %v202 = vrot.slane %v180, %v201
    %v204 = vunpack.c.l.s4 1966171168
    %v205 = vunpack.c.0.s8 %v204
    %v206 = vlaneseq
    %v207 = vshrl.u32 %v206, 7
    %v208 = vsub.s32 %v205, %v207
    %v209 = vrot.slane %v181, %v208
    %v210 = vcombine.high %v188, %v188
    %v211 = vcombine.high %v195, %v195
    %v212 = vcombine.high %v202, %v202
    %v213 = vcombine.high %v209, %v209
    %v350 = vunpack.c.l.b16 %v28
    %v351 = vunpack.c.l.b16 %v29
    %v352 = vunpack.c.l.b16 %v30
    %v353 = vunpack.c.l.b16 %v31
    %v354 = vunpack.c.l.b16 %v32
    %v355 = vunpack.c.l.b16 %v33
    %v356 = vunpack.c.l.b16 %v34
    %v357 = vunpack.c.l.b16 %v35
    %v358 = vunpack.c.l.b16 %v36
    %v359 = vunpack.c.l.b16 %v37
    %v360 = vunpack.c.l.b16 %v38
    %v361 = vunpack.c.l.b16 %v39
    %v362 = vunpack.c.l.b16 %v40
    %v363 = vunpack.c.l.b16 %v41
    %v364 = vunpack.c.l.b16 %v42
    %v365 = vunpack.c.l.b16 %v43
    %v366 = vunpack.c.l.b16 %v44
    %v367 = vunpack.c.l.b16 %v45
    %v368 = vunpack.c.l.b16 %v46
    %v369 = vunpack.c.l.b16 %v47
    %v370 = vunpack.c.l.b16 %v48
    %v371 = vunpack.c.l.b16 %v49
    %v372 = vunpack.c.l.b16 %v50
    %v373 = vunpack.c.l.b16 %v51
    %v374 = vunpack.c.l.b16 %v52
    %v375 = vunpack.c.l.b16 %v53
    %v376 = vunpack.c.l.b16 %v54
    %v377 = vunpack.c.l.b16 %v55
    %v378 = vunpack.c.l.b16 %v56
    %v379 = vunpack.c.l.b16 %v57
    %v380 = vunpack.c.l.b16 %v58
    %v381 = vunpack.c.l.b16 %v59
    %v382 = vunpack.c.l.b16 %v60
    %v383 = vunpack.c.l.b16 %v61
    %v384 = vunpack.c.l.b16 %v62
    %v385 = vunpack.c.l.b16 %v63
    %v386 = vunpack.c.l.b16 %v64
    %v387 = vunpack.c.l.b16 %v65
    %v388 = vunpack.c.l.b16 %v66
    %v389 = vunpack.c.l.b16 %v67
    %v390 = vunpack.c.l.b16 %v68
    %v391 = vunpack.c.l.b16 %v69
    %v392 = vunpack.c.l.b16 %v70
    %v393 = vunpack.c.l.b16 %v71
    %v394 = vunpack.c.l.b16 %v72
    %v395 = vunpack.c.l.b16 %v73
    %v396 = vunpack.c.l.b16 %v74
    %v397 = vunpack.c.l.b16 %v75
    %v398 = vunpack.c.l.b16 %v76
    %v399 = vunpack.c.l.b16 %v77
    %v400 = vunpack.c.l.b16 %v78
    %v401 = vunpack.c.l.b16 %v79
    %v402 = vunpack.c.l.b16 %v80
    %v403 = vunpack.c.l.b16 %v81
    %v404 = vunpack.c.l.b16 %v82
    %v405 = vunpack.c.l.b16 %v83
    %v406 = vunpack.c.l.b16 %v84
    %v407 = vunpack.c.l.b16 %v85
    %v408 = vunpack.c.l.b16 %v86
    %v409 = vunpack.c.l.b16 %v87
    %v410 = vunpack.c.l.b16 %v88
    %v411 = vunpack.c.l.b16 %v89
    %v412 = vunpack.c.l.b16 %v90
    %v413 = vunpack.c.l.b16 %v91
    %v414 = vunpack.c.l.b16 %v92
    %v415 = vunpack.c.l.b16 %v93
    %v416 = vunpack.c.l.b16 %v94
    %v417 = vunpack.c.l.b16 %v95
    %v418 = vunpack.c.l.b16 %v96
    %v419 = vunpack.c.l.b16 %v97
    %v420 = vunpack.c.l.b16 %v98
    %v421 = vunpack.c.l.b16 %v99
    %v422 = vunpack.c.l.b16 %v100
    %v423 = vunpack.c.l.b16 %v101
    %v424 = vunpack.c.l.b16 %v102
    %v425 = vunpack.c.l.b16 %v103
    %v426 = vunpack.c.l.b16 %v104
    %v427 = vunpack.c.l.b16 %v105
    %v428 = vunpack.c.l.b16 %v106
    %v429 = vunpack.c.l.b16 %v107
    %v430 = vunpack.c.l.b16 %v108
    %v431 = vunpack.c.l.b16 %v109
    %v432 = vunpack.c.l.b16 %v110
    %v433 = vunpack.c.l.b16 %v111
    %v434 = vunpack.c.l.b16 %v112
    %v435 = vunpack.c.l.b16 %v113
    %v436 = vunpack.c.l.b16 %v114
    %v437 = vunpack.c.l.b16 %v115
    %v438 = vunpack.c.l.b16 %v116
    %v439 = vunpack.c.l.b16 %v117
    %v440 = vunpack.c.l.b16 %v118
    %v441 = vunpack.c.l.b16 %v119
    %v442 = vunpack.c.l.b16 %v120
    %v443 = vunpack.c.l.b16 %v121
    %v444 = vunpack.c.l.b16 %v122
    %v445 = vunpack.c.l.b16 %v123
    %v446 = vunpack.c.l.b16 %v124
    %v447 = vunpack.c.l.b16 %v125
    %v448 = vunpack.c.l.b16 %v126
    %v449 = vunpack.c.l.b16 %v127
    %v450 = vunpack.c.l.b16 %v128
    %v451 = vunpack.c.l.b16 %v129
    %v452 = vunpack.c.l.b16 %v130
    %v453 = vunpack.c.l.b16 %v131
    %v454 = vunpack.c.l.b16 %v132
    %v455 = vunpack.c.l.b16 %v133
    %v456 = vunpack.c.l.b16 %v134
    %v457 = vunpack.c.l.b16 %v135
    %v458 = vunpack.c.l.b16 %v136
    %v459 = vunpack.c.l.b16 %v137
    %v460 = vunpack.c.l.b16 %v138
    %v461 = vunpack.c.l.b16 %v139
    %v462 = vunpack.c.l.b16 %v140
    %v463 = vunpack.c.l.b16 %v141
    %v464 = vunpack.c.l.b16 %v142
    %v465 = vunpack.c.l.b16 %v143
    %v466 = vunpack.c.l.b16 %v144
    %v467 = vunpack.c.l.b16 %v145
    %v468 = vunpack.c.l.b16 %v146
    %v469 = vunpack.c.l.b16 %v147
    %v470 = vunpack.c.l.b16 %v148
    %v471 = vunpack.c.l.b16 %v149
    %v472 = vunpack.c.l.b16 %v150
    %v473 = vunpack.c.l.b16 %v151
    %v474 = vunpack.c.l.b16 %v152
    %v475 = vunpack.c.l.b16 %v153
    %v476 = vunpack.c.l.b16 %v154
    %v477 = vunpack.c.l.b16 %v155
    %v478 = vpack.c.b16 %v351, %v350
    %v479 = vpack.c.b16 %v353, %v352
    %v480 = vpack.c.b16 %v355, %v354
    %v481 = vpack.c.b16 %v357, %v356
    %v482 = vpack.c.b16 %v359, %v358
    %v483 = vpack.c.b16 %v361, %v360
    %v484 = vpack.c.b16 %v363, %v362
    %v485 = vpack.c.b16 %v365, %v364
    %v486 = vpack.c.b16 %v367, %v366
    %v487 = vpack.c.b16 %v369, %v368
    %v488 = vpack.c.b16 %v371, %v370
    %v489 = vpack.c.b16 %v373, %v372
    %v490 = vpack.c.b16 %v375, %v374
    %v491 = vpack.c.b16 %v377, %v376
    %v492 = vpack.c.b16 %v379, %v378
    %v493 = vpack.c.b16 %v381, %v380
    %v494 = vpack.c.b16 %v383, %v382
    %v495 = vpack.c.b16 %v385, %v384
    %v496 = vpack.c.b16 %v387, %v386
    %v497 = vpack.c.b16 %v389, %v388
    %v498 = vpack.c.b16 %v391, %v390
    %v499 = vpack.c.b16 %v393, %v392
    %v500 = vpack.c.b16 %v395, %v394
    %v501 = vpack.c.b16 %v397, %v396
    %v502 = vpack.c.b16 %v399, %v398
    %v503 = vpack.c.b16 %v401, %v400
    %v504 = vpack.c.b16 %v403, %v402
    %v505 = vpack.c.b16 %v405, %v404
    %v506 = vpack.c.b16 %v407, %v406
    %v507 = vpack.c.b16 %v409, %v408
    %v508 = vpack.c.b16 %v411, %v410
    %v509 = vpack.c.b16 %v413, %v412
    %v510 = vpack.c.b16 %v415, %v414
    %v511 = vpack.c.b16 %v417, %v416
    %v512 = vpack.c.b16 %v419, %v418
    %v513 = vpack.c.b16 %v421, %v420
    %v514 = vpack.c.b16 %v423, %v422
    %v515 = vpack.c.b16 %v425, %v424
    %v516 = vpack.c.b16 %v427, %v426
    %v517 = vpack.c.b16 %v429, %v428
    %v518 = vpack.c.b16 %v431, %v430
    %v519 = vpack.c.b16 %v433, %v432
    %v520 = vpack.c.b16 %v435, %v434
    %v521 = vpack.c.b16 %v437, %v436
    %v522 = vpack.c.b16 %v439, %v438
    %v523 = vpack.c.b16 %v441, %v440
    %v524 = vpack.c.b16 %v443, %v442
    %v525 = vpack.c.b16 %v445, %v444
    %v526 = vpack.c.b16 %v447, %v446
    %v527 = vpack.c.b16 %v449, %v448
    %v528 = vpack.c.b16 %v451, %v450
    %v529 = vpack.c.b16 %v453, %v452
    %v530 = vpack.c.b16 %v455, %v454
    %v531 = vpack.c.b16 %v457, %v456
    %v532 = vpack.c.b16 %v459, %v458
    %v533 = vpack.c.b16 %v461, %v460
    %v534 = vpack.c.b16 %v463, %v462
    %v535 = vpack.c.b16 %v465, %v464
    %v536 = vpack.c.b16 %v467, %v466
    %v537 = vpack.c.b16 %v469, %v468
    %v538 = vpack.c.b16 %v471, %v470
    %v539 = vpack.c.b16 %v473, %v472
    %v540 = vpack.c.b16 %v475, %v474
    %v541 = vpack.c.b16 %v477, %v476
    %606 = vmatprep.subr.bf16.mxu0 0
    %607 = vmatpush1.bf16.msra.mxu0 %v485
    %608 = vmatprep.subr.bf16.mxu0 0
    %609 = vmatpush1.bf16.msra.mxu0 %v484
    %610 = vmatprep.subr.bf16.mxu0 0
    %611 = vmatpush1.bf16.msra.mxu0 %v483
    %612 = vmatprep.subr.bf16.mxu0 0
    %613 = vmatpush1.bf16.msra.mxu0 %v482
    %614 = vmatprep.subr.bf16.mxu0 0
    %615 = vmatpush1.bf16.msra.mxu0 %v481
    %616 = vmatprep.subr.bf16.mxu0 0
    %617 = vmatpush1.bf16.msra.mxu0 %v480
    %618 = vmatprep.subr.bf16.mxu0 0
    %619 = vmatpush1.bf16.msra.mxu0 %v479
    %620 = vmatprep.subr.bf16.mxu0 0
    %621 = vmatpush1.bf16.msra.mxu0 %v478
    %622 = vmatprep.subr.bf16.mxu0 0
    %623 = vmatpush2.bf16.msra.mxu0 %v493
    %624 = vmatprep.subr.bf16.mxu0 0
    %625 = vmatpush2.bf16.msra.mxu0 %v492
    %626 = vmatprep.subr.bf16.mxu0 0
    %627 = vmatpush2.bf16.msra.mxu0 %v491
    %628 = vmatprep.subr.bf16.mxu0 0
    %629 = vmatpush2.bf16.msra.mxu0 %v490
    %630 = vmatprep.subr.bf16.mxu0 0
    %631 = vmatpush2.bf16.msra.mxu0 %v489
    %632 = vmatprep.subr.bf16.mxu0 0
    %633 = vmatpush2.bf16.msra.mxu0 %v488
    %634 = vmatprep.subr.bf16.mxu0 0
    %635 = vmatpush2.bf16.msra.mxu0 %v487
    %636 = vmatprep.subr.bf16.mxu0 0
    %637 = vmatpush2.bf16.msra.mxu0 %v486
    %638 = vmatprep.mubr.bf16.mxu0 %v202
    %639 = vmatmul.mubr.bf16.gmra.mxu0 %v188
    %v640 = vpop.f32.mrf.mxu0
    %v641 = vadd.f32 %v162, %v640
    %v642 = vpop.f32.mrf.mxu0
    %v643 = vpop.f32.mrf.mxu0
    %v644 = vpop.f32.mrf.mxu0
    %645 = vdwg.mxu0
    %646 = vmatprep.subr.bf16.mxu0 0
    %647 = vmatpush1.bf16.msra.mxu0 %v501
    %648 = vmatprep.subr.bf16.mxu0 0
    %649 = vmatpush1.bf16.msra.mxu0 %v500
    %650 = vmatprep.subr.bf16.mxu0 0
    %651 = vmatpush1.bf16.msra.mxu0 %v499
    %652 = vmatprep.subr.bf16.mxu0 0
    %653 = vmatpush1.bf16.msra.mxu0 %v498
    %654 = vmatprep.subr.bf16.mxu0 0
    %655 = vmatpush1.bf16.msra.mxu0 %v497
    %656 = vmatprep.subr.bf16.mxu0 0
    %657 = vmatpush1.bf16.msra.mxu0 %v496
    %658 = vmatprep.subr.bf16.mxu0 0
    %659 = vmatpush1.bf16.msra.mxu0 %v495
    %660 = vmatprep.subr.bf16.mxu0 0
    %661 = vmatpush1.bf16.msra.mxu0 %v494
    %662 = vmatprep.subr.bf16.mxu0 0
    %663 = vmatpush2.bf16.msra.mxu0 %v509
    %664 = vmatprep.subr.bf16.mxu0 0
    %665 = vmatpush2.bf16.msra.mxu0 %v508
    %666 = vmatprep.subr.bf16.mxu0 0
    %667 = vmatpush2.bf16.msra.mxu0 %v507
    %668 = vmatprep.subr.bf16.mxu0 0
    %669 = vmatpush2.bf16.msra.mxu0 %v506
    %670 = vmatprep.subr.bf16.mxu0 0
    %671 = vmatpush2.bf16.msra.mxu0 %v505
    %672 = vmatprep.subr.bf16.mxu0 0
    %673 = vmatpush2.bf16.msra.mxu0 %v504
    %674 = vmatprep.subr.bf16.mxu0 0
    %675 = vmatpush2.bf16.msra.mxu0 %v503
    %676 = vmatprep.subr.bf16.mxu0 0
    %677 = vmatpush2.bf16.msra.mxu0 %v502
    %678 = vmatprep.mubr.bf16.mxu0 %v212
    %679 = vmatmul.mubr.bf16.gmra.mxu0 %v210
    %v680 = vpop.f32.mrf.mxu0
    %v681 = vadd.f32 %v641, %v680
    %v682 = vpop.f32.mrf.mxu0
    %v683 = vpop.f32.mrf.mxu0
    %v684 = vpop.f32.mrf.mxu0
    %685 = vdwg.mxu0
    %686 = vmatprep.subr.bf16.mxu0 0
    %687 = vmatpush1.bf16.msra.mxu0 %v517
    %688 = vmatprep.subr.bf16.mxu0 0
    %689 = vmatpush1.bf16.msra.mxu0 %v516
    %690 = vmatprep.subr.bf16.mxu0 0
    %691 = vmatpush1.bf16.msra.mxu0 %v515
    %692 = vmatprep.subr.bf16.mxu0 0
    %693 = vmatpush1.bf16.msra.mxu0 %v514
    %694 = vmatprep.subr.bf16.mxu0 0
    %695 = vmatpush1.bf16.msra.mxu0 %v513
    %696 = vmatprep.subr.bf16.mxu0 0
    %697 = vmatpush1.bf16.msra.mxu0 %v512
    %698 = vmatprep.subr.bf16.mxu0 0
    %699 = vmatpush1.bf16.msra.mxu0 %v511
    %700 = vmatprep.subr.bf16.mxu0 0
    %701 = vmatpush1.bf16.msra.mxu0 %v510
    %702 = vmatprep.subr.bf16.mxu0 0
    %703 = vmatpush2.bf16.msra.mxu0 %v525
    %704 = vmatprep.subr.bf16.mxu0 0
    %705 = vmatpush2.bf16.msra.mxu0 %v524
    %706 = vmatprep.subr.bf16.mxu0 0
    %707 = vmatpush2.bf16.msra.mxu0 %v523
    %708 = vmatprep.subr.bf16.mxu0 0
    %709 = vmatpush2.bf16.msra.mxu0 %v522
    %710 = vmatprep.subr.bf16.mxu0 0
    %711 = vmatpush2.bf16.msra.mxu0 %v521
    %712 = vmatprep.subr.bf16.mxu0 0
    %713 = vmatpush2.bf16.msra.mxu0 %v520
    %714 = vmatprep.subr.bf16.mxu0 0
    %715 = vmatpush2.bf16.msra.mxu0 %v519
    %716 = vmatprep.subr.bf16.mxu0 0
    %717 = vmatpush2.bf16.msra.mxu0 %v518
    %718 = vmatprep.mubr.bf16.mxu0 %v209
    %719 = vmatmul.mubr.bf16.gmra.mxu0 %v195
    %v720 = vpop.f32.mrf.mxu0
    %v721 = vadd.f32 %v681, %v720
    %v722 = vpop.f32.mrf.mxu0
    %v723 = vpop.f32.mrf.mxu0
    %v724 = vpop.f32.mrf.mxu0
    %725 = vdwg.mxu0
    %726 = vmatprep.subr.bf16.mxu0 0
    %727 = vmatpush1.bf16.msra.mxu0 %v533
    %728 = vmatprep.subr.bf16.mxu0 0
    %729 = vmatpush1.bf16.msra.mxu0 %v532
    %730 = vmatprep.subr.bf16.mxu0 0
    %731 = vmatpush1.bf16.msra.mxu0 %v531
    %732 = vmatprep.subr.bf16.mxu0 0
    %733 = vmatpush1.bf16.msra.mxu0 %v530
    %734 = vmatprep.subr.bf16.mxu0 0
    %735 = vmatpush1.bf16.msra.mxu0 %v529
    %736 = vmatprep.subr.bf16.mxu0 0
    %737 = vmatpush1.bf16.msra.mxu0 %v528
    %738 = vmatprep.subr.bf16.mxu0 0
    %739 = vmatpush1.bf16.msra.mxu0 %v527
    %740 = vmatprep.subr.bf16.mxu0 0
    %741 = vmatpush1.bf16.msra.mxu0 %v526
    %742 = vmatprep.subr.bf16.mxu0 0
    %743 = vmatpush2.bf16.msra.mxu0 %v541
    %744 = vmatprep.subr.bf16.mxu0 0
    %745 = vmatpush2.bf16.msra.mxu0 %v540
    %746 = vmatprep.subr.bf16.mxu0 0
    %747 = vmatpush2.bf16.msra.mxu0 %v539
    %748 = vmatprep.subr.bf16.mxu0 0
    %749 = vmatpush2.bf16.msra.mxu0 %v538
    %750 = vmatprep.subr.bf16.mxu0 0
    %751 = vmatpush2.bf16.msra.mxu0 %v537
    %752 = vmatprep.subr.bf16.mxu0 0
    %753 = vmatpush2.bf16.msra.mxu0 %v536
    %754 = vmatprep.subr.bf16.mxu0 0
    %755 = vmatpush2.bf16.msra.mxu0 %v535
    %756 = vmatprep.subr.bf16.mxu0 0
    %757 = vmatpush2.bf16.msra.mxu0 %v534
    %758 = vmatprep.mubr.bf16.mxu0 %v213
    %759 = vmatmul.mubr.bf16.gmra.mxu0 %v211
    %v760 = vpop.f32.mrf.mxu0
    %v761 = vadd.f32 %v721, %v760
    %v762 = vpop.f32.mrf.mxu0
    %v763 = vpop.f32.mrf.mxu0
    %v764 = vpop.f32.mrf.mxu0
    %765 = vdwg.mxu0
    %v766 = vmax.f32 %v761, 0.0
    %v767 = vpack.c.bf16 %v766, %v766
    %v768 = vld [vmem:[%s3] sm:$0xf]
    %v769 = vld [vmem:[%s3 + $0x4] sm:$0xf]
    %v770 = vld [vmem:[%s3 + $0x8] sm:$0xf]
    %v771 = vld [vmem:[%s3 + $0xc] sm:$0xf]
    %v772 = vld [vmem:[%s3 + $0x10] sm:$0xf]
    %v773 = vld [vmem:[%s3 + $0x14] sm:$0xf]
    %v774 = vld [vmem:[%s3 + $0x18] sm:$0xf]
    %v775 = vld [vmem:[%s3 + $0x1c] sm:$0xf]
    %s776 = scalar_lea.vmem %s0, 8
    %v777 = vld [vmem:[%s776] sm:$0xff]
    %v779 = vcombine.high %v777, %v777
    %v781 = vunpack.c.l.s4 1966171168
    %v782 = vunpack.c.0.s8 %v781
    %v783 = vlaneseq
    %v784 = vshrl.u32 %v783, 7
    %v785 = vsub.s32 %v782, %v784
    %v786 = vrot.slane %v777, %v785
    %v788 = vunpack.c.l.s4 1966171168
    %v789 = vunpack.c.0.s8 %v788
    %v790 = vlaneseq
    %v791 = vshrl.u32 %v790, 7
    %v792 = vsub.s32 %v789, %v791
    %v793 = vrot.slane %v779, %v792
    %v794 = vcombine.high %v786, %v786
    %v795 = vcombine.high %v793, %v793
    %v797 = vunpack.c.l.s4 1966171168
    %v798 = vunpack.c.0.s8 %v797
    %v799 = vlaneseq
    %v800 = vshrl.u32 %v799, 7
    %v801 = vsub.s32 %v798, %v800
    %v802 = vrot.slane %v786, %v801
    %v804 = vunpack.c.l.s4 1966171168
    %v805 = vunpack.c.0.s8 %v804
    %v806 = vlaneseq
    %v807 = vshrl.u32 %v806, 7
    %v808 = vsub.s32 %v805, %v807
    %v809 = vrot.slane %v793, %v808
    %v811 = vunpack.c.l.s4 1966171168
    %v812 = vunpack.c.0.s8 %v811
    %v813 = vlaneseq
    %v814 = vshrl.u32 %v813, 7
    %v815 = vsub.s32 %v812, %v814
    %v816 = vrot.slane %v794, %v815
    %v818 = vunpack.c.l.s4 1966171168
    %v819 = vunpack.c.0.s8 %v818
    %v820 = vlaneseq
    %v821 = vshrl.u32 %v820, 7
    %v822 = vsub.s32 %v819, %v821
    %v823 = vrot.slane %v795, %v822
    %v824 = vcombine.high %v802, %v802
    %v825 = vcombine.high %v809, %v809
    %v826 = vcombine.high %v816, %v816
    %v827 = vcombine.high %v823, %v823
    %836 = vmatprep.subr.bf16.mxu0 0
    %837 = vmatpush1.bf16.msra.mxu0 %v485
    %838 = vmatprep.subr.bf16.mxu0 0
    %839 = vmatpush1.bf16.msra.mxu0 %v484
    %840 = vmatprep.subr.bf16.mxu0 0
    %841 = vmatpush1.bf16.msra.mxu0 %v483
    %842 = vmatprep.subr.bf16.mxu0 0
    %843 = vmatpush1.bf16.msra.mxu0 %v482
    %844 = vmatprep.subr.bf16.mxu0 0
    %845 = vmatpush1.bf16.msra.mxu0 %v481
    %846 = vmatprep.subr.bf16.mxu0 0
    %847 = vmatpush1.bf16.msra.mxu0 %v480
    %848 = vmatprep.subr.bf16.mxu0 0
    %849 = vmatpush1.bf16.msra.mxu0 %v479
    %850 = vmatprep.subr.bf16.mxu0 0
    %851 = vmatpush1.bf16.msra.mxu0 %v478
    %852 = vmatprep.subr.bf16.mxu0 0
    %853 = vmatpush2.bf16.msra.mxu0 %v493
    %854 = vmatprep.subr.bf16.mxu0 0
    %855 = vmatpush2.bf16.msra.mxu0 %v492
    %856 = vmatprep.subr.bf16.mxu0 0
    %857 = vmatpush2.bf16.msra.mxu0 %v491
    %858 = vmatprep.subr.bf16.mxu0 0
    %859 = vmatpush2.bf16.msra.mxu0 %v490
    %860 = vmatprep.subr.bf16.mxu0 0
    %861 = vmatpush2.bf16.msra.mxu0 %v489
    %862 = vmatprep.subr.bf16.mxu0 0
    %863 = vmatpush2.bf16.msra.mxu0 %v488
    %864 = vmatprep.subr.bf16.mxu0 0
    %865 = vmatpush2.bf16.msra.mxu0 %v487
    %866 = vmatprep.subr.bf16.mxu0 0
    %867 = vmatpush2.bf16.msra.mxu0 %v486
    %868 = vmatprep.mubr.bf16.mxu0 %v816
    %869 = vmatmul.mubr.bf16.gmra.mxu0 %v802
    %v870 = vpop.f32.mrf.mxu0
    %v871 = vadd.f32 %v162, %v870
    %v872 = vpop.f32.mrf.mxu0
    %v873 = vpop.f32.mrf.mxu0
    %v874 = vpop.f32.mrf.mxu0
    %875 = vdwg.mxu0
    %876 = vmatprep.subr.bf16.mxu0 0
    %877 = vmatpush1.bf16.msra.mxu0 %v501
    %878 = vmatprep.subr.bf16.mxu0 0
    %879 = vmatpush1.bf16.msra.mxu0 %v500
    %880 = vmatprep.subr.bf16.mxu0 0
    %881 = vmatpush1.bf16.msra.mxu0 %v499
    %882 = vmatprep.subr.bf16.mxu0 0
    %883 = vmatpush1.bf16.msra.mxu0 %v498
    %884 = vmatprep.subr.bf16.mxu0 0
    %885 = vmatpush1.bf16.msra.mxu0 %v497
    %886 = vmatprep.subr.bf16.mxu0 0
    %887 = vmatpush1.bf16.msra.mxu0 %v496
    %888 = vmatprep.subr.bf16.mxu0 0
    %889 = vmatpush1.bf16.msra.mxu0 %v495
    %890 = vmatprep.subr.bf16.mxu0 0
    %891 = vmatpush1.bf16.msra.mxu0 %v494
    %892 = vmatprep.subr.bf16.mxu0 0
    %893 = vmatpush2.bf16.msra.mxu0 %v509
    %894 = vmatprep.subr.bf16.mxu0 0
    %895 = vmatpush2.bf16.msra.mxu0 %v508
    %896 = vmatprep.subr.bf16.mxu0 0
    %897 = vmatpush2.bf16.msra.mxu0 %v507
    %898 = vmatprep.subr.bf16.mxu0 0
    %899 = vmatpush2.bf16.msra.mxu0 %v506
    %900 = vmatprep.subr.bf16.mxu0 0
    %901 = vmatpush2.bf16.msra.mxu0 %v505
    %902 = vmatprep.subr.bf16.mxu0 0
    %903 = vmatpush2.bf16.msra.mxu0 %v504
    %904 = vmatprep.subr.bf16.mxu0 0
    %905 = vmatpush2.bf16.msra.mxu0 %v503
    %906 = vmatprep.subr.bf16.mxu0 0
    %907 = vmatpush2.bf16.msra.mxu0 %v502
    %908 = vmatprep.mubr.bf16.mxu0 %v826
    %909 = vmatmul.mubr.bf16.gmra.mxu0 %v824
    %v910 = vpop.f32.mrf.mxu0
    %v911 = vadd.f32 %v871, %v910
    %v912 = vpop.f32.mrf.mxu0
    %v913 = vpop.f32.mrf.mxu0
    %v914 = vpop.f32.mrf.mxu0
    %915 = vdwg.mxu0
    %916 = vmatprep.subr.bf16.mxu0 0
    %917 = vmatpush1.bf16.msra.mxu0 %v517
    %918 = vmatprep.subr.bf16.mxu0 0
    %919 = vmatpush1.bf16.msra.mxu0 %v516
    %920 = vmatprep.subr.bf16.mxu0 0
    %921 = vmatpush1.bf16.msra.mxu0 %v515
    %922 = vmatprep.subr.bf16.mxu0 0
    %923 = vmatpush1.bf16.msra.mxu0 %v514
    %924 = vmatprep.subr.bf16.mxu0 0
    %925 = vmatpush1.bf16.msra.mxu0 %v513
    %926 = vmatprep.subr.bf16.mxu0 0
    %927 = vmatpush1.bf16.msra.mxu0 %v512
    %928 = vmatprep.subr.bf16.mxu0 0
    %929 = vmatpush1.bf16.msra.mxu0 %v511
    %930 = vmatprep.subr.bf16.mxu0 0
    %931 = vmatpush1.bf16.msra.mxu0 %v510
    %932 = vmatprep.subr.bf16.mxu0 0
    %933 = vmatpush2.bf16.msra.mxu0 %v525
    %934 = vmatprep.subr.bf16.mxu0 0
    %935 = vmatpush2.bf16.msra.mxu0 %v524
    %936 = vmatprep.subr.bf16.mxu0 0
    %937 = vmatpush2.bf16.msra.mxu0 %v523
    %938 = vmatprep.subr.bf16.mxu0 0
    %939 = vmatpush2.bf16.msra.mxu0 %v522
    %940 = vmatprep.subr.bf16.mxu0 0
    %941 = vmatpush2.bf16.msra.mxu0 %v521
    %942 = vmatprep.subr.bf16.mxu0 0
    %943 = vmatpush2.bf16.msra.mxu0 %v520
    %944 = vmatprep.subr.bf16.mxu0 0
    %945 = vmatpush2.bf16.msra.mxu0 %v519
    %946 = vmatprep.subr.bf16.mxu0 0
    %947 = vmatpush2.bf16.msra.mxu0 %v518
    %948 = vmatprep.mubr.bf16.mxu0 %v823
    %949 = vmatmul.mubr.bf16.gmra.mxu0 %v809
    %v950 = vpop.f32.mrf.mxu0
    %v951 = vadd.f32 %v911, %v950
    %v952 = vpop.f32.mrf.mxu0
    %v953 = vpop.f32.mrf.mxu0
    %v954 = vpop.f32.mrf.mxu0
    %955 = vdwg.mxu0
    %956 = vmatprep.subr.bf16.mxu0 0
    %957 = vmatpush1.bf16.msra.mxu0 %v533
    %958 = vmatprep.subr.bf16.mxu0 0
    %959 = vmatpush1.bf16.msra.mxu0 %v532
    %960 = vmatprep.subr.bf16.mxu0 0
    %961 = vmatpush1.bf16.msra.mxu0 %v531
    %962 = vmatprep.subr.bf16.mxu0 0
    %963 = vmatpush1.bf16.msra.mxu0 %v530
    %964 = vmatprep.subr.bf16.mxu0 0
    %965 = vmatpush1.bf16.msra.mxu0 %v529
    %966 = vmatprep.subr.bf16.mxu0 0
    %967 = vmatpush1.bf16.msra.mxu0 %v528
    %968 = vmatprep.subr.bf16.mxu0 0
    %969 = vmatpush1.bf16.msra.mxu0 %v527
    %970 = vmatprep.subr.bf16.mxu0 0
    %971 = vmatpush1.bf16.msra.mxu0 %v526
    %972 = vmatprep.subr.bf16.mxu0 0
    %973 = vmatpush2.bf16.msra.mxu0 %v541
    %974 = vmatprep.subr.bf16.mxu0 0
    %975 = vmatpush2.bf16.msra.mxu0 %v540
    %976 = vmatprep.subr.bf16.mxu0 0
    %977 = vmatpush2.bf16.msra.mxu0 %v539
    %978 = vmatprep.subr.bf16.mxu0 0
    %979 = vmatpush2.bf16.msra.mxu0 %v538
    %980 = vmatprep.subr.bf16.mxu0 0
    %981 = vmatpush2.bf16.msra.mxu0 %v537
    %982 = vmatprep.subr.bf16.mxu0 0
    %983 = vmatpush2.bf16.msra.mxu0 %v536
    %984 = vmatprep.subr.bf16.mxu0 0
    %985 = vmatpush2.bf16.msra.mxu0 %v535
    %986 = vmatprep.subr.bf16.mxu0 0
    %987 = vmatpush2.bf16.msra.mxu0 %v534
    %988 = vmatprep.mubr.bf16.mxu0 %v827
    %989 = vmatmul.mubr.bf16.gmra.mxu0 %v825
    %v990 = vpop.f32.mrf.mxu0
    %v991 = vadd.f32 %v951, %v990
    %v992 = vpop.f32.mrf.mxu0
    %v993 = vpop.f32.mrf.mxu0
    %v994 = vpop.f32.mrf.mxu0
    %995 = vdwg.mxu0
    %v996 = vmax.f32 %v991, 0.0
    %v997 = vpack.c.bf16 %v996, %v996
    %s998 = scalar_lea.vmem %s3, 32
    %v999 = vld [vmem:[%s998] sm:$0xf]
    %v1000 = vld [vmem:[%s998 + $0x4] sm:$0xf]
    %v1001 = vld [vmem:[%s998 + $0x8] sm:$0xf]
    %v1002 = vld [vmem:[%s998 + $0xc] sm:$0xf]
    %v1003 = vld [vmem:[%s998 + $0x10] sm:$0xf]
    %v1004 = vld [vmem:[%s998 + $0x14] sm:$0xf]
    %v1005 = vld [vmem:[%s998 + $0x18] sm:$0xf]
    %v1006 = vld [vmem:[%s998 + $0x1c] sm:$0xf]
    %v1015 = vunpack.c.l.b16 %v999
    %v1016 = vunpack.c.l.b16 %v1000
    %v1017 = vunpack.c.l.b16 %v1001
    %v1018 = vunpack.c.l.b16 %v1002
    %v1019 = vunpack.c.l.b16 %v1003
    %v1020 = vunpack.c.l.b16 %v1004
    %v1021 = vunpack.c.l.b16 %v1005
    %v1022 = vunpack.c.l.b16 %v1006
    %v1023 = vpack.c.b16 %v1016, %v1015
    %v1024 = vpack.c.b16 %v1018, %v1017
    %v1025 = vpack.c.b16 %v1020, %v1019
    %v1026 = vpack.c.b16 %v1022, %v1021
    %vm1031 = vcmask 523264
    %v1033 = vsel %vm1031, %v997, 0
    %1035 = vmatprep.subr.bf16.mxu0 0
    %1036 = vmatpush1.bf16.msra.mxu0 0
    %1037 = vmatprep.subr.bf16.mxu0 0
    %1038 = vmatpush1.bf16.msra.mxu0 0
    %1039 = vmatprep.subr.bf16.mxu0 0
    %1040 = vmatpush1.bf16.msra.mxu0 0
    %1041 = vmatprep.subr.bf16.mxu0 0
    %1042 = vmatpush1.bf16.msra.mxu0 0
    %1043 = vmatprep.subr.bf16.mxu0 0
    %1044 = vmatpush1.bf16.msra.mxu0 %v1026
    %1045 = vmatprep.subr.bf16.mxu0 0
    %1046 = vmatpush1.bf16.msra.mxu0 %v1025
    %1047 = vmatprep.subr.bf16.mxu0 0
    %1048 = vmatpush1.bf16.msra.mxu0 %v1024
    %1049 = vmatprep.subr.bf16.mxu0 0
    %1050 = vmatpush1.bf16.msra.mxu0 %v1023
    %1051 = vmatprep.subr.bf16.mxu0 0
    %1052 = vmatpush2.bf16.msra.mxu0 0
    %1053 = vmatprep.subr.bf16.mxu0 0
    %1054 = vmatpush2.bf16.msra.mxu0 0
    %1055 = vmatprep.subr.bf16.mxu0 0
    %1056 = vmatpush2.bf16.msra.mxu0 0
    %1057 = vmatprep.subr.bf16.mxu0 0
    %1058 = vmatpush2.bf16.msra.mxu0 0
    %1059 = vmatprep.subr.bf16.mxu0 0
    %1060 = vmatpush2.bf16.msra.mxu0 0
    %1061 = vmatprep.subr.bf16.mxu0 0
    %1062 = vmatpush2.bf16.msra.mxu0 0
    %1063 = vmatprep.subr.bf16.mxu0 0
    %1064 = vmatpush2.bf16.msra.mxu0 0
    %1065 = vmatprep.subr.bf16.mxu0 0
    %1066 = vmatpush2.bf16.msra.mxu0 0
    %1067 = vmatprep.mubr.bf16.mxu0 0
    %1068 = vmatmul.mubr.bf16.gmra.mxu0 %v1033
    %v1069 = vpop.f32.mrf.mxu0
    %v1070 = vadd.f32 0.0, %v1069
    %v1071 = vpop.f32.mrf.mxu0
    %v1072 = vpop.f32.mrf.mxu0
    %v1073 = vpop.f32.mrf.mxu0
    %1074 = vdwg.mxu0
    %v1083 = vunpack.c.l.b16 %v768
    %v1084 = vunpack.c.l.b16 %v769
    %v1085 = vunpack.c.l.b16 %v770
    %v1086 = vunpack.c.l.b16 %v771
    %v1087 = vunpack.c.l.b16 %v772
    %v1088 = vunpack.c.l.b16 %v773
    %v1089 = vunpack.c.l.b16 %v774
    %v1090 = vunpack.c.l.b16 %v775
    %v1091 = vpack.c.b16 %v1084, %v1083
    %v1092 = vpack.c.b16 %v1086, %v1085
    %v1093 = vpack.c.b16 %v1088, %v1087
    %v1094 = vpack.c.b16 %v1090, %v1089
    %v1100 = vsel %vm1031, %v767, 0
    %1102 = vmatprep.subr.bf16.mxu0 0
    %1103 = vmatpush1.bf16.msra.mxu0 0
    %1104 = vmatprep.subr.bf16.mxu0 0
    %1105 = vmatpush1.bf16.msra.mxu0 0
    %1106 = vmatprep.subr.bf16.mxu0 0
    %1107 = vmatpush1.bf16.msra.mxu0 0
    %1108 = vmatprep.subr.bf16.mxu0 0
    %1109 = vmatpush1.bf16.msra.mxu0 0
    %1110 = vmatprep.subr.bf16.mxu0 0
    %1111 = vmatpush1.bf16.msra.mxu0 %v1094
    %1112 = vmatprep.subr.bf16.mxu0 0
    %1113 = vmatpush1.bf16.msra.mxu0 %v1093
    %1114 = vmatprep.subr.bf16.mxu0 0
    %1115 = vmatpush1.bf16.msra.mxu0 %v1092
    %1116 = vmatprep.subr.bf16.mxu0 0
    %1117 = vmatpush1.bf16.msra.mxu0 %v1091
    %1118 = vmatprep.subr.bf16.mxu0 0
    %1119 = vmatpush2.bf16.msra.mxu0 0
    %1120 = vmatprep.subr.bf16.mxu0 0
    %1121 = vmatpush2.bf16.msra.mxu0 0
    %1122 = vmatprep.subr.bf16.mxu0 0
    %1123 = vmatpush2.bf16.msra.mxu0 0
    %1124 = vmatprep.subr.bf16.mxu0 0
    %1125 = vmatpush2.bf16.msra.mxu0 0
    %1126 = vmatprep.subr.bf16.mxu0 0
    %1127 = vmatpush2.bf16.msra.mxu0 0
    %1128 = vmatprep.subr.bf16.mxu0 0
    %1129 = vmatpush2.bf16.msra.mxu0 0
    %1130 = vmatprep.subr.bf16.mxu0 0
    %1131 = vmatpush2.bf16.msra.mxu0 0
    %1132 = vmatprep.subr.bf16.mxu0 0
    %1133 = vmatpush2.bf16.msra.mxu0 0
    %1134 = vmatprep.mubr.bf16.mxu0 0
    %1135 = vmatmul.mubr.bf16.gmra.mxu0 %v1100
    %v1136 = vpop.f32.mrf.mxu0
    %v1137 = vadd.f32 %v1070, %v1136
    %v1138 = vpop.f32.mrf.mxu0
    %v1139 = vpop.f32.mrf.mxu0
    %v1140 = vpop.f32.mrf.mxu0
    %1141 = vdwg.mxu0
    %s1142 = scalar_lea.vmem %s0, 16
    %v1143 = vld [vmem:[%s1142] sm:$0xff]
    %v1145 = vcombine.high %v1143, %v1143
    %v1147 = vunpack.c.l.s4 1966171168
    %v1148 = vunpack.c.0.s8 %v1147
    %v1149 = vlaneseq
    %v1150 = vshrl.u32 %v1149, 7
    %v1151 = vsub.s32 %v1148, %v1150
    %v1152 = vrot.slane %v1143, %v1151
    %v1154 = vunpack.c.l.s4 1966171168
    %v1155 = vunpack.c.0.s8 %v1154
    %v1156 = vlaneseq
    %v1157 = vshrl.u32 %v1156, 7
    %v1158 = vsub.s32 %v1155, %v1157
    %v1159 = vrot.slane %v1145, %v1158
    %v1160 = vcombine.high %v1152, %v1152
    %v1161 = vcombine.high %v1159, %v1159
    %v1163 = vunpack.c.l.s4 1966171168
    %v1164 = vunpack.c.0.s8 %v1163
    %v1165 = vlaneseq
    %v1166 = vshrl.u32 %v1165, 7
    %v1167 = vsub.s32 %v1164, %v1166
    %v1168 = vrot.slane %v1152, %v1167
    %v1170 = vunpack.c.l.s4 1966171168
    %v1171 = vunpack.c.0.s8 %v1170
    %v1172 = vlaneseq
    %v1173 = vshrl.u32 %v1172, 7
    %v1174 = vsub.s32 %v1171, %v1173
    %v1175 = vrot.slane %v1159, %v1174
    %v1177 = vunpack.c.l.s4 1966171168
    %v1178 = vunpack.c.0.s8 %v1177
    %v1179 = vlaneseq
    %v1180 = vshrl.u32 %v1179, 7
    %v1181 = vsub.s32 %v1178, %v1180
    %v1182 = vrot.slane %v1160, %v1181
    %v1184 = vunpack.c.l.s4 1966171168
    %v1185 = vunpack.c.0.s8 %v1184
    %v1186 = vlaneseq
    %v1187 = vshrl.u32 %v1186, 7
    %v1188 = vsub.s32 %v1185, %v1187
    %v1189 = vrot.slane %v1161, %v1188
    %v1190 = vcombine.high %v1168, %v1168
    %v1191 = vcombine.high %v1175, %v1175
    %v1192 = vcombine.high %v1182, %v1182
    %v1193 = vcombine.high %v1189, %v1189
    %1202 = vmatprep.subr.bf16.mxu0 0
    %1203 = vmatpush1.bf16.msra.mxu0 %v485
    %1204 = vmatprep.subr.bf16.mxu0 0
    %1205 = vmatpush1.bf16.msra.mxu0 %v484
    %1206 = vmatprep.subr.bf16.mxu0 0
    %1207 = vmatpush1.bf16.msra.mxu0 %v483
    %1208 = vmatprep.subr.bf16.mxu0 0
    %1209 = vmatpush1.bf16.msra.mxu0 %v482
    %1210 = vmatprep.subr.bf16.mxu0 0
    %1211 = vmatpush1.bf16.msra.mxu0 %v481
    %1212 = vmatprep.subr.bf16.mxu0 0
    %1213 = vmatpush1.bf16.msra.mxu0 %v480
    %1214 = vmatprep.subr.bf16.mxu0 0
    %1215 = vmatpush1.bf16.msra.mxu0 %v479
    %1216 = vmatprep.subr.bf16.mxu0 0
    %1217 = vmatpush1.bf16.msra.mxu0 %v478
    %1218 = vmatprep.subr.bf16.mxu0 0
    %1219 = vmatpush2.bf16.msra.mxu0 %v493
    %1220 = vmatprep.subr.bf16.mxu0 0
    %1221 = vmatpush2.bf16.msra.mxu0 %v492
    %1222 = vmatprep.subr.bf16.mxu0 0
    %1223 = vmatpush2.bf16.msra.mxu0 %v491
    %1224 = vmatprep.subr.bf16.mxu0 0
    %1225 = vmatpush2.bf16.msra.mxu0 %v490
    %1226 = vmatprep.subr.bf16.mxu0 0
    %1227 = vmatpush2.bf16.msra.mxu0 %v489
    %1228 = vmatprep.subr.bf16.mxu0 0
    %1229 = vmatpush2.bf16.msra.mxu0 %v488
    %1230 = vmatprep.subr.bf16.mxu0 0
    %1231 = vmatpush2.bf16.msra.mxu0 %v487
    %1232 = vmatprep.subr.bf16.mxu0 0
    %1233 = vmatpush2.bf16.msra.mxu0 %v486
    %1234 = vmatprep.mubr.bf16.mxu0 %v1182
    %1235 = vmatmul.mubr.bf16.gmra.mxu0 %v1168
    %v1236 = vpop.f32.mrf.mxu0
    %v1237 = vadd.f32 %v162, %v1236
    %v1238 = vpop.f32.mrf.mxu0
    %v1239 = vpop.f32.mrf.mxu0
    %v1240 = vpop.f32.mrf.mxu0
    %1241 = vdwg.mxu0
    %1242 = vmatprep.subr.bf16.mxu0 0
    %1243 = vmatpush1.bf16.msra.mxu0 %v501
    %1244 = vmatprep.subr.bf16.mxu0 0
    %1245 = vmatpush1.bf16.msra.mxu0 %v500
    %1246 = vmatprep.subr.bf16.mxu0 0
    %1247 = vmatpush1.bf16.msra.mxu0 %v499
    %1248 = vmatprep.subr.bf16.mxu0 0
    %1249 = vmatpush1.bf16.msra.mxu0 %v498
    %1250 = vmatprep.subr.bf16.mxu0 0
    %1251 = vmatpush1.bf16.msra.mxu0 %v497
    %1252 = vmatprep.subr.bf16.mxu0 0
    %1253 = vmatpush1.bf16.msra.mxu0 %v496
    %1254 = vmatprep.subr.bf16.mxu0 0
    %1255 = vmatpush1.bf16.msra.mxu0 %v495
    %1256 = vmatprep.subr.bf16.mxu0 0
    %1257 = vmatpush1.bf16.msra.mxu0 %v494
    %1258 = vmatprep.subr.bf16.mxu0 0
    %1259 = vmatpush2.bf16.msra.mxu0 %v509
    %1260 = vmatprep.subr.bf16.mxu0 0
    %1261 = vmatpush2.bf16.msra.mxu0 %v508
    %1262 = vmatprep.subr.bf16.mxu0 0
    %1263 = vmatpush2.bf16.msra.mxu0 %v507
    %1264 = vmatprep.subr.bf16.mxu0 0
    %1265 = vmatpush2.bf16.msra.mxu0 %v506
    %1266 = vmatprep.subr.bf16.mxu0 0
    %1267 = vmatpush2.bf16.msra.mxu0 %v505
    %1268 = vmatprep.subr.bf16.mxu0 0
    %1269 = vmatpush2.bf16.msra.mxu0 %v504
    %1270 = vmatprep.subr.bf16.mxu0 0
    %1271 = vmatpush2.bf16.msra.mxu0 %v503
    %1272 = vmatprep.subr.bf16.mxu0 0
    %1273 = vmatpush2.bf16.msra.mxu0 %v502
    %1274 = vmatprep.mubr.bf16.mxu0 %v1192
    %1275 = vmatmul.mubr.bf16.gmra.mxu0 %v1190
    %v1276 = vpop.f32.mrf.mxu0
    %v1277 = vadd.f32 %v1237, %v1276
    %v1278 = vpop.f32.mrf.mxu0
    %v1279 = vpop.f32.mrf.mxu0
    %v1280 = vpop.f32.mrf.mxu0
    %1281 = vdwg.mxu0
    %1282 = vmatprep.subr.bf16.mxu0 0
    %1283 = vmatpush1.bf16.msra.mxu0 %v517
    %1284 = vmatprep.subr.bf16.mxu0 0
    %1285 = vmatpush1.bf16.msra.mxu0 %v516
    %1286 = vmatprep.subr.bf16.mxu0 0
    %1287 = vmatpush1.bf16.msra.mxu0 %v515
    %1288 = vmatprep.subr.bf16.mxu0 0
    %1289 = vmatpush1.bf16.msra.mxu0 %v514
    %1290 = vmatprep.subr.bf16.mxu0 0
    %1291 = vmatpush1.bf16.msra.mxu0 %v513
    %1292 = vmatprep.subr.bf16.mxu0 0
    %1293 = vmatpush1.bf16.msra.mxu0 %v512
    %1294 = vmatprep.subr.bf16.mxu0 0
    %1295 = vmatpush1.bf16.msra.mxu0 %v511
    %1296 = vmatprep.subr.bf16.mxu0 0
    %1297 = vmatpush1.bf16.msra.mxu0 %v510
    %1298 = vmatprep.subr.bf16.mxu0 0
    %1299 = vmatpush2.bf16.msra.mxu0 %v525
    %1300 = vmatprep.subr.bf16.mxu0 0
    %1301 = vmatpush2.bf16.msra.mxu0 %v524
    %1302 = vmatprep.subr.bf16.mxu0 0
    %1303 = vmatpush2.bf16.msra.mxu0 %v523
    %1304 = vmatprep.subr.bf16.mxu0 0
    %1305 = vmatpush2.bf16.msra.mxu0 %v522
    %1306 = vmatprep.subr.bf16.mxu0 0
    %1307 = vmatpush2.bf16.msra.mxu0 %v521
    %1308 = vmatprep.subr.bf16.mxu0 0
    %1309 = vmatpush2.bf16.msra.mxu0 %v520
    %1310 = vmatprep.subr.bf16.mxu0 0
    %1311 = vmatpush2.bf16.msra.mxu0 %v519
    %1312 = vmatprep.subr.bf16.mxu0 0
    %1313 = vmatpush2.bf16.msra.mxu0 %v518
    %1314 = vmatprep.mubr.bf16.mxu0 %v1189
    %1315 = vmatmul.mubr.bf16.gmra.mxu0 %v1175
    %v1316 = vpop.f32.mrf.mxu0
    %v1317 = vadd.f32 %v1277, %v1316
    %v1318 = vpop.f32.mrf.mxu0
    %v1319 = vpop.f32.mrf.mxu0
    %v1320 = vpop.f32.mrf.mxu0
    %1321 = vdwg.mxu0
    %1322 = vmatprep.subr.bf16.mxu0 0
    %1323 = vmatpush1.bf16.msra.mxu0 %v533
    %1324 = vmatprep.subr.bf16.mxu0 0
    %1325 = vmatpush1.bf16.msra.mxu0 %v532
    %1326 = vmatprep.subr.bf16.mxu0 0
    %1327 = vmatpush1.bf16.msra.mxu0 %v531
    %1328 = vmatprep.subr.bf16.mxu0 0
    %1329 = vmatpush1.bf16.msra.mxu0 %v530
    %1330 = vmatprep.subr.bf16.mxu0 0
    %1331 = vmatpush1.bf16.msra.mxu0 %v529
    %1332 = vmatprep.subr.bf16.mxu0 0
    %1333 = vmatpush1.bf16.msra.mxu0 %v528
    %1334 = vmatprep.subr.bf16.mxu0 0
    %1335 = vmatpush1.bf16.msra.mxu0 %v527
    %1336 = vmatprep.subr.bf16.mxu0 0
    %1337 = vmatpush1.bf16.msra.mxu0 %v526
    %1338 = vmatprep.subr.bf16.mxu0 0
    %1339 = vmatpush2.bf16.msra.mxu0 %v541
    %1340 = vmatprep.subr.bf16.mxu0 0
    %1341 = vmatpush2.bf16.msra.mxu0 %v540
    %1342 = vmatprep.subr.bf16.mxu0 0
    %1343 = vmatpush2.bf16.msra.mxu0 %v539
    %1344 = vmatprep.subr.bf16.mxu0 0
    %1345 = vmatpush2.bf16.msra.mxu0 %v538
    %1346 = vmatprep.subr.bf16.mxu0 0
    %1347 = vmatpush2.bf16.msra.mxu0 %v537
    %1348 = vmatprep.subr.bf16.mxu0 0
    %1349 = vmatpush2.bf16.msra.mxu0 %v536
    %1350 = vmatprep.subr.bf16.mxu0 0
    %1351 = vmatpush2.bf16.msra.mxu0 %v535
    %1352 = vmatprep.subr.bf16.mxu0 0
    %1353 = vmatpush2.bf16.msra.mxu0 %v534
    %1354 = vmatprep.mubr.bf16.mxu0 %v1193
    %1355 = vmatmul.mubr.bf16.gmra.mxu0 %v1191
    %v1356 = vpop.f32.mrf.mxu0
    %v1357 = vadd.f32 %v1317, %v1356
    %v1358 = vpop.f32.mrf.mxu0
    %v1359 = vpop.f32.mrf.mxu0
    %v1360 = vpop.f32.mrf.mxu0
    %1361 = vdwg.mxu0
    %v1362 = vmax.f32 %v1357, 0.0
    %v1363 = vpack.c.bf16 %v1362, %v1362
    %s1364 = scalar_lea.vmem %s3, 64
    %v1365 = vld [vmem:[%s1364] sm:$0xf]
    %v1366 = vld [vmem:[%s1364 + $0x4] sm:$0xf]
    %v1367 = vld [vmem:[%s1364 + $0x8] sm:$0xf]
    %v1368 = vld [vmem:[%s1364 + $0xc] sm:$0xf]
    %v1369 = vld [vmem:[%s1364 + $0x10] sm:$0xf]
    %v1370 = vld [vmem:[%s1364 + $0x14] sm:$0xf]
    %v1371 = vld [vmem:[%s1364 + $0x18] sm:$0xf]
    %v1372 = vld [vmem:[%s1364 + $0x1c] sm:$0xf]
    %v1381 = vunpack.c.l.b16 %v1365
    %v1382 = vunpack.c.l.b16 %v1366
    %v1383 = vunpack.c.l.b16 %v1367
    %v1384 = vunpack.c.l.b16 %v1368
    %v1385 = vunpack.c.l.b16 %v1369
    %v1386 = vunpack.c.l.b16 %v1370
    %v1387 = vunpack.c.l.b16 %v1371
    %v1388 = vunpack.c.l.b16 %v1372
    %v1389 = vpack.c.b16 %v1382, %v1381
    %v1390 = vpack.c.b16 %v1384, %v1383
    %v1391 = vpack.c.b16 %v1386, %v1385
    %v1392 = vpack.c.b16 %v1388, %v1387
    %v1398 = vsel %vm1031, %v1363, 0
    %1400 = vmatprep.subr.bf16.mxu0 0
    %1401 = vmatpush1.bf16.msra.mxu0 0
    %1402 = vmatprep.subr.bf16.mxu0 0
    %1403 = vmatpush1.bf16.msra.mxu0 0
    %1404 = vmatprep.subr.bf16.mxu0 0
    %1405 = vmatpush1.bf16.msra.mxu0 0
    %1406 = vmatprep.subr.bf16.mxu0 0
    %1407 = vmatpush1.bf16.msra.mxu0 0
    %1408 = vmatprep.subr.bf16.mxu0 0
    %1409 = vmatpush1.bf16.msra.mxu0 %v1392
    %1410 = vmatprep.subr.bf16.mxu0 0
    %1411 = vmatpush1.bf16.msra.mxu0 %v1391
    %1412 = vmatprep.subr.bf16.mxu0 0
    %1413 = vmatpush1.bf16.msra.mxu0 %v1390
    %1414 = vmatprep.subr.bf16.mxu0 0
    %1415 = vmatpush1.bf16.msra.mxu0 %v1389
    %1416 = vmatprep.subr.bf16.mxu0 0
    %1417 = vmatpush2.bf16.msra.mxu0 0
    %1418 = vmatprep.subr.bf16.mxu0 0
    %1419 = vmatpush2.bf16.msra.mxu0 0
    %1420 = vmatprep.subr.bf16.mxu0 0
    %1421 = vmatpush2.bf16.msra.mxu0 0
    %1422 = vmatprep.subr.bf16.mxu0 0
    %1423 = vmatpush2.bf16.msra.mxu0 0
    %1424 = vmatprep.subr.bf16.mxu0 0
    %1425 = vmatpush2.bf16.msra.mxu0 0
    %1426 = vmatprep.subr.bf16.mxu0 0
    %1427 = vmatpush2.bf16.msra.mxu0 0
    %1428 = vmatprep.subr.bf16.mxu0 0
    %1429 = vmatpush2.bf16.msra.mxu0 0
    %1430 = vmatprep.subr.bf16.mxu0 0
    %1431 = vmatpush2.bf16.msra.mxu0 0
    %1432 = vmatprep.mubr.bf16.mxu0 0
    %1433 = vmatmul.mubr.bf16.gmra.mxu0 %v1398
    %v1434 = vpop.f32.mrf.mxu0
    %v1435 = vadd.f32 0.0, %v1434
    %v1436 = vpop.f32.mrf.mxu0
    %v1437 = vpop.f32.mrf.mxu0
    %v1438 = vpop.f32.mrf.mxu0
    %1439 = vdwg.mxu0
    %v1440 = vadd.f32 %v1137, %v1435
    %s1441 = scalar_lea.vmem %s0, 24
    %v1442 = vld [vmem:[%s1441] sm:$0xff]
    %v1444 = vcombine.high %v1442, %v1442
    %v1446 = vunpack.c.l.s4 1966171168
    %v1447 = vunpack.c.0.s8 %v1446
    %v1448 = vlaneseq
    %v1449 = vshrl.u32 %v1448, 7
    %v1450 = vsub.s32 %v1447, %v1449
    %v1451 = vrot.slane %v1442, %v1450
    %v1453 = vunpack.c.l.s4 1966171168
    %v1454 = vunpack.c.0.s8 %v1453
    %v1455 = vlaneseq
    %v1456 = vshrl.u32 %v1455, 7
    %v1457 = vsub.s32 %v1454, %v1456
    %v1458 = vrot.slane %v1444, %v1457
    %v1459 = vcombine.high %v1451, %v1451
    %v1460 = vcombine.high %v1458, %v1458
    %v1462 = vunpack.c.l.s4 1966171168
    %v1463 = vunpack.c.0.s8 %v1462
    %v1464 = vlaneseq
    %v1465 = vshrl.u32 %v1464, 7
    %v1466 = vsub.s32 %v1463, %v1465
    %v1467 = vrot.slane %v1451, %v1466
    %v1469 = vunpack.c.l.s4 1966171168
    %v1470 = vunpack.c.0.s8 %v1469
    %v1471 = vlaneseq
    %v1472 = vshrl.u32 %v1471, 7
    %v1473 = vsub.s32 %v1470, %v1472
    %v1474 = vrot.slane %v1458, %v1473
    %v1476 = vunpack.c.l.s4 1966171168
    %v1477 = vunpack.c.0.s8 %v1476
    %v1478 = vlaneseq
    %v1479 = vshrl.u32 %v1478, 7
    %v1480 = vsub.s32 %v1477, %v1479
    %v1481 = vrot.slane %v1459, %v1480
    %v1483 = vunpack.c.l.s4 1966171168
    %v1484 = vunpack.c.0.s8 %v1483
    %v1485 = vlaneseq
    %v1486 = vshrl.u32 %v1485, 7
    %v1487 = vsub.s32 %v1484, %v1486
    %v1488 = vrot.slane %v1460, %v1487
    %v1489 = vcombine.high %v1467, %v1467
    %v1490 = vcombine.high %v1474, %v1474
    %v1491 = vcombine.high %v1481, %v1481
    %v1492 = vcombine.high %v1488, %v1488
    %1501 = vmatprep.subr.bf16.mxu0 0
    %1502 = vmatpush1.bf16.msra.mxu0 %v485
    %1503 = vmatprep.subr.bf16.mxu0 0
    %1504 = vmatpush1.bf16.msra.mxu0 %v484
    %1505 = vmatprep.subr.bf16.mxu0 0
    %1506 = vmatpush1.bf16.msra.mxu0 %v483
    %1507 = vmatprep.subr.bf16.mxu0 0
    %1508 = vmatpush1.bf16.msra.mxu0 %v482
    %1509 = vmatprep.subr.bf16.mxu0 0
    %1510 = vmatpush1.bf16.msra.mxu0 %v481
    %1511 = vmatprep.subr.bf16.mxu0 0
    %1512 = vmatpush1.bf16.msra.mxu0 %v480
    %1513 = vmatprep.subr.bf16.mxu0 0
    %1514 = vmatpush1.bf16.msra.mxu0 %v479
    %1515 = vmatprep.subr.bf16.mxu0 0
    %1516 = vmatpush1.bf16.msra.mxu0 %v478
    %1517 = vmatprep.subr.bf16.mxu0 0
    %1518 = vmatpush2.bf16.msra.mxu0 %v493
    %1519 = vmatprep.subr.bf16.mxu0 0
    %1520 = vmatpush2.bf16.msra.mxu0 %v492
    %1521 = vmatprep.subr.bf16.mxu0 0
    %1522 = vmatpush2.bf16.msra.mxu0 %v491
    %1523 = vmatprep.subr.bf16.mxu0 0
    %1524 = vmatpush2.bf16.msra.mxu0 %v490
    %1525 = vmatprep.subr.bf16.mxu0 0
    %1526 = vmatpush2.bf16.msra.mxu0 %v489
    %1527 = vmatprep.subr.bf16.mxu0 0
    %1528 = vmatpush2.bf16.msra.mxu0 %v488
    %1529 = vmatprep.subr.bf16.mxu0 0
    %1530 = vmatpush2.bf16.msra.mxu0 %v487
    %1531 = vmatprep.subr.bf16.mxu0 0
    %1532 = vmatpush2.bf16.msra.mxu0 %v486
    %1533 = vmatprep.mubr.bf16.mxu0 %v1481
    %1534 = vmatmul.mubr.bf16.gmra.mxu0 %v1467
    %v1535 = vpop.f32.mrf.mxu0
    %v1536 = vadd.f32 %v162, %v1535
    %v1537 = vpop.f32.mrf.mxu0
    %v1538 = vpop.f32.mrf.mxu0
    %v1539 = vpop.f32.mrf.mxu0
    %1540 = vdwg.mxu0
    %1541 = vmatprep.subr.bf16.mxu0 0
    %1542 = vmatpush1.bf16.msra.mxu0 %v501
    %1543 = vmatprep.subr.bf16.mxu0 0
    %1544 = vmatpush1.bf16.msra.mxu0 %v500
    %1545 = vmatprep.subr.bf16.mxu0 0
    %1546 = vmatpush1.bf16.msra.mxu0 %v499
    %1547 = vmatprep.subr.bf16.mxu0 0
    %1548 = vmatpush1.bf16.msra.mxu0 %v498
    %1549 = vmatprep.subr.bf16.mxu0 0
    %1550 = vmatpush1.bf16.msra.mxu0 %v497
    %1551 = vmatprep.subr.bf16.mxu0 0
    %1552 = vmatpush1.bf16.msra.mxu0 %v496
    %1553 = vmatprep.subr.bf16.mxu0 0
    %1554 = vmatpush1.bf16.msra.mxu0 %v495
    %1555 = vmatprep.subr.bf16.mxu0 0
    %1556 = vmatpush1.bf16.msra.mxu0 %v494
    %1557 = vmatprep.subr.bf16.mxu0 0
    %1558 = vmatpush2.bf16.msra.mxu0 %v509
    %1559 = vmatprep.subr.bf16.mxu0 0
    %1560 = vmatpush2.bf16.msra.mxu0 %v508
    %1561 = vmatprep.subr.bf16.mxu0 0
    %1562 = vmatpush2.bf16.msra.mxu0 %v507
    %1563 = vmatprep.subr.bf16.mxu0 0
    %1564 = vmatpush2.bf16.msra.mxu0 %v506
    %1565 = vmatprep.subr.bf16.mxu0 0
    %1566 = vmatpush2.bf16.msra.mxu0 %v505
    %1567 = vmatprep.subr.bf16.mxu0 0
    %1568 = vmatpush2.bf16.msra.mxu0 %v504
    %1569 = vmatprep.subr.bf16.mxu0 0
    %1570 = vmatpush2.bf16.msra.mxu0 %v503
    %1571 = vmatprep.subr.bf16.mxu0 0
    %1572 = vmatpush2.bf16.msra.mxu0 %v502
    %1573 = vmatprep.mubr.bf16.mxu0 %v1491
    %1574 = vmatmul.mubr.bf16.gmra.mxu0 %v1489
    %v1575 = vpop.f32.mrf.mxu0
    %v1576 = vadd.f32 %v1536, %v1575
    %v1577 = vpop.f32.mrf.mxu0
    %v1578 = vpop.f32.mrf.mxu0
    %v1579 = vpop.f32.mrf.mxu0
    %1580 = vdwg.mxu0
    %1581 = vmatprep.subr.bf16.mxu0 0
    %1582 = vmatpush1.bf16.msra.mxu0 %v517
    %1583 = vmatprep.subr.bf16.mxu0 0
    %1584 = vmatpush1.bf16.msra.mxu0 %v516
    %1585 = vmatprep.subr.bf16.mxu0 0
    %1586 = vmatpush1.bf16.msra.mxu0 %v515
    %1587 = vmatprep.subr.bf16.mxu0 0
    %1588 = vmatpush1.bf16.msra.mxu0 %v514
    %1589 = vmatprep.subr.bf16.mxu0 0
    %1590 = vmatpush1.bf16.msra.mxu0 %v513
    %1591 = vmatprep.subr.bf16.mxu0 0
    %1592 = vmatpush1.bf16.msra.mxu0 %v512
    %1593 = vmatprep.subr.bf16.mxu0 0
    %1594 = vmatpush1.bf16.msra.mxu0 %v511
    %1595 = vmatprep.subr.bf16.mxu0 0
    %1596 = vmatpush1.bf16.msra.mxu0 %v510
    %1597 = vmatprep.subr.bf16.mxu0 0
    %1598 = vmatpush2.bf16.msra.mxu0 %v525
    %1599 = vmatprep.subr.bf16.mxu0 0
    %1600 = vmatpush2.bf16.msra.mxu0 %v524
    %1601 = vmatprep.subr.bf16.mxu0 0
    %1602 = vmatpush2.bf16.msra.mxu0 %v523
    %1603 = vmatprep.subr.bf16.mxu0 0
    %1604 = vmatpush2.bf16.msra.mxu0 %v522
    %1605 = vmatprep.subr.bf16.mxu0 0
    %1606 = vmatpush2.bf16.msra.mxu0 %v521
    %1607 = vmatprep.subr.bf16.mxu0 0
    %1608 = vmatpush2.bf16.msra.mxu0 %v520
    %1609 = vmatprep.subr.bf16.mxu0 0
    %1610 = vmatpush2.bf16.msra.mxu0 %v519
    %1611 = vmatprep.subr.bf16.mxu0 0
    %1612 = vmatpush2.bf16.msra.mxu0 %v518
    %1613 = vmatprep.mubr.bf16.mxu0 %v1488
    %1614 = vmatmul.mubr.bf16.gmra.mxu0 %v1474
    %v1615 = vpop.f32.mrf.mxu0
    %v1616 = vadd.f32 %v1576, %v1615
    %v1617 = vpop.f32.mrf.mxu0
    %v1618 = vpop.f32.mrf.mxu0
    %v1619 = vpop.f32.mrf.mxu0
    %1620 = vdwg.mxu0
    %1621 = vmatprep.subr.bf16.mxu0 0
    %1622 = vmatpush1.bf16.msra.mxu0 %v533
    %1623 = vmatprep.subr.bf16.mxu0 0
    %1624 = vmatpush1.bf16.msra.mxu0 %v532
    %1625 = vmatprep.subr.bf16.mxu0 0
    %1626 = vmatpush1.bf16.msra.mxu0 %v531
    %1627 = vmatprep.subr.bf16.mxu0 0
    %1628 = vmatpush1.bf16.msra.mxu0 %v530
    %1629 = vmatprep.subr.bf16.mxu0 0
    %1630 = vmatpush1.bf16.msra.mxu0 %v529
    %1631 = vmatprep.subr.bf16.mxu0 0
    %1632 = vmatpush1.bf16.msra.mxu0 %v528
    %1633 = vmatprep.subr.bf16.mxu0 0
    %1634 = vmatpush1.bf16.msra.mxu0 %v527
    %1635 = vmatprep.subr.bf16.mxu0 0
    %1636 = vmatpush1.bf16.msra.mxu0 %v526
    %1637 = vmatprep.subr.bf16.mxu0 0
    %1638 = vmatpush2.bf16.msra.mxu0 %v541
    %1639 = vmatprep.subr.bf16.mxu0 0
    %1640 = vmatpush2.bf16.msra.mxu0 %v540
    %1641 = vmatprep.subr.bf16.mxu0 0
    %1642 = vmatpush2.bf16.msra.mxu0 %v539
    %1643 = vmatprep.subr.bf16.mxu0 0
    %1644 = vmatpush2.bf16.msra.mxu0 %v538
    %1645 = vmatprep.subr.bf16.mxu0 0
    %1646 = vmatpush2.bf16.msra.mxu0 %v537
    %1647 = vmatprep.subr.bf16.mxu0 0
    %1648 = vmatpush2.bf16.msra.mxu0 %v536
    %1649 = vmatprep.subr.bf16.mxu0 0
    %1650 = vmatpush2.bf16.msra.mxu0 %v535
    %1651 = vmatprep.subr.bf16.mxu0 0
    %1652 = vmatpush2.bf16.msra.mxu0 %v534
    %1653 = vmatprep.mubr.bf16.mxu0 %v1492
    %1654 = vmatmul.mubr.bf16.gmra.mxu0 %v1490
    %v1655 = vpop.f32.mrf.mxu0
    %v1656 = vadd.f32 %v1616, %v1655
    %v1657 = vpop.f32.mrf.mxu0
    %v1658 = vpop.f32.mrf.mxu0
    %v1659 = vpop.f32.mrf.mxu0
    %1660 = vdwg.mxu0
    %v1661 = vmax.f32 %v1656, 0.0
    %v1662 = vpack.c.bf16 %v1661, %v1661
    %s1663 = scalar_lea.vmem %s3, 96
    %v1664 = vld [vmem:[%s1663] sm:$0xf]
    %v1665 = vld [vmem:[%s1663 + $0x4] sm:$0xf]
    %v1666 = vld [vmem:[%s1663 + $0x8] sm:$0xf]
    %v1667 = vld [vmem:[%s1663 + $0xc] sm:$0xf]
    %v1668 = vld [vmem:[%s1663 + $0x10] sm:$0xf]
    %v1669 = vld [vmem:[%s1663 + $0x14] sm:$0xf]
    %v1670 = vld [vmem:[%s1663 + $0x18] sm:$0xf]
    %v1671 = vld [vmem:[%s1663 + $0x1c] sm:$0xf]
    %v1680 = vunpack.c.l.b16 %v1664
    %v1681 = vunpack.c.l.b16 %v1665
    %v1682 = vunpack.c.l.b16 %v1666
    %v1683 = vunpack.c.l.b16 %v1667
    %v1684 = vunpack.c.l.b16 %v1668
    %v1685 = vunpack.c.l.b16 %v1669
    %v1686 = vunpack.c.l.b16 %v1670
    %v1687 = vunpack.c.l.b16 %v1671
    %v1688 = vpack.c.b16 %v1681, %v1680
    %v1689 = vpack.c.b16 %v1683, %v1682
    %v1690 = vpack.c.b16 %v1685, %v1684
    %v1691 = vpack.c.b16 %v1687, %v1686
    %v1697 = vsel %vm1031, %v1662, 0
    %1699 = vmatprep.subr.bf16.mxu0 0
    %1700 = vmatpush1.bf16.msra.mxu0 0
    %1701 = vmatprep.subr.bf16.mxu0 0
    %1702 = vmatpush1.bf16.msra.mxu0 0
    %1703 = vmatprep.subr.bf16.mxu0 0
    %1704 = vmatpush1.bf16.msra.mxu0 0
    %1705 = vmatprep.subr.bf16.mxu0 0
    %1706 = vmatpush1.bf16.msra.mxu0 0
    %1707 = vmatprep.subr.bf16.mxu0 0
    %1708 = vmatpush1.bf16.msra.mxu0 %v1691
    %1709 = vmatprep.subr.bf16.mxu0 0
    %1710 = vmatpush1.bf16.msra.mxu0 %v1690
    %1711 = vmatprep.subr.bf16.mxu0 0
    %1712 = vmatpush1.bf16.msra.mxu0 %v1689
    %1713 = vmatprep.subr.bf16.mxu0 0
    %1714 = vmatpush1.bf16.msra.mxu0 %v1688
    %1715 = vmatprep.subr.bf16.mxu0 0
    %1716 = vmatpush2.bf16.msra.mxu0 0
    %1717 = vmatprep.subr.bf16.mxu0 0
    %1718 = vmatpush2.bf16.msra.mxu0 0
    %1719 = vmatprep.subr.bf16.mxu0 0
    %1720 = vmatpush2.bf16.msra.mxu0 0
    %1721 = vmatprep.subr.bf16.mxu0 0
    %1722 = vmatpush2.bf16.msra.mxu0 0
    %1723 = vmatprep.subr.bf16.mxu0 0
    %1724 = vmatpush2.bf16.msra.mxu0 0
    %1725 = vmatprep.subr.bf16.mxu0 0
    %1726 = vmatpush2.bf16.msra.mxu0 0
    %1727 = vmatprep.subr.bf16.mxu0 0
    %1728 = vmatpush2.bf16.msra.mxu0 0
    %1729 = vmatprep.subr.bf16.mxu0 0
    %1730 = vmatpush2.bf16.msra.mxu0 0
    %1731 = vmatprep.mubr.bf16.mxu0 0
    %1732 = vmatmul.mubr.bf16.gmra.mxu0 %v1697
    %v1733 = vpop.f32.mrf.mxu0
    %v1734 = vadd.f32 0.0, %v1733
    %v1735 = vpop.f32.mrf.mxu0
    %v1736 = vpop.f32.mrf.mxu0
    %v1737 = vpop.f32.mrf.mxu0
    %1738 = vdwg.mxu0
    %v1739 = vadd.f32 %v1440, %v1734
    %v1740 = vld [vmem:[%s4] sm:$0x1]
    %v1742 = vlaneseq
    %v1743 = vshrl.u32 %v1742, 7
    %v1744 = vsub.s32 0, %v1743
    %v1745 = vrot.slane %v1740, %v1744
    %v1747 = vadd.f32 %v1739, %v1745
    %v1748 = vmax.f32 %v1747, 0.0
    %v1749 = vpack.c.bf16 %v1748, %v1748
    %v1750 = vld [vmem:[%s5] sm:$0xf]
    %v1751 = vld [vmem:[%s5 + $0x4] sm:$0xf]
    %v1752 = vld [vmem:[%s5 + $0x8] sm:$0xf]
    %v1753 = vld [vmem:[%s5 + $0xc] sm:$0xf]
    %v1754 = vld [vmem:[%s5 + $0x10] sm:$0xf]
    %v1755 = vld [vmem:[%s5 + $0x14] sm:$0xf]
    %v1756 = vld [vmem:[%s5 + $0x18] sm:$0xf]
    %v1757 = vld [vmem:[%s5 + $0x1c] sm:$0xf]
    %v1758 = vld [vmem:[%s5 + $0x20] sm:$0xf]
    %v1759 = vld [vmem:[%s5 + $0x24] sm:$0xf]
    %v1760 = vld [vmem:[%s5 + $0x28] sm:$0xf]
    %v1761 = vld [vmem:[%s5 + $0x2c] sm:$0xf]
    %v1762 = vld [vmem:[%s5 + $0x30] sm:$0xf]
    %v1763 = vld [vmem:[%s5 + $0x34] sm:$0xf]
    %v1764 = vld [vmem:[%s5 + $0x38] sm:$0xf]
    %v1765 = vld [vmem:[%s5 + $0x3c] sm:$0xf]
    %v1766 = vld [vmem:[%s6] sm:$0x1]
    %v1768 = vlaneseq
    %v1769 = vshrl.u32 %v1768, 7
    %v1770 = vsub.s32 0, %v1769
    %v1771 = vrot.slane %v1766, %v1770
    %v1789 = vunpack.c.l.b16 %v1750
    %v1790 = vunpack.c.l.b16 %v1751
    %v1791 = vunpack.c.l.b16 %v1752
    %v1792 = vunpack.c.l.b16 %v1753
    %v1793 = vunpack.c.l.b16 %v1754
    %v1794 = vunpack.c.l.b16 %v1755
    %v1795 = vunpack.c.l.b16 %v1756
    %v1796 = vunpack.c.l.b16 %v1757
    %v1797 = vunpack.c.l.b16 %v1758
    %v1798 = vunpack.c.l.b16 %v1759
    %v1799 = vunpack.c.l.b16 %v1760
    %v1800 = vunpack.c.l.b16 %v1761
    %v1801 = vunpack.c.l.b16 %v1762
    %v1802 = vunpack.c.l.b16 %v1763
    %v1803 = vunpack.c.l.b16 %v1764
    %v1804 = vunpack.c.l.b16 %v1765
    %v1805 = vpack.c.b16 %v1790, %v1789
    %v1806 = vpack.c.b16 %v1792, %v1791
    %v1807 = vpack.c.b16 %v1794, %v1793
    %v1808 = vpack.c.b16 %v1796, %v1795
    %v1809 = vpack.c.b16 %v1798, %v1797
    %v1810 = vpack.c.b16 %v1800, %v1799
    %v1811 = vpack.c.b16 %v1802, %v1801
    %v1812 = vpack.c.b16 %v1804, %v1803
    %1821 = vmatprep.subr.bf16.mxu0 0
    %1822 = vmatpush1.bf16.msra.mxu0 %v1812
    %1823 = vmatprep.subr.bf16.mxu0 0
    %1824 = vmatpush1.bf16.msra.mxu0 %v1811
    %1825 = vmatprep.subr.bf16.mxu0 0
    %1826 = vmatpush1.bf16.msra.mxu0 %v1810
    %1827 = vmatprep.subr.bf16.mxu0 0
    %1828 = vmatpush1.bf16.msra.mxu0 %v1809
    %1829 = vmatprep.subr.bf16.mxu0 0
    %1830 = vmatpush1.bf16.msra.mxu0 %v1808
    %1831 = vmatprep.subr.bf16.mxu0 0
    %1832 = vmatpush1.bf16.msra.mxu0 %v1807
    %1833 = vmatprep.subr.bf16.mxu0 0
    %1834 = vmatpush1.bf16.msra.mxu0 %v1806
    %1835 = vmatprep.subr.bf16.mxu0 0
    %1836 = vmatpush1.bf16.msra.mxu0 %v1805
    %1837 = vmatprep.subr.bf16.mxu0 0
    %1838 = vmatpush2.bf16.msra.mxu0 0
    %1839 = vmatprep.subr.bf16.mxu0 0
    %1840 = vmatpush2.bf16.msra.mxu0 0
    %1841 = vmatprep.subr.bf16.mxu0 0
    %1842 = vmatpush2.bf16.msra.mxu0 0
    %1843 = vmatprep.subr.bf16.mxu0 0
    %1844 = vmatpush2.bf16.msra.mxu0 0
    %1845 = vmatprep.subr.bf16.mxu0 0
    %1846 = vmatpush2.bf16.msra.mxu0 0
    %1847 = vmatprep.subr.bf16.mxu0 0
    %1848 = vmatpush2.bf16.msra.mxu0 0
    %1849 = vmatprep.subr.bf16.mxu0 0
    %1850 = vmatpush2.bf16.msra.mxu0 0
    %1851 = vmatprep.subr.bf16.mxu0 0
    %1852 = vmatpush2.bf16.msra.mxu0 0
    %1853 = vmatprep.mubr.bf16.mxu0 0
    %1854 = vmatmul.mubr.bf16.gmra.mxu0 %v1749
    %v1855 = vpop.f32.mrf.mxu0
    %v1856 = vadd.f32 %v1771, %v1855
    %v1857 = vpop.f32.mrf.mxu0
    %v1858 = vpop.f32.mrf.mxu0
    %v1859 = vpop.f32.mrf.mxu0
    %1860 = vdwg.mxu0
    %v1861 = vlaneseq
    %v1862 = vand.u32 %v1861, 127
    %vm1863 = vcmp.ge.s32.totalorder %v1862, 2
    %v1864 = vxor.u32 %v1856, 2147483648
    %v1865 = vmul.f32 %v1864, 1.442695
    %v1866 = vpow.pop %v1865
    %v1867 = vadd.f32 %v1866, 1.0
    %v1868 = vrcp.pop %v1867
    %v1869 = vmul.f32 1.0, %v1868
    %v1870 = vsel %vm1863, %v1869, %v1856
    %vm1871 = vcmask 33792
    %1872 = vst.msk [vmem:[#allocation2] sm:$0x3] %vm1871, %v1870
    // Predicated region
    $region30: #{convnet_rgb_forward.5} parent=1 // pred_check
      _
    $region31: #{convnet_rgb_forward.5} parent=1 // pred_check_branch
      %1874 = sbr.rel (0) target = $region33
    $region32: #{convnet_rgb_forward.5} parent=1 // pred_region
      %s1876 = ssub.s32 32, 32
      %1877 = vsyncadd [#allocation3], %s1876
      %s1879 = sshll.u32 [#allocation2], 4
      %s1880 = int_to_ptr.vmem [resolvable:$true] %s1879
      %1882 = dma.vmem_to_hbm [thread:$0]  %s1880, 32, %s7, [#allocation3]
    $region33: #{convnet_rgb_forward.5} parent=1 // pred_fallthru
      _
    // Predicated region
    $region34: #{convnet_rgb_forward.5} parent=1 // pred_check
      _
    $region35: #{convnet_rgb_forward.5} parent=1 // pred_check_branch
      %1884 = sbr.rel (0) target = $region37
    $region36: #{convnet_rgb_forward.5} parent=1 // pred_region
      %1885 = dma.done [#allocation3], 32
    $region37: #{convnet_rgb_forward.5} parent=1 // pred_fallthru
      _
    %1886 = vsyncpa [#allocation3], 1

</llo_original>
